<compile_context>
chip_gen: v5e
topology: v5e:2x2
jax: 0.10.0
libtpu: 0.0.40
codegen_flags: <defaults>
</compile_context>

<pallas_src>
import jax
import jax.numpy as jnp
from jax import lax
from jax.experimental import pallas as pl
from jax.experimental.pallas import tpu as pltpu

# ---------------- configuration (small, consistent with the module) ----------
V    = 50    # vocab size
D    = 32    # embedding size
H    = 32    # LSTM hidden size
H_f  = 64    # FC hidden size
O    = 4     # output size
da   = 16    # attention dim
r    = 4     # number of attention hops ("keywords")
L    = 3     # num_layers
B    = 2     # batch
T    = 8     # seq len
NUM_DIRECTIONS = 1   # bidirec=False

VP   = 56    # vocab rows padded to a sublane multiple (one-hot width)
G4   = 4 * H # gate lanes (128)

# ---- packed weight-buffer row offsets (single (WROWS, 128) f32 VMEM DMA) ----
OFF_WEMB0  = 0                 # (VP, 4H)  embed @ Wih0 + b0 (gather+proj folded)
OFF_WHH0   = OFF_WEMB0 + VP    # (H, 4H)
OFF_WIH1   = OFF_WHH0 + H      # (H, 4H)
OFF_WHH1   = OFF_WIH1 + H
OFF_WIH2   = OFF_WHH1 + H
OFF_WHH2   = OFF_WIH2 + H
OFF_BIAS   = OFF_WHH2 + H      # row 0: layer-1 gate bias, row 1: layer-2 gate bias
OFF_WATTN  = 224               # (H, da)    in cols 0:da   (8-row aligned)
OFF_WATTN2 = 256               # (da, r)    in cols 0:r
OFF_W1     = 272               # (r*H, H_f) in cols 0:H_f
OFF_B1     = 400               # (1, H_f)
OFF_W2     = 408               # (H_f, O)   in cols 0:O
OFF_B2     = 472               # (1, O)
WROWS      = 480


# ------------------------- fused forward kernel ------------------------------
def fused_kernel(ibuf_ref, wbuf_ref, logits_ref, loss_ref):
    # ibuf_ref:   (T*B + B, 1) int32  rows 0:T*B = token ids (time-major,
    #                                 row = t*B + b), rows T*B: = lengths
    # wbuf_ref:   (WROWS, 128) f32    packed weights (see offsets above)
    # logits_ref: (B, O)  VMEM output
    # loss_ref:   (1, 1)  VMEM output (penalization loss)
    f32 = jnp.float32

    # ---- integer inputs -----------------------------------------------------
    ids  = ibuf_ref[0:T * B, :]              # (T*B, 1) int32
    lens = ibuf_ref[T * B:T * B + B, :]      # (B, 1)   int32

    # ---- static views into the packed weight buffer -------------------------
    wemb0     = wbuf_ref[OFF_WEMB0:OFF_WEMB0 + VP, :]          # (VP, 4H)
    whh0      = wbuf_ref[OFF_WHH0:OFF_WHH0 + H, :]             # (H, 4H)
    wih1      = wbuf_ref[OFF_WIH1:OFF_WIH1 + H, :]
    whh1      = wbuf_ref[OFF_WHH1:OFF_WHH1 + H, :]
    wih2      = wbuf_ref[OFF_WIH2:OFF_WIH2 + H, :]
    whh2      = wbuf_ref[OFF_WHH2:OFF_WHH2 + H, :]
    bias_rows = wbuf_ref[OFF_BIAS:OFF_BIAS + 2, :]             # (2, 4H)
    wattn     = wbuf_ref[OFF_WATTN:OFF_WATTN + H, 0:da]        # (H, da)
    wattn2    = wbuf_ref[OFF_WATTN2:OFF_WATTN2 + da, 0:r]      # (da, r)
    w1        = wbuf_ref[OFF_W1:OFF_W1 + r * H, 0:H_f]         # (r*H, H_f)
    b1        = wbuf_ref[OFF_B1:OFF_B1 + 1, 0:H_f]             # (1, H_f)
    w2        = wbuf_ref[OFF_W2:OFF_W2 + H_f, 0:O]             # (H_f, O)
    b2        = wbuf_ref[OFF_B2:OFF_B2 + 1, 0:O]               # (1, O)

    bias1 = jnp.broadcast_to(bias_rows[0:1, :], (B, G4))       # hoisted bcasts
    bias2 = jnp.broadcast_to(bias_rows[1:2, :], (B, G4))

    # ---- fused embedding gather + layer-0 input projection (+ bias) ---------
    # one_hot(ids) @ (embed @ Wih0 + b0) == embed[ids] @ Wih0 + b0 (exact
    # row selection): one MXU dot replaces gather + transpose + projection.
    oh = (ids == lax.broadcasted_iota(jnp.int32, (T * B, VP), 1)).astype(f32)
    xz = jnp.dot(oh, wemb0, preferred_element_type=f32)         # (T*B, 4H)

    # per-step validity masks (pack_padded_sequence emulation), hoisted
    masks = [lens > t for t in range(T)]                        # each (B, 1) bool

    # h/c state lives in registers (Python locals), not VMEM scratch.
    hs = [jnp.zeros((B, H), f32) for _ in range(L)]
    cs = [jnp.zeros((B, H), f32) for _ in range(L)]
    outs = [None] * T

    def cell(gates, h_prev, c_prev, mb):
        sig = jax.nn.sigmoid(gates)                 # one EUP sigmoid pass
        th  = jnp.tanh(gates)                       # one EUP tanh pass
        i_g = sig[:, 0 * H:1 * H]
        f_g = sig[:, 1 * H:2 * H]
        g_g = th[:,  2 * H:3 * H]
        o_g = sig[:, 3 * H:4 * H]
        c_new = f_g * c_prev + i_g * g_g
        h_new = o_g * jnp.tanh(c_new)
        # packed-sequence semantics: state does not advance past each length
        h_new = jnp.where(mb, h_new, h_prev)
        c_new = jnp.where(mb, c_new, c_prev)
        return h_new, c_new

    # ---- wavefront-stacked recurrence: T + L - 1 = 10 serial steps ----------
    # At step s the cells (l=0,t=s), (l=1,t=s-1), (l=2,t=s-2) are mutually
    # independent: all gate dots of a step read only previous-step states and
    # are issued back-to-back so the MXU pipelines them.
    for s in range(T + L - 1):
        # phase 1: gate pre-activations (read only pre-update states)
        pend = []
        for l in range(L):
            t = s - l
            if 0 <= t < T:
                if l == 0:
                    g = xz[t * B:(t + 1) * B, :] + jnp.dot(
                        hs[0], whh0, preferred_element_type=f32)
                elif l == 1:
                    g = (jnp.dot(hs[0], wih1, preferred_element_type=f32)
                         + jnp.dot(hs[1], whh1, preferred_element_type=f32)
                         + bias1)
                else:
                    g = (jnp.dot(hs[1], wih2, preferred_element_type=f32)
                         + jnp.dot(hs[2], whh2, preferred_element_type=f32)
                         + bias2)
                pend.append((l, t, g))
        # phase 2: apply the cells and commit the new states
        for l, t, g in pend:
            hs[l], cs[l] = cell(g, hs[l], cs[l], masks[t])
            if l == L - 1:
                # pad_packed_sequence zero-pads outputs past each length
                outs[t] = jnp.where(masks[t], hs[l], 0.0)

    # ---- structured self-attention + penalization + FC head -----------------
    out2 = jnp.concatenate(outs, axis=0)            # (T*B, H), row = t*B + b
    out3 = jnp.stack(outs, axis=0)                  # (T, B, H)

    a1  = jnp.tanh(jnp.dot(out2, wattn, preferred_element_type=f32))    # (T*B, da)
    sc2 = jnp.dot(a1, wattn2, preferred_element_type=f32)               # (T*B, r)
    sc3 = jnp.stack([sc2[t * B:(t + 1) * B, :] for t in range(T)], axis=0)  # (T,B,r)

    # softmax over T (== softmax(dim=2) of score.transpose(1,2) in reference)
    smax  = jnp.max(sc3, axis=0, keepdims=True)
    e     = jnp.exp(sc3 - smax)
    denom = jnp.sum(e, axis=0, keepdims=True)
    A3    = e * pl.reciprocal(denom, approx=True)   # (T, B, r); A[b,j,t] == A3[t,b,j]

    # M = A.bmm(output) built directly in flattened (B, r*H) form, and the
    # Frobenius penalization via VPU broadcast-multiply + T-reduce (no tiny
    # batched MXU gram matmul).
    col_j = lax.broadcasted_iota(jnp.int32, (1, r), 1)
    m_cols = []
    sq = jnp.zeros((B, 1), f32)
    for j in range(r):
        a_j = A3[:, :, j:j + 1]                               # (T, B, 1)
        m_cols.append(jnp.sum(a_j * out3, axis=0))            # (B, H)
        g_j = jnp.sum(a_j * A3, axis=0)                       # row j of A A^T: (B, r)
        p_j = g_j - (col_j == j).astype(f32)
        sq = sq + jnp.sum(p_j * p_j, axis=1, keepdims=True)   # (B, 1)
    loss2d = jnp.sum(jnp.sqrt(sq + 1e-10), axis=0, keepdims=True) * (1.0 / B)
    m_flat = jnp.concatenate(m_cols, axis=1)                  # (B, r*H)

    hid = jnp.maximum(jnp.dot(m_flat, w1, preferred_element_type=f32) + b1, 0.0)
    logits = jnp.dot(hid, w2, preferred_element_type=f32) + b2

    logits_ref[...] = logits
    loss_ref[...] = loss2d


# ------------------------------- wrapper --------------------------------------
def run_fused(ibuf, wbuf):
    return pl.pallas_call(
        fused_kernel,
        out_shape=(jax.ShapeDtypeStruct((B, O), jnp.float32),
                   jax.ShapeDtypeStruct((1, 1), jnp.float32)),
        in_specs=[pl.BlockSpec(memory_space=pltpu.MemorySpace.VMEM),
                  pl.BlockSpec(memory_space=pltpu.MemorySpace.VMEM)],
        out_specs=(pl.BlockSpec(memory_space=pltpu.MemorySpace.VMEM),
                   pl.BlockSpec(memory_space=pltpu.MemorySpace.VMEM)),
    )(ibuf, wbuf)


def init_params(key):
    ks = jax.random.split(key, 10)
    s = 1.0 / jnp.sqrt(jnp.float32(H))
    embed = jax.random.normal(ks[0], (V, D), jnp.float32) * 0.1
    wih = jax.random.uniform(ks[1], (L, D, 4 * H), jnp.float32, minval=-s, maxval=s)
    whh = jax.random.uniform(ks[2], (L, H, 4 * H), jnp.float32, minval=-s, maxval=s)
    b   = jax.random.uniform(ks[3], (L, 1, 4 * H), jnp.float32, minval=-s, maxval=s)  # b_ih+b_hh
    wattn  = jax.random.normal(ks[4], (NUM_DIRECTIONS * H, da), jnp.float32) * 0.1
    wattn2 = jax.random.normal(ks[5], (da, r), jnp.float32) * 0.1
    w1 = jax.random.normal(ks[6], (r * H * NUM_DIRECTIONS, H_f), jnp.float32) * 0.05
    b1 = jax.random.normal(ks[7], (1, H_f), jnp.float32) * 0.05
    w2 = jax.random.normal(ks[8], (H_f, O), jnp.float32) * 0.05
    b2 = jax.random.normal(ks[9], (1, O), jnp.float32) * 0.05

    # Fold embedding lookup + layer-0 input projection + layer-0 bias into one
    # table: (one_hot @ (embed @ Wih0 + b0)) == embed[ids] @ Wih0 + b0.
    wemb0 = embed @ wih[0] + b[0]                                    # (V, 4H)

    # Pack everything into a single contiguous (WROWS, 128) f32 buffer.
    wbuf = jnp.zeros((WROWS, 128), jnp.float32)
    wbuf = wbuf.at[OFF_WEMB0:OFF_WEMB0 + V, :].set(wemb0)
    wbuf = wbuf.at[OFF_WHH0:OFF_WHH0 + H, :].set(whh[0])
    wbuf = wbuf.at[OFF_WIH1:OFF_WIH1 + H, :].set(wih[1])
    wbuf = wbuf.at[OFF_WHH1:OFF_WHH1 + H, :].set(whh[1])
    wbuf = wbuf.at[OFF_WIH2:OFF_WIH2 + H, :].set(wih[2])
    wbuf = wbuf.at[OFF_WHH2:OFF_WHH2 + H, :].set(whh[2])
    wbuf = wbuf.at[OFF_BIAS:OFF_BIAS + 1, :].set(b[1])
    wbuf = wbuf.at[OFF_BIAS + 1:OFF_BIAS + 2, :].set(b[2])
    wbuf = wbuf.at[OFF_WATTN:OFF_WATTN + H, 0:da].set(wattn)
    wbuf = wbuf.at[OFF_WATTN2:OFF_WATTN2 + da, 0:r].set(wattn2)
    wbuf = wbuf.at[OFF_W1:OFF_W1 + r * H, 0:H_f].set(w1)
    wbuf = wbuf.at[OFF_B1:OFF_B1 + 1, 0:H_f].set(b1)
    wbuf = wbuf.at[OFF_W2:OFF_W2 + H_f, 0:O].set(w2)
    wbuf = wbuf.at[OFF_B2:OFF_B2 + 1, 0:O].set(b2)
    return {'wbuf': wbuf}


@jax.jit
def forward(params, inputs, lengths):
    # inputs: (B, T) int32 token ids; lengths: (B,) int32 (descending, as
    # pack_padded_sequence requires). Only trivial int glue remains host-side:
    # 72 bytes reordered into one small int buffer.
    ids_tm = jnp.transpose(inputs, (1, 0)).reshape(T * B, 1)          # row = t*B + b
    ibuf = jnp.concatenate([ids_tm, lengths.reshape(B, 1)], axis=0).astype(jnp.int32)
    logits, loss = run_fused(ibuf, params['wbuf'])
    return logits, loss[0, 0]


if __name__ == "__main__":
    key = jax.random.PRNGKey(0)
    pkey, dkey = jax.random.split(key)
    params = init_params(pkey)

    inputs = jax.random.randint(dkey, (B, T), 0, V, dtype=jnp.int32)   # (B, T) token ids
    lengths = jnp.array([T, T - 2], dtype=jnp.int32)                   # descending lengths

    logits, loss_p = forward(params, inputs, lengths)
    jax.block_until_ready((logits, loss_p))

    assert logits.shape == (B, O)
    assert loss_p.shape == ()
    print("KERNEL_OK")
</pallas_src>

<mosaic_0001>
module attributes {stable_mosaic.version = 11 : i64} {
  func.func @fused_kernel(%arg0: memref<18x1xi32, #tpu.memory_space<vmem>>, %arg1: memref<480x128xf32, #tpu.memory_space<vmem>>, %arg2: memref<2x4xf32, #tpu.memory_space<vmem>>, %arg3: memref<1x1xf32, #tpu.memory_space<vmem>>) attributes {dimension_semantics = [], scalar_prefetch = 0 : i64, scratch_operands = 0 : i64, tpu.core_type = #tpu.core_type<tc>} {
    %c0 = arith.constant 0 : index
    %c0_0 = arith.constant 0 : index
    %0 = vector.load %arg0[%c0, %c0_0] : memref<18x1xi32, #tpu.memory_space<vmem>>, vector<16x1xi32>
    %c16 = arith.constant 16 : index
    %c0_1 = arith.constant 0 : index
    %1 = vector.load %arg0[%c16, %c0_1] : memref<18x1xi32, #tpu.memory_space<vmem>>, vector<2x1xi32>
    %c0_2 = arith.constant 0 : index
    %c0_3 = arith.constant 0 : index
    %2 = vector.load %arg1[%c0_2, %c0_3] : memref<480x128xf32, #tpu.memory_space<vmem>>, vector<56x128xf32>
    %c56 = arith.constant 56 : index
    %c0_4 = arith.constant 0 : index
    %3 = vector.load %arg1[%c56, %c0_4] : memref<480x128xf32, #tpu.memory_space<vmem>>, vector<32x128xf32>
    %c88 = arith.constant 88 : index
    %c0_5 = arith.constant 0 : index
    %4 = vector.load %arg1[%c88, %c0_5] : memref<480x128xf32, #tpu.memory_space<vmem>>, vector<32x128xf32>
    %c120 = arith.constant 120 : index
    %c0_6 = arith.constant 0 : index
    %5 = vector.load %arg1[%c120, %c0_6] : memref<480x128xf32, #tpu.memory_space<vmem>>, vector<32x128xf32>
    %c152 = arith.constant 152 : index
    %c0_7 = arith.constant 0 : index
    %6 = vector.load %arg1[%c152, %c0_7] : memref<480x128xf32, #tpu.memory_space<vmem>>, vector<32x128xf32>
    %c184 = arith.constant 184 : index
    %c0_8 = arith.constant 0 : index
    %7 = vector.load %arg1[%c184, %c0_8] : memref<480x128xf32, #tpu.memory_space<vmem>>, vector<32x128xf32>
    %c216 = arith.constant 216 : index
    %c0_9 = arith.constant 0 : index
    %8 = vector.load %arg1[%c216, %c0_9] : memref<480x128xf32, #tpu.memory_space<vmem>>, vector<2x128xf32>
    %c224 = arith.constant 224 : index
    %c0_10 = arith.constant 0 : index
    %9 = vector.load %arg1[%c224, %c0_10] : memref<480x128xf32, #tpu.memory_space<vmem>>, vector<32x16xf32>
    %c256 = arith.constant 256 : index
    %c0_11 = arith.constant 0 : index
    %10 = vector.load %arg1[%c256, %c0_11] : memref<480x128xf32, #tpu.memory_space<vmem>>, vector<16x4xf32>
    %c272 = arith.constant 272 : index
    %c0_12 = arith.constant 0 : index
    %11 = vector.load %arg1[%c272, %c0_12] : memref<480x128xf32, #tpu.memory_space<vmem>>, vector<128x64xf32>
    %c400 = arith.constant 400 : index
    %c0_13 = arith.constant 0 : index
    %12 = vector.load %arg1[%c400, %c0_13] : memref<480x128xf32, #tpu.memory_space<vmem>>, vector<1x64xf32>
    %c408 = arith.constant 408 : index
    %c0_14 = arith.constant 0 : index
    %13 = vector.load %arg1[%c408, %c0_14] : memref<480x128xf32, #tpu.memory_space<vmem>>, vector<64x4xf32>
    %c472 = arith.constant 472 : index
    %c0_15 = arith.constant 0 : index
    %14 = vector.load %arg1[%c472, %c0_15] : memref<480x128xf32, #tpu.memory_space<vmem>>, vector<1x4xf32>
    %15 = vector.extract_strided_slice %8 {offsets = [0, 0], sizes = [1, 128], strides = [1, 1]} : vector<2x128xf32> to vector<1x128xf32>
    %16 = vector.shape_cast %15 : vector<1x128xf32> to vector<1x128xf32>
    %17 = vector.broadcast %16 : vector<1x128xf32> to vector<2x128xf32>
    %18 = vector.extract_strided_slice %8 {offsets = [1, 0], sizes = [1, 128], strides = [1, 1]} : vector<2x128xf32> to vector<1x128xf32>
    %19 = vector.shape_cast %18 : vector<1x128xf32> to vector<1x128xf32>
    %20 = vector.broadcast %19 : vector<1x128xf32> to vector<2x128xf32>
    %21 = tpu.iota {dimensions = array<i32: 1>} : vector<16x56xi32>
    %22 = vector.broadcast %0 : vector<16x1xi32> to vector<16x56xi32>
    %23 = arith.cmpi eq, %22, %21 : vector<16x56xi32>
    %24 = arith.extui %23 : vector<16x56xi1> to vector<16x56xi32>
    %25 = arith.sitofp %24 : vector<16x56xi32> to vector<16x56xf32>
    %cst = arith.constant dense<0.000000e+00> : vector<16x128xf32>
    %26 = tpu.matmul %25, %2, %cst {dimension_numbers = #tpu.dot_dimension_numbers<[1], [0], [0], [1], [0, 0, 1, 1], [], []>} : vector<16x56xf32>, vector<56x128xf32>, vector<16x128xf32> -> vector<16x128xf32>
    %c0_i32 = arith.constant 0 : i32
    %27 = vector.broadcast %c0_i32 : i32 to vector<2x1xi32>
    %28 = arith.cmpi sgt, %1, %27 : vector<2x1xi32>
    %c1_i32 = arith.constant 1 : i32
    %29 = vector.broadcast %c1_i32 : i32 to vector<2x1xi32>
    %30 = arith.cmpi sgt, %1, %29 : vector<2x1xi32>
    %c2_i32 = arith.constant 2 : i32
    %31 = vector.broadcast %c2_i32 : i32 to vector<2x1xi32>
    %32 = arith.cmpi sgt, %1, %31 : vector<2x1xi32>
    %c3_i32 = arith.constant 3 : i32
    %33 = vector.broadcast %c3_i32 : i32 to vector<2x1xi32>
    %34 = arith.cmpi sgt, %1, %33 : vector<2x1xi32>
    %c4_i32 = arith.constant 4 : i32
    %35 = vector.broadcast %c4_i32 : i32 to vector<2x1xi32>
    %36 = arith.cmpi sgt, %1, %35 : vector<2x1xi32>
    %c5_i32 = arith.constant 5 : i32
    %37 = vector.broadcast %c5_i32 : i32 to vector<2x1xi32>
    %38 = arith.cmpi sgt, %1, %37 : vector<2x1xi32>
    %c6_i32 = arith.constant 6 : i32
    %39 = vector.broadcast %c6_i32 : i32 to vector<2x1xi32>
    %40 = arith.cmpi sgt, %1, %39 : vector<2x1xi32>
    %c7_i32 = arith.constant 7 : i32
    %41 = vector.broadcast %c7_i32 : i32 to vector<2x1xi32>
    %42 = arith.cmpi sgt, %1, %41 : vector<2x1xi32>
    %cst_16 = arith.constant 0.000000e+00 : f32
    %43 = vector.broadcast %cst_16 : f32 to vector<2x32xf32>
    %cst_17 = arith.constant 0.000000e+00 : f32
    %44 = vector.broadcast %cst_17 : f32 to vector<2x32xf32>
    %cst_18 = arith.constant 0.000000e+00 : f32
    %45 = vector.broadcast %cst_18 : f32 to vector<2x32xf32>
    %cst_19 = arith.constant 0.000000e+00 : f32
    %46 = vector.broadcast %cst_19 : f32 to vector<2x32xf32>
    %cst_20 = arith.constant 0.000000e+00 : f32
    %47 = vector.broadcast %cst_20 : f32 to vector<2x32xf32>
    %cst_21 = arith.constant 0.000000e+00 : f32
    %48 = vector.broadcast %cst_21 : f32 to vector<2x32xf32>
    %49 = vector.extract_strided_slice %26 {offsets = [0, 0], sizes = [2, 128], strides = [1, 1]} : vector<16x128xf32> to vector<2x128xf32>
    %cst_22 = arith.constant dense<0.000000e+00> : vector<2x128xf32>
    %50 = tpu.matmul %43, %3, %cst_22 {dimension_numbers = #tpu.dot_dimension_numbers<[1], [0], [0], [1], [0, 0, 1, 1], [], []>} : vector<2x32xf32>, vector<32x128xf32>, vector<2x128xf32> -> vector<2x128xf32>
    %51 = arith.addf %49, %50 : vector<2x128xf32>
    %52 = arith.negf %51 : vector<2x128xf32>
    %53 = math.exp %52 : vector<2x128xf32>
    %cst_23 = arith.constant 1.000000e+00 : f32
    %54 = vector.broadcast %cst_23 : f32 to vector<2x128xf32>
    %55 = arith.addf %54, %53 : vector<2x128xf32>
    %56 = arith.divf %54, %55 : vector<2x128xf32>
    %57 = math.tanh %51 : vector<2x128xf32>
    %58 = vector.extract_strided_slice %56 {offsets = [0, 0], sizes = [2, 32], strides = [1, 1]} : vector<2x128xf32> to vector<2x32xf32>
    %59 = vector.extract_strided_slice %56 {offsets = [0, 32], sizes = [2, 32], strides = [1, 1]} : vector<2x128xf32> to vector<2x32xf32>
    %60 = vector.extract_strided_slice %57 {offsets = [0, 64], sizes = [2, 32], strides = [1, 1]} : vector<2x128xf32> to vector<2x32xf32>
    %61 = vector.extract_strided_slice %56 {offsets = [0, 96], sizes = [2, 32], strides = [1, 1]} : vector<2x128xf32> to vector<2x32xf32>
    %62 = arith.mulf %59, %46 : vector<2x32xf32>
    %63 = arith.mulf %58, %60 : vector<2x32xf32>
    %64 = arith.addf %62, %63 : vector<2x32xf32>
    %65 = math.tanh %64 : vector<2x32xf32>
    %66 = arith.mulf %61, %65 : vector<2x32xf32>
    %67 = vector.shape_cast %28 : vector<2x1xi1> to vector<2x1xi1>
    %68 = vector.broadcast %67 : vector<2x1xi1> to vector<2x32xi1>
    %69 = arith.select %68, %66, %43 : vector<2x32xi1>, vector<2x32xf32>
    %70 = vector.shape_cast %28 : vector<2x1xi1> to vector<2x1xi1>
    %71 = vector.broadcast %70 : vector<2x1xi1> to vector<2x32xi1>
    %72 = arith.select %71, %64, %46 : vector<2x32xi1>, vector<2x32xf32>
    %73 = vector.extract_strided_slice %26 {offsets = [2, 0], sizes = [2, 128], strides = [1, 1]} : vector<16x128xf32> to vector<2x128xf32>
    %cst_24 = arith.constant dense<0.000000e+00> : vector<2x128xf32>
    %74 = tpu.matmul %69, %3, %cst_24 {dimension_numbers = #tpu.dot_dimension_numbers<[1], [0], [0], [1], [0, 0, 1, 1], [], []>} : vector<2x32xf32>, vector<32x128xf32>, vector<2x128xf32> -> vector<2x128xf32>
    %75 = arith.addf %73, %74 : vector<2x128xf32>
    %cst_25 = arith.constant dense<0.000000e+00> : vector<2x128xf32>
    %76 = tpu.matmul %69, %4, %cst_25 {dimension_numbers = #tpu.dot_dimension_numbers<[1], [0], [0], [1], [0, 0, 1, 1], [], []>} : vector<2x32xf32>, vector<32x128xf32>, vector<2x128xf32> -> vector<2x128xf32>
    %cst_26 = arith.constant dense<0.000000e+00> : vector<2x128xf32>
    %77 = tpu.matmul %44, %5, %cst_26 {dimension_numbers = #tpu.dot_dimension_numbers<[1], [0], [0], [1], [0, 0, 1, 1], [], []>} : vector<2x32xf32>, vector<32x128xf32>, vector<2x128xf32> -> vector<2x128xf32>
    %78 = arith.addf %76, %77 : vector<2x128xf32>
    %79 = arith.addf %78, %17 : vector<2x128xf32>
    %80 = arith.negf %75 : vector<2x128xf32>
    %81 = math.exp %80 : vector<2x128xf32>
    %cst_27 = arith.constant 1.000000e+00 : f32
    %82 = vector.broadcast %cst_27 : f32 to vector<2x128xf32>
    %83 = arith.addf %82, %81 : vector<2x128xf32>
    %84 = arith.divf %82, %83 : vector<2x128xf32>
    %85 = math.tanh %75 : vector<2x128xf32>
    %86 = vector.extract_strided_slice %84 {offsets = [0, 0], sizes = [2, 32], strides = [1, 1]} : vector<2x128xf32> to vector<2x32xf32>
    %87 = vector.extract_strided_slice %84 {offsets = [0, 32], sizes = [2, 32], strides = [1, 1]} : vector<2x128xf32> to vector<2x32xf32>
    %88 = vector.extract_strided_slice %85 {offsets = [0, 64], sizes = [2, 32], strides = [1, 1]} : vector<2x128xf32> to vector<2x32xf32>
    %89 = vector.extract_strided_slice %84 {offsets = [0, 96], sizes = [2, 32], strides = [1, 1]} : vector<2x128xf32> to vector<2x32xf32>
    %90 = arith.mulf %87, %72 : vector<2x32xf32>
    %91 = arith.mulf %86, %88 : vector<2x32xf32>
    %92 = arith.addf %90, %91 : vector<2x32xf32>
    %93 = math.tanh %92 : vector<2x32xf32>
    %94 = arith.mulf %89, %93 : vector<2x32xf32>
    %95 = vector.shape_cast %30 : vector<2x1xi1> to vector<2x1xi1>
    %96 = vector.broadcast %95 : vector<2x1xi1> to vector<2x32xi1>
    %97 = arith.select %96, %94, %69 : vector<2x32xi1>, vector<2x32xf32>
    %98 = vector.shape_cast %30 : vector<2x1xi1> to vector<2x1xi1>
    %99 = vector.broadcast %98 : vector<2x1xi1> to vector<2x32xi1>
    %100 = arith.select %99, %92, %72 : vector<2x32xi1>, vector<2x32xf32>
    %101 = arith.negf %79 : vector<2x128xf32>
    %102 = math.exp %101 : vector<2x128xf32>
    %cst_28 = arith.constant 1.000000e+00 : f32
    %103 = vector.broadcast %cst_28 : f32 to vector<2x128xf32>
    %104 = arith.addf %103, %102 : vector<2x128xf32>
    %105 = arith.divf %103, %104 : vector<2x128xf32>
    %106 = math.tanh %79 : vector<2x128xf32>
    %107 = vector.extract_strided_slice %105 {offsets = [0, 0], sizes = [2, 32], strides = [1, 1]} : vector<2x128xf32> to vector<2x32xf32>
    %108 = vector.extract_strided_slice %105 {offsets = [0, 32], sizes = [2, 32], strides = [1, 1]} : vector<2x128xf32> to vector<2x32xf32>
    %109 = vector.extract_strided_slice %106 {offsets = [0, 64], sizes = [2, 32], strides = [1, 1]} : vector<2x128xf32> to vector<2x32xf32>
    %110 = vector.extract_strided_slice %105 {offsets = [0, 96], sizes = [2, 32], strides = [1, 1]} : vector<2x128xf32> to vector<2x32xf32>
    %111 = arith.mulf %108, %47 : vector<2x32xf32>
    %112 = arith.mulf %107, %109 : vector<2x32xf32>
    %113 = arith.addf %111, %112 : vector<2x32xf32>
    %114 = math.tanh %113 : vector<2x32xf32>
    %115 = arith.mulf %110, %114 : vector<2x32xf32>
    %116 = vector.shape_cast %28 : vector<2x1xi1> to vector<2x1xi1>
    %117 = vector.broadcast %116 : vector<2x1xi1> to vector<2x32xi1>
    %118 = arith.select %117, %115, %44 : vector<2x32xi1>, vector<2x32xf32>
    %119 = vector.shape_cast %28 : vector<2x1xi1> to vector<2x1xi1>
    %120 = vector.broadcast %119 : vector<2x1xi1> to vector<2x32xi1>
    %121 = arith.select %120, %113, %47 : vector<2x32xi1>, vector<2x32xf32>
    %122 = vector.extract_strided_slice %26 {offsets = [4, 0], sizes = [2, 128], strides = [1, 1]} : vector<16x128xf32> to vector<2x128xf32>
    %cst_29 = arith.constant dense<0.000000e+00> : vector<2x128xf32>
    %123 = tpu.matmul %97, %3, %cst_29 {dimension_numbers = #tpu.dot_dimension_numbers<[1], [0], [0], [1], [0, 0, 1, 1], [], []>} : vector<2x32xf32>, vector<32x128xf32>, vector<2x128xf32> -> vector<2x128xf32>
    %124 = arith.addf %122, %123 : vector<2x128xf32>
    %cst_30 = arith.constant dense<0.000000e+00> : vector<2x128xf32>
    %125 = tpu.matmul %97, %4, %cst_30 {dimension_numbers = #tpu.dot_dimension_numbers<[1], [0], [0], [1], [0, 0, 1, 1], [], []>} : vector<2x32xf32>, vector<32x128xf32>, vector<2x128xf32> -> vector<2x128xf32>
    %cst_31 = arith.constant dense<0.000000e+00> : vector<2x128xf32>
    %126 = tpu.matmul %118, %5, %cst_31 {dimension_numbers = #tpu.dot_dimension_numbers<[1], [0], [0], [1], [0, 0, 1, 1], [], []>} : vector<2x32xf32>, vector<32x128xf32>, vector<2x128xf32> -> vector<2x128xf32>
    %127 = arith.addf %125, %126 : vector<2x128xf32>
    %128 = arith.addf %127, %17 : vector<2x128xf32>
    %cst_32 = arith.constant dense<0.000000e+00> : vector<2x128xf32>
    %129 = tpu.matmul %118, %6, %cst_32 {dimension_numbers = #tpu.dot_dimension_numbers<[1], [0], [0], [1], [0, 0, 1, 1], [], []>} : vector<2x32xf32>, vector<32x128xf32>, vector<2x128xf32> -> vector<2x128xf32>
    %cst_33 = arith.constant dense<0.000000e+00> : vector<2x128xf32>
    %130 = tpu.matmul %45, %7, %cst_33 {dimension_numbers = #tpu.dot_dimension_numbers<[1], [0], [0], [1], [0, 0, 1, 1], [], []>} : vector<2x32xf32>, vector<32x128xf32>, vector<2x128xf32> -> vector<2x128xf32>
    %131 = arith.addf %129, %130 : vector<2x128xf32>
    %132 = arith.addf %131, %20 : vector<2x128xf32>
    %133 = arith.negf %124 : vector<2x128xf32>
    %134 = math.exp %133 : vector<2x128xf32>
    %cst_34 = arith.constant 1.000000e+00 : f32
    %135 = vector.broadcast %cst_34 : f32 to vector<2x128xf32>
    %136 = arith.addf %135, %134 : vector<2x128xf32>
    %137 = arith.divf %135, %136 : vector<2x128xf32>
    %138 = math.tanh %124 : vector<2x128xf32>
    %139 = vector.extract_strided_slice %137 {offsets = [0, 0], sizes = [2, 32], strides = [1, 1]} : vector<2x128xf32> to vector<2x32xf32>
    %140 = vector.extract_strided_slice %137 {offsets = [0, 32], sizes = [2, 32], strides = [1, 1]} : vector<2x128xf32> to vector<2x32xf32>
    %141 = vector.extract_strided_slice %138 {offsets = [0, 64], sizes = [2, 32], strides = [1, 1]} : vector<2x128xf32> to vector<2x32xf32>
    %142 = vector.extract_strided_slice %137 {offsets = [0, 96], sizes = [2, 32], strides = [1, 1]} : vector<2x128xf32> to vector<2x32xf32>
    %143 = arith.mulf %140, %100 : vector<2x32xf32>
    %144 = arith.mulf %139, %141 : vector<2x32xf32>
    %145 = arith.addf %143, %144 : vector<2x32xf32>
    %146 = math.tanh %145 : vector<2x32xf32>
    %147 = arith.mulf %142, %146 : vector<2x32xf32>
    %148 = vector.shape_cast %32 : vector<2x1xi1> to vector<2x1xi1>
    %149 = vector.broadcast %148 : vector<2x1xi1> to vector<2x32xi1>
    %150 = arith.select %149, %147, %97 : vector<2x32xi1>, vector<2x32xf32>
    %151 = vector.shape_cast %32 : vector<2x1xi1> to vector<2x1xi1>
    %152 = vector.broadcast %151 : vector<2x1xi1> to vector<2x32xi1>
    %153 = arith.select %152, %145, %100 : vector<2x32xi1>, vector<2x32xf32>
    %154 = arith.negf %128 : vector<2x128xf32>
    %155 = math.exp %154 : vector<2x128xf32>
    %cst_35 = arith.constant 1.000000e+00 : f32
    %156 = vector.broadcast %cst_35 : f32 to vector<2x128xf32>
    %157 = arith.addf %156, %155 : vector<2x128xf32>
    %158 = arith.divf %156, %157 : vector<2x128xf32>
    %159 = math.tanh %128 : vector<2x128xf32>
    %160 = vector.extract_strided_slice %158 {offsets = [0, 0], sizes = [2, 32], strides = [1, 1]} : vector<2x128xf32> to vector<2x32xf32>
    %161 = vector.extract_strided_slice %158 {offsets = [0, 32], sizes = [2, 32], strides = [1, 1]} : vector<2x128xf32> to vector<2x32xf32>
    %162 = vector.extract_strided_slice %159 {offsets = [0, 64], sizes = [2, 32], strides = [1, 1]} : vector<2x128xf32> to vector<2x32xf32>
    %163 = vector.extract_strided_slice %158 {offsets = [0, 96], sizes = [2, 32], strides = [1, 1]} : vector<2x128xf32> to vector<2x32xf32>
    %164 = arith.mulf %161, %121 : vector<2x32xf32>
    %165 = arith.mulf %160, %162 : vector<2x32xf32>
    %166 = arith.addf %164, %165 : vector<2x32xf32>
    %167 = math.tanh %166 : vector<2x32xf32>
    %168 = arith.mulf %163, %167 : vector<2x32xf32>
    %169 = vector.shape_cast %30 : vector<2x1xi1> to vector<2x1xi1>
    %170 = vector.broadcast %169 : vector<2x1xi1> to vector<2x32xi1>
    %171 = arith.select %170, %168, %118 : vector<2x32xi1>, vector<2x32xf32>
    %172 = vector.shape_cast %30 : vector<2x1xi1> to vector<2x1xi1>
    %173 = vector.broadcast %172 : vector<2x1xi1> to vector<2x32xi1>
    %174 = arith.select %173, %166, %121 : vector<2x32xi1>, vector<2x32xf32>
    %175 = arith.negf %132 : vector<2x128xf32>
    %176 = math.exp %175 : vector<2x128xf32>
    %cst_36 = arith.constant 1.000000e+00 : f32
    %177 = vector.broadcast %cst_36 : f32 to vector<2x128xf32>
    %178 = arith.addf %177, %176 : vector<2x128xf32>
    %179 = arith.divf %177, %178 : vector<2x128xf32>
    %180 = math.tanh %132 : vector<2x128xf32>
    %181 = vector.extract_strided_slice %179 {offsets = [0, 0], sizes = [2, 32], strides = [1, 1]} : vector<2x128xf32> to vector<2x32xf32>
    %182 = vector.extract_strided_slice %179 {offsets = [0, 32], sizes = [2, 32], strides = [1, 1]} : vector<2x128xf32> to vector<2x32xf32>
    %183 = vector.extract_strided_slice %180 {offsets = [0, 64], sizes = [2, 32], strides = [1, 1]} : vector<2x128xf32> to vector<2x32xf32>
    %184 = vector.extract_strided_slice %179 {offsets = [0, 96], sizes = [2, 32], strides = [1, 1]} : vector<2x128xf32> to vector<2x32xf32>
    %185 = arith.mulf %182, %48 : vector<2x32xf32>
    %186 = arith.mulf %181, %183 : vector<2x32xf32>
    %187 = arith.addf %185, %186 : vector<2x32xf32>
    %188 = math.tanh %187 : vector<2x32xf32>
    %189 = arith.mulf %184, %188 : vector<2x32xf32>
    %190 = vector.shape_cast %28 : vector<2x1xi1> to vector<2x1xi1>
    %191 = vector.broadcast %190 : vector<2x1xi1> to vector<2x32xi1>
    %192 = arith.select %191, %189, %45 : vector<2x32xi1>, vector<2x32xf32>
    %193 = vector.shape_cast %28 : vector<2x1xi1> to vector<2x1xi1>
    %194 = vector.broadcast %193 : vector<2x1xi1> to vector<2x32xi1>
    %195 = arith.select %194, %187, %48 : vector<2x32xi1>, vector<2x32xf32>
    %cst_37 = arith.constant 0.000000e+00 : f32
    %196 = vector.shape_cast %28 : vector<2x1xi1> to vector<2x1xi1>
    %197 = vector.broadcast %196 : vector<2x1xi1> to vector<2x32xi1>
    %198 = vector.broadcast %cst_37 : f32 to vector<2x32xf32>
    %199 = arith.select %197, %192, %198 : vector<2x32xi1>, vector<2x32xf32>
    %200 = vector.extract_strided_slice %26 {offsets = [6, 0], sizes = [2, 128], strides = [1, 1]} : vector<16x128xf32> to vector<2x128xf32>
    %cst_38 = arith.constant dense<0.000000e+00> : vector<2x128xf32>
    %201 = tpu.matmul %150, %3, %cst_38 {dimension_numbers = #tpu.dot_dimension_numbers<[1], [0], [0], [1], [0, 0, 1, 1], [], []>} : vector<2x32xf32>, vector<32x128xf32>, vector<2x128xf32> -> vector<2x128xf32>
    %202 = arith.addf %200, %201 : vector<2x128xf32>
    %cst_39 = arith.constant dense<0.000000e+00> : vector<2x128xf32>
    %203 = tpu.matmul %150, %4, %cst_39 {dimension_numbers = #tpu.dot_dimension_numbers<[1], [0], [0], [1], [0, 0, 1, 1], [], []>} : vector<2x32xf32>, vector<32x128xf32>, vector<2x128xf32> -> vector<2x128xf32>
    %cst_40 = arith.constant dense<0.000000e+00> : vector<2x128xf32>
    %204 = tpu.matmul %171, %5, %cst_40 {dimension_numbers = #tpu.dot_dimension_numbers<[1], [0], [0], [1], [0, 0, 1, 1], [], []>} : vector<2x32xf32>, vector<32x128xf32>, vector<2x128xf32> -> vector<2x128xf32>
    %205 = arith.addf %203, %204 : vector<2x128xf32>
    %206 = arith.addf %205, %17 : vector<2x128xf32>
    %cst_41 = arith.constant dense<0.000000e+00> : vector<2x128xf32>
    %207 = tpu.matmul %171, %6, %cst_41 {dimension_numbers = #tpu.dot_dimension_numbers<[1], [0], [0], [1], [0, 0, 1, 1], [], []>} : vector<2x32xf32>, vector<32x128xf32>, vector<2x128xf32> -> vector<2x128xf32>
    %cst_42 = arith.constant dense<0.000000e+00> : vector<2x128xf32>
    %208 = tpu.matmul %192, %7, %cst_42 {dimension_numbers = #tpu.dot_dimension_numbers<[1], [0], [0], [1], [0, 0, 1, 1], [], []>} : vector<2x32xf32>, vector<32x128xf32>, vector<2x128xf32> -> vector<2x128xf32>
    %209 = arith.addf %207, %208 : vector<2x128xf32>
    %210 = arith.addf %209, %20 : vector<2x128xf32>
    %211 = arith.negf %202 : vector<2x128xf32>
    %212 = math.exp %211 : vector<2x128xf32>
    %cst_43 = arith.constant 1.000000e+00 : f32
    %213 = vector.broadcast %cst_43 : f32 to vector<2x128xf32>
    %214 = arith.addf %213, %212 : vector<2x128xf32>
    %215 = arith.divf %213, %214 : vector<2x128xf32>
    %216 = math.tanh %202 : vector<2x128xf32>
    %217 = vector.extract_strided_slice %215 {offsets = [0, 0], sizes = [2, 32], strides = [1, 1]} : vector<2x128xf32> to vector<2x32xf32>
    %218 = vector.extract_strided_slice %215 {offsets = [0, 32], sizes = [2, 32], strides = [1, 1]} : vector<2x128xf32> to vector<2x32xf32>
    %219 = vector.extract_strided_slice %216 {offsets = [0, 64], sizes = [2, 32], strides = [1, 1]} : vector<2x128xf32> to vector<2x32xf32>
    %220 = vector.extract_strided_slice %215 {offsets = [0, 96], sizes = [2, 32], strides = [1, 1]} : vector<2x128xf32> to vector<2x32xf32>
    %221 = arith.mulf %218, %153 : vector<2x32xf32>
    %222 = arith.mulf %217, %219 : vector<2x32xf32>
    %223 = arith.addf %221, %222 : vector<2x32xf32>
    %224 = math.tanh %223 : vector<2x32xf32>
    %225 = arith.mulf %220, %224 : vector<2x32xf32>
    %226 = vector.shape_cast %34 : vector<2x1xi1> to vector<2x1xi1>
    %227 = vector.broadcast %226 : vector<2x1xi1> to vector<2x32xi1>
    %228 = arith.select %227, %225, %150 : vector<2x32xi1>, vector<2x32xf32>
    %229 = vector.shape_cast %34 : vector<2x1xi1> to vector<2x1xi1>
    %230 = vector.broadcast %229 : vector<2x1xi1> to vector<2x32xi1>
    %231 = arith.select %230, %223, %153 : vector<2x32xi1>, vector<2x32xf32>
    %232 = arith.negf %206 : vector<2x128xf32>
    %233 = math.exp %232 : vector<2x128xf32>
    %cst_44 = arith.constant 1.000000e+00 : f32
    %234 = vector.broadcast %cst_44 : f32 to vector<2x128xf32>
    %235 = arith.addf %234, %233 : vector<2x128xf32>
    %236 = arith.divf %234, %235 : vector<2x128xf32>
    %237 = math.tanh %206 : vector<2x128xf32>
    %238 = vector.extract_strided_slice %236 {offsets = [0, 0], sizes = [2, 32], strides = [1, 1]} : vector<2x128xf32> to vector<2x32xf32>
    %239 = vector.extract_strided_slice %236 {offsets = [0, 32], sizes = [2, 32], strides = [1, 1]} : vector<2x128xf32> to vector<2x32xf32>
    %240 = vector.extract_strided_slice %237 {offsets = [0, 64], sizes = [2, 32], strides = [1, 1]} : vector<2x128xf32> to vector<2x32xf32>
    %241 = vector.extract_strided_slice %236 {offsets = [0, 96], sizes = [2, 32], strides = [1, 1]} : vector<2x128xf32> to vector<2x32xf32>
    %242 = arith.mulf %239, %174 : vector<2x32xf32>
    %243 = arith.mulf %238, %240 : vector<2x32xf32>
    %244 = arith.addf %242, %243 : vector<2x32xf32>
    %245 = math.tanh %244 : vector<2x32xf32>
    %246 = arith.mulf %241, %245 : vector<2x32xf32>
    %247 = vector.shape_cast %32 : vector<2x1xi1> to vector<2x1xi1>
    %248 = vector.broadcast %247 : vector<2x1xi1> to vector<2x32xi1>
    %249 = arith.select %248, %246, %171 : vector<2x32xi1>, vector<2x32xf32>
    %250 = vector.shape_cast %32 : vector<2x1xi1> to vector<2x1xi1>
    %251 = vector.broadcast %250 : vector<2x1xi1> to vector<2x32xi1>
    %252 = arith.select %251, %244, %174 : vector<2x32xi1>, vector<2x32xf32>
    %253 = arith.negf %210 : vector<2x128xf32>
    %254 = math.exp %253 : vector<2x128xf32>
    %cst_45 = arith.constant 1.000000e+00 : f32
    %255 = vector.broadcast %cst_45 : f32 to vector<2x128xf32>
    %256 = arith.addf %255, %254 : vector<2x128xf32>
    %257 = arith.divf %255, %256 : vector<2x128xf32>
    %258 = math.tanh %210 : vector<2x128xf32>
    %259 = vector.extract_strided_slice %257 {offsets = [0, 0], sizes = [2, 32], strides = [1, 1]} : vector<2x128xf32> to vector<2x32xf32>
    %260 = vector.extract_strided_slice %257 {offsets = [0, 32], sizes = [2, 32], strides = [1, 1]} : vector<2x128xf32> to vector<2x32xf32>
    %261 = vector.extract_strided_slice %258 {offsets = [0, 64], sizes = [2, 32], strides = [1, 1]} : vector<2x128xf32> to vector<2x32xf32>
    %262 = vector.extract_strided_slice %257 {offsets = [0, 96], sizes = [2, 32], strides = [1, 1]} : vector<2x128xf32> to vector<2x32xf32>
    %263 = arith.mulf %260, %195 : vector<2x32xf32>
    %264 = arith.mulf %259, %261 : vector<2x32xf32>
    %265 = arith.addf %263, %264 : vector<2x32xf32>
    %266 = math.tanh %265 : vector<2x32xf32>
    %267 = arith.mulf %262, %266 : vector<2x32xf32>
    %268 = vector.shape_cast %30 : vector<2x1xi1> to vector<2x1xi1>
    %269 = vector.broadcast %268 : vector<2x1xi1> to vector<2x32xi1>
    %270 = arith.select %269, %267, %192 : vector<2x32xi1>, vector<2x32xf32>
    %271 = vector.shape_cast %30 : vector<2x1xi1> to vector<2x1xi1>
    %272 = vector.broadcast %271 : vector<2x1xi1> to vector<2x32xi1>
    %273 = arith.select %272, %265, %195 : vector<2x32xi1>, vector<2x32xf32>
    %cst_46 = arith.constant 0.000000e+00 : f32
    %274 = vector.shape_cast %30 : vector<2x1xi1> to vector<2x1xi1>
    %275 = vector.broadcast %274 : vector<2x1xi1> to vector<2x32xi1>
    %276 = vector.broadcast %cst_46 : f32 to vector<2x32xf32>
    %277 = arith.select %275, %270, %276 : vector<2x32xi1>, vector<2x32xf32>
    %278 = vector.extract_strided_slice %26 {offsets = [8, 0], sizes = [2, 128], strides = [1, 1]} : vector<16x128xf32> to vector<2x128xf32>
    %cst_47 = arith.constant dense<0.000000e+00> : vector<2x128xf32>
    %279 = tpu.matmul %228, %3, %cst_47 {dimension_numbers = #tpu.dot_dimension_numbers<[1], [0], [0], [1], [0, 0, 1, 1], [], []>} : vector<2x32xf32>, vector<32x128xf32>, vector<2x128xf32> -> vector<2x128xf32>
    %280 = arith.addf %278, %279 : vector<2x128xf32>
    %cst_48 = arith.constant dense<0.000000e+00> : vector<2x128xf32>
    %281 = tpu.matmul %228, %4, %cst_48 {dimension_numbers = #tpu.dot_dimension_numbers<[1], [0], [0], [1], [0, 0, 1, 1], [], []>} : vector<2x32xf32>, vector<32x128xf32>, vector<2x128xf32> -> vector<2x128xf32>
    %cst_49 = arith.constant dense<0.000000e+00> : vector<2x128xf32>
    %282 = tpu.matmul %249, %5, %cst_49 {dimension_numbers = #tpu.dot_dimension_numbers<[1], [0], [0], [1], [0, 0, 1, 1], [], []>} : vector<2x32xf32>, vector<32x128xf32>, vector<2x128xf32> -> vector<2x128xf32>
    %283 = arith.addf %281, %282 : vector<2x128xf32>
    %284 = arith.addf %283, %17 : vector<2x128xf32>
    %cst_50 = arith.constant dense<0.000000e+00> : vector<2x128xf32>
    %285 = tpu.matmul %249, %6, %cst_50 {dimension_numbers = #tpu.dot_dimension_numbers<[1], [0], [0], [1], [0, 0, 1, 1], [], []>} : vector<2x32xf32>, vector<32x128xf32>, vector<2x128xf32> -> vector<2x128xf32>
    %cst_51 = arith.constant dense<0.000000e+00> : vector<2x128xf32>
    %286 = tpu.matmul %270, %7, %cst_51 {dimension_numbers = #tpu.dot_dimension_numbers<[1], [0], [0], [1], [0, 0, 1, 1], [], []>} : vector<2x32xf32>, vector<32x128xf32>, vector<2x128xf32> -> vector<2x128xf32>
    %287 = arith.addf %285, %286 : vector<2x128xf32>
    %288 = arith.addf %287, %20 : vector<2x128xf32>
    %289 = arith.negf %280 : vector<2x128xf32>
    %290 = math.exp %289 : vector<2x128xf32>
    %cst_52 = arith.constant 1.000000e+00 : f32
    %291 = vector.broadcast %cst_52 : f32 to vector<2x128xf32>
    %292 = arith.addf %291, %290 : vector<2x128xf32>
    %293 = arith.divf %291, %292 : vector<2x128xf32>
    %294 = math.tanh %280 : vector<2x128xf32>
    %295 = vector.extract_strided_slice %293 {offsets = [0, 0], sizes = [2, 32], strides = [1, 1]} : vector<2x128xf32> to vector<2x32xf32>
    %296 = vector.extract_strided_slice %293 {offsets = [0, 32], sizes = [2, 32], strides = [1, 1]} : vector<2x128xf32> to vector<2x32xf32>
    %297 = vector.extract_strided_slice %294 {offsets = [0, 64], sizes = [2, 32], strides = [1, 1]} : vector<2x128xf32> to vector<2x32xf32>
    %298 = vector.extract_strided_slice %293 {offsets = [0, 96], sizes = [2, 32], strides = [1, 1]} : vector<2x128xf32> to vector<2x32xf32>
    %299 = arith.mulf %296, %231 : vector<2x32xf32>
    %300 = arith.mulf %295, %297 : vector<2x32xf32>
    %301 = arith.addf %299, %300 : vector<2x32xf32>
    %302 = math.tanh %301 : vector<2x32xf32>
    %303 = arith.mulf %298, %302 : vector<2x32xf32>
    %304 = vector.shape_cast %36 : vector<2x1xi1> to vector<2x1xi1>
    %305 = vector.broadcast %304 : vector<2x1xi1> to vector<2x32xi1>
    %306 = arith.select %305, %303, %228 : vector<2x32xi1>, vector<2x32xf32>
    %307 = vector.shape_cast %36 : vector<2x1xi1> to vector<2x1xi1>
    %308 = vector.broadcast %307 : vector<2x1xi1> to vector<2x32xi1>
    %309 = arith.select %308, %301, %231 : vector<2x32xi1>, vector<2x32xf32>
    %310 = arith.negf %284 : vector<2x128xf32>
    %311 = math.exp %310 : vector<2x128xf32>
    %cst_53 = arith.constant 1.000000e+00 : f32
    %312 = vector.broadcast %cst_53 : f32 to vector<2x128xf32>
    %313 = arith.addf %312, %311 : vector<2x128xf32>
    %314 = arith.divf %312, %313 : vector<2x128xf32>
    %315 = math.tanh %284 : vector<2x128xf32>
    %316 = vector.extract_strided_slice %314 {offsets = [0, 0], sizes = [2, 32], strides = [1, 1]} : vector<2x128xf32> to vector<2x32xf32>
    %317 = vector.extract_strided_slice %314 {offsets = [0, 32], sizes = [2, 32], strides = [1, 1]} : vector<2x128xf32> to vector<2x32xf32>
    %318 = vector.extract_strided_slice %315 {offsets = [0, 64], sizes = [2, 32], strides = [1, 1]} : vector<2x128xf32> to vector<2x32xf32>
    %319 = vector.extract_strided_slice %314 {offsets = [0, 96], sizes = [2, 32], strides = [1, 1]} : vector<2x128xf32> to vector<2x32xf32>
    %320 = arith.mulf %317, %252 : vector<2x32xf32>
    %321 = arith.mulf %316, %318 : vector<2x32xf32>
    %322 = arith.addf %320, %321 : vector<2x32xf32>
    %323 = math.tanh %322 : vector<2x32xf32>
    %324 = arith.mulf %319, %323 : vector<2x32xf32>
    %325 = vector.shape_cast %34 : vector<2x1xi1> to vector<2x1xi1>
    %326 = vector.broadcast %325 : vector<2x1xi1> to vector<2x32xi1>
    %327 = arith.select %326, %324, %249 : vector<2x32xi1>, vector<2x32xf32>
    %328 = vector.shape_cast %34 : vector<2x1xi1> to vector<2x1xi1>
    %329 = vector.broadcast %328 : vector<2x1xi1> to vector<2x32xi1>
    %330 = arith.select %329, %322, %252 : vector<2x32xi1>, vector<2x32xf32>
    %331 = arith.negf %288 : vector<2x128xf32>
    %332 = math.exp %331 : vector<2x128xf32>
    %cst_54 = arith.constant 1.000000e+00 : f32
    %333 = vector.broadcast %cst_54 : f32 to vector<2x128xf32>
    %334 = arith.addf %333, %332 : vector<2x128xf32>
    %335 = arith.divf %333, %334 : vector<2x128xf32>
    %336 = math.tanh %288 : vector<2x128xf32>
    %337 = vector.extract_strided_slice %335 {offsets = [0, 0], sizes = [2, 32], strides = [1, 1]} : vector<2x128xf32> to vector<2x32xf32>
    %338 = vector.extract_strided_slice %335 {offsets = [0, 32], sizes = [2, 32], strides = [1, 1]} : vector<2x128xf32> to vector<2x32xf32>
    %339 = vector.extract_strided_slice %336 {offsets = [0, 64], sizes = [2, 32], strides = [1, 1]} : vector<2x128xf32> to vector<2x32xf32>
    %340 = vector.extract_strided_slice %335 {offsets = [0, 96], sizes = [2, 32], strides = [1, 1]} : vector<2x128xf32> to vector<2x32xf32>
    %341 = arith.mulf %338, %273 : vector<2x32xf32>
    %342 = arith.mulf %337, %339 : vector<2x32xf32>
    %343 = arith.addf %341, %342 : vector<2x32xf32>
    %344 = math.tanh %343 : vector<2x32xf32>
    %345 = arith.mulf %340, %344 : vector<2x32xf32>
    %346 = vector.shape_cast %32 : vector<2x1xi1> to vector<2x1xi1>
    %347 = vector.broadcast %346 : vector<2x1xi1> to vector<2x32xi1>
    %348 = arith.select %347, %345, %270 : vector<2x32xi1>, vector<2x32xf32>
    %349 = vector.shape_cast %32 : vector<2x1xi1> to vector<2x1xi1>
    %350 = vector.broadcast %349 : vector<2x1xi1> to vector<2x32xi1>
    %351 = arith.select %350, %343, %273 : vector<2x32xi1>, vector<2x32xf32>
    %cst_55 = arith.constant 0.000000e+00 : f32
    %352 = vector.shape_cast %32 : vector<2x1xi1> to vector<2x1xi1>
    %353 = vector.broadcast %352 : vector<2x1xi1> to vector<2x32xi1>
    %354 = vector.broadcast %cst_55 : f32 to vector<2x32xf32>
    %355 = arith.select %353, %348, %354 : vector<2x32xi1>, vector<2x32xf32>
    %356 = vector.extract_strided_slice %26 {offsets = [10, 0], sizes = [2, 128], strides = [1, 1]} : vector<16x128xf32> to vector<2x128xf32>
    %cst_56 = arith.constant dense<0.000000e+00> : vector<2x128xf32>
    %357 = tpu.matmul %306, %3, %cst_56 {dimension_numbers = #tpu.dot_dimension_numbers<[1], [0], [0], [1], [0, 0, 1, 1], [], []>} : vector<2x32xf32>, vector<32x128xf32>, vector<2x128xf32> -> vector<2x128xf32>
    %358 = arith.addf %356, %357 : vector<2x128xf32>
    %cst_57 = arith.constant dense<0.000000e+00> : vector<2x128xf32>
    %359 = tpu.matmul %306, %4, %cst_57 {dimension_numbers = #tpu.dot_dimension_numbers<[1], [0], [0], [1], [0, 0, 1, 1], [], []>} : vector<2x32xf32>, vector<32x128xf32>, vector<2x128xf32> -> vector<2x128xf32>
    %cst_58 = arith.constant dense<0.000000e+00> : vector<2x128xf32>
    %360 = tpu.matmul %327, %5, %cst_58 {dimension_numbers = #tpu.dot_dimension_numbers<[1], [0], [0], [1], [0, 0, 1, 1], [], []>} : vector<2x32xf32>, vector<32x128xf32>, vector<2x128xf32> -> vector<2x128xf32>
    %361 = arith.addf %359, %360 : vector<2x128xf32>
    %362 = arith.addf %361, %17 : vector<2x128xf32>
    %cst_59 = arith.constant dense<0.000000e+00> : vector<2x128xf32>
    %363 = tpu.matmul %327, %6, %cst_59 {dimension_numbers = #tpu.dot_dimension_numbers<[1], [0], [0], [1], [0, 0, 1, 1], [], []>} : vector<2x32xf32>, vector<32x128xf32>, vector<2x128xf32> -> vector<2x128xf32>
    %cst_60 = arith.constant dense<0.000000e+00> : vector<2x128xf32>
    %364 = tpu.matmul %348, %7, %cst_60 {dimension_numbers = #tpu.dot_dimension_numbers<[1], [0], [0], [1], [0, 0, 1, 1], [], []>} : vector<2x32xf32>, vector<32x128xf32>, vector<2x128xf32> -> vector<2x128xf32>
    %365 = arith.addf %363, %364 : vector<2x128xf32>
    %366 = arith.addf %365, %20 : vector<2x128xf32>
    %367 = arith.negf %358 : vector<2x128xf32>
    %368 = math.exp %367 : vector<2x128xf32>
    %cst_61 = arith.constant 1.000000e+00 : f32
    %369 = vector.broadcast %cst_61 : f32 to vector<2x128xf32>
    %370 = arith.addf %369, %368 : vector<2x128xf32>
    %371 = arith.divf %369, %370 : vector<2x128xf32>
    %372 = math.tanh %358 : vector<2x128xf32>
    %373 = vector.extract_strided_slice %371 {offsets = [0, 0], sizes = [2, 32], strides = [1, 1]} : vector<2x128xf32> to vector<2x32xf32>
    %374 = vector.extract_strided_slice %371 {offsets = [0, 32], sizes = [2, 32], strides = [1, 1]} : vector<2x128xf32> to vector<2x32xf32>
    %375 = vector.extract_strided_slice %372 {offsets = [0, 64], sizes = [2, 32], strides = [1, 1]} : vector<2x128xf32> to vector<2x32xf32>
    %376 = vector.extract_strided_slice %371 {offsets = [0, 96], sizes = [2, 32], strides = [1, 1]} : vector<2x128xf32> to vector<2x32xf32>
    %377 = arith.mulf %374, %309 : vector<2x32xf32>
    %378 = arith.mulf %373, %375 : vector<2x32xf32>
    %379 = arith.addf %377, %378 : vector<2x32xf32>
    %380 = math.tanh %379 : vector<2x32xf32>
    %381 = arith.mulf %376, %380 : vector<2x32xf32>
    %382 = vector.shape_cast %38 : vector<2x1xi1> to vector<2x1xi1>
    %383 = vector.broadcast %382 : vector<2x1xi1> to vector<2x32xi1>
    %384 = arith.select %383, %381, %306 : vector<2x32xi1>, vector<2x32xf32>
    %385 = vector.shape_cast %38 : vector<2x1xi1> to vector<2x1xi1>
    %386 = vector.broadcast %385 : vector<2x1xi1> to vector<2x32xi1>
    %387 = arith.select %386, %379, %309 : vector<2x32xi1>, vector<2x32xf32>
    %388 = arith.negf %362 : vector<2x128xf32>
    %389 = math.exp %388 : vector<2x128xf32>
    %cst_62 = arith.constant 1.000000e+00 : f32
    %390 = vector.broadcast %cst_62 : f32 to vector<2x128xf32>
    %391 = arith.addf %390, %389 : vector<2x128xf32>
    %392 = arith.divf %390, %391 : vector<2x128xf32>
    %393 = math.tanh %362 : vector<2x128xf32>
    %394 = vector.extract_strided_slice %392 {offsets = [0, 0], sizes = [2, 32], strides = [1, 1]} : vector<2x128xf32> to vector<2x32xf32>
    %395 = vector.extract_strided_slice %392 {offsets = [0, 32], sizes = [2, 32], strides = [1, 1]} : vector<2x128xf32> to vector<2x32xf32>
    %396 = vector.extract_strided_slice %393 {offsets = [0, 64], sizes = [2, 32], strides = [1, 1]} : vector<2x128xf32> to vector<2x32xf32>
    %397 = vector.extract_strided_slice %392 {offsets = [0, 96], sizes = [2, 32], strides = [1, 1]} : vector<2x128xf32> to vector<2x32xf32>
    %398 = arith.mulf %395, %330 : vector<2x32xf32>
    %399 = arith.mulf %394, %396 : vector<2x32xf32>
    %400 = arith.addf %398, %399 : vector<2x32xf32>
    %401 = math.tanh %400 : vector<2x32xf32>
    %402 = arith.mulf %397, %401 : vector<2x32xf32>
    %403 = vector.shape_cast %36 : vector<2x1xi1> to vector<2x1xi1>
    %404 = vector.broadcast %403 : vector<2x1xi1> to vector<2x32xi1>
    %405 = arith.select %404, %402, %327 : vector<2x32xi1>, vector<2x32xf32>
    %406 = vector.shape_cast %36 : vector<2x1xi1> to vector<2x1xi1>
    %407 = vector.broadcast %406 : vector<2x1xi1> to vector<2x32xi1>
    %408 = arith.select %407, %400, %330 : vector<2x32xi1>, vector<2x32xf32>
    %409 = arith.negf %366 : vector<2x128xf32>
    %410 = math.exp %409 : vector<2x128xf32>
    %cst_63 = arith.constant 1.000000e+00 : f32
    %411 = vector.broadcast %cst_63 : f32 to vector<2x128xf32>
    %412 = arith.addf %411, %410 : vector<2x128xf32>
    %413 = arith.divf %411, %412 : vector<2x128xf32>
    %414 = math.tanh %366 : vector<2x128xf32>
    %415 = vector.extract_strided_slice %413 {offsets = [0, 0], sizes = [2, 32], strides = [1, 1]} : vector<2x128xf32> to vector<2x32xf32>
    %416 = vector.extract_strided_slice %413 {offsets = [0, 32], sizes = [2, 32], strides = [1, 1]} : vector<2x128xf32> to vector<2x32xf32>
    %417 = vector.extract_strided_slice %414 {offsets = [0, 64], sizes = [2, 32], strides = [1, 1]} : vector<2x128xf32> to vector<2x32xf32>
    %418 = vector.extract_strided_slice %413 {offsets = [0, 96], sizes = [2, 32], strides = [1, 1]} : vector<2x128xf32> to vector<2x32xf32>
    %419 = arith.mulf %416, %351 : vector<2x32xf32>
    %420 = arith.mulf %415, %417 : vector<2x32xf32>
    %421 = arith.addf %419, %420 : vector<2x32xf32>
    %422 = math.tanh %421 : vector<2x32xf32>
    %423 = arith.mulf %418, %422 : vector<2x32xf32>
    %424 = vector.shape_cast %34 : vector<2x1xi1> to vector<2x1xi1>
    %425 = vector.broadcast %424 : vector<2x1xi1> to vector<2x32xi1>
    %426 = arith.select %425, %423, %348 : vector<2x32xi1>, vector<2x32xf32>
    %427 = vector.shape_cast %34 : vector<2x1xi1> to vector<2x1xi1>
    %428 = vector.broadcast %427 : vector<2x1xi1> to vector<2x32xi1>
    %429 = arith.select %428, %421, %351 : vector<2x32xi1>, vector<2x32xf32>
    %cst_64 = arith.constant 0.000000e+00 : f32
    %430 = vector.shape_cast %34 : vector<2x1xi1> to vector<2x1xi1>
    %431 = vector.broadcast %430 : vector<2x1xi1> to vector<2x32xi1>
    %432 = vector.broadcast %cst_64 : f32 to vector<2x32xf32>
    %433 = arith.select %431, %426, %432 : vector<2x32xi1>, vector<2x32xf32>
    %434 = vector.extract_strided_slice %26 {offsets = [12, 0], sizes = [2, 128], strides = [1, 1]} : vector<16x128xf32> to vector<2x128xf32>
    %cst_65 = arith.constant dense<0.000000e+00> : vector<2x128xf32>
    %435 = tpu.matmul %384, %3, %cst_65 {dimension_numbers = #tpu.dot_dimension_numbers<[1], [0], [0], [1], [0, 0, 1, 1], [], []>} : vector<2x32xf32>, vector<32x128xf32>, vector<2x128xf32> -> vector<2x128xf32>
    %436 = arith.addf %434, %435 : vector<2x128xf32>
    %cst_66 = arith.constant dense<0.000000e+00> : vector<2x128xf32>
    %437 = tpu.matmul %384, %4, %cst_66 {dimension_numbers = #tpu.dot_dimension_numbers<[1], [0], [0], [1], [0, 0, 1, 1], [], []>} : vector<2x32xf32>, vector<32x128xf32>, vector<2x128xf32> -> vector<2x128xf32>
    %cst_67 = arith.constant dense<0.000000e+00> : vector<2x128xf32>
    %438 = tpu.matmul %405, %5, %cst_67 {dimension_numbers = #tpu.dot_dimension_numbers<[1], [0], [0], [1], [0, 0, 1, 1], [], []>} : vector<2x32xf32>, vector<32x128xf32>, vector<2x128xf32> -> vector<2x128xf32>
    %439 = arith.addf %437, %438 : vector<2x128xf32>
    %440 = arith.addf %439, %17 : vector<2x128xf32>
    %cst_68 = arith.constant dense<0.000000e+00> : vector<2x128xf32>
    %441 = tpu.matmul %405, %6, %cst_68 {dimension_numbers = #tpu.dot_dimension_numbers<[1], [0], [0], [1], [0, 0, 1, 1], [], []>} : vector<2x32xf32>, vector<32x128xf32>, vector<2x128xf32> -> vector<2x128xf32>
    %cst_69 = arith.constant dense<0.000000e+00> : vector<2x128xf32>
    %442 = tpu.matmul %426, %7, %cst_69 {dimension_numbers = #tpu.dot_dimension_numbers<[1], [0], [0], [1], [0, 0, 1, 1], [], []>} : vector<2x32xf32>, vector<32x128xf32>, vector<2x128xf32> -> vector<2x128xf32>
    %443 = arith.addf %441, %442 : vector<2x128xf32>
    %444 = arith.addf %443, %20 : vector<2x128xf32>
    %445 = arith.negf %436 : vector<2x128xf32>
    %446 = math.exp %445 : vector<2x128xf32>
    %cst_70 = arith.constant 1.000000e+00 : f32
    %447 = vector.broadcast %cst_70 : f32 to vector<2x128xf32>
    %448 = arith.addf %447, %446 : vector<2x128xf32>
    %449 = arith.divf %447, %448 : vector<2x128xf32>
    %450 = math.tanh %436 : vector<2x128xf32>
    %451 = vector.extract_strided_slice %449 {offsets = [0, 0], sizes = [2, 32], strides = [1, 1]} : vector<2x128xf32> to vector<2x32xf32>
    %452 = vector.extract_strided_slice %449 {offsets = [0, 32], sizes = [2, 32], strides = [1, 1]} : vector<2x128xf32> to vector<2x32xf32>
    %453 = vector.extract_strided_slice %450 {offsets = [0, 64], sizes = [2, 32], strides = [1, 1]} : vector<2x128xf32> to vector<2x32xf32>
    %454 = vector.extract_strided_slice %449 {offsets = [0, 96], sizes = [2, 32], strides = [1, 1]} : vector<2x128xf32> to vector<2x32xf32>
    %455 = arith.mulf %452, %387 : vector<2x32xf32>
    %456 = arith.mulf %451, %453 : vector<2x32xf32>
    %457 = arith.addf %455, %456 : vector<2x32xf32>
    %458 = math.tanh %457 : vector<2x32xf32>
    %459 = arith.mulf %454, %458 : vector<2x32xf32>
    %460 = vector.shape_cast %40 : vector<2x1xi1> to vector<2x1xi1>
    %461 = vector.broadcast %460 : vector<2x1xi1> to vector<2x32xi1>
    %462 = arith.select %461, %459, %384 : vector<2x32xi1>, vector<2x32xf32>
    %463 = vector.shape_cast %40 : vector<2x1xi1> to vector<2x1xi1>
    %464 = vector.broadcast %463 : vector<2x1xi1> to vector<2x32xi1>
    %465 = arith.select %464, %457, %387 : vector<2x32xi1>, vector<2x32xf32>
    %466 = arith.negf %440 : vector<2x128xf32>
    %467 = math.exp %466 : vector<2x128xf32>
    %cst_71 = arith.constant 1.000000e+00 : f32
    %468 = vector.broadcast %cst_71 : f32 to vector<2x128xf32>
    %469 = arith.addf %468, %467 : vector<2x128xf32>
    %470 = arith.divf %468, %469 : vector<2x128xf32>
    %471 = math.tanh %440 : vector<2x128xf32>
    %472 = vector.extract_strided_slice %470 {offsets = [0, 0], sizes = [2, 32], strides = [1, 1]} : vector<2x128xf32> to vector<2x32xf32>
    %473 = vector.extract_strided_slice %470 {offsets = [0, 32], sizes = [2, 32], strides = [1, 1]} : vector<2x128xf32> to vector<2x32xf32>
    %474 = vector.extract_strided_slice %471 {offsets = [0, 64], sizes = [2, 32], strides = [1, 1]} : vector<2x128xf32> to vector<2x32xf32>
    %475 = vector.extract_strided_slice %470 {offsets = [0, 96], sizes = [2, 32], strides = [1, 1]} : vector<2x128xf32> to vector<2x32xf32>
    %476 = arith.mulf %473, %408 : vector<2x32xf32>
    %477 = arith.mulf %472, %474 : vector<2x32xf32>
    %478 = arith.addf %476, %477 : vector<2x32xf32>
    %479 = math.tanh %478 : vector<2x32xf32>
    %480 = arith.mulf %475, %479 : vector<2x32xf32>
    %481 = vector.shape_cast %38 : vector<2x1xi1> to vector<2x1xi1>
    %482 = vector.broadcast %481 : vector<2x1xi1> to vector<2x32xi1>
    %483 = arith.select %482, %480, %405 : vector<2x32xi1>, vector<2x32xf32>
    %484 = vector.shape_cast %38 : vector<2x1xi1> to vector<2x1xi1>
    %485 = vector.broadcast %484 : vector<2x1xi1> to vector<2x32xi1>
    %486 = arith.select %485, %478, %408 : vector<2x32xi1>, vector<2x32xf32>
    %487 = arith.negf %444 : vector<2x128xf32>
    %488 = math.exp %487 : vector<2x128xf32>
    %cst_72 = arith.constant 1.000000e+00 : f32
    %489 = vector.broadcast %cst_72 : f32 to vector<2x128xf32>
    %490 = arith.addf %489, %488 : vector<2x128xf32>
    %491 = arith.divf %489, %490 : vector<2x128xf32>
    %492 = math.tanh %444 : vector<2x128xf32>
    %493 = vector.extract_strided_slice %491 {offsets = [0, 0], sizes = [2, 32], strides = [1, 1]} : vector<2x128xf32> to vector<2x32xf32>
    %494 = vector.extract_strided_slice %491 {offsets = [0, 32], sizes = [2, 32], strides = [1, 1]} : vector<2x128xf32> to vector<2x32xf32>
    %495 = vector.extract_strided_slice %492 {offsets = [0, 64], sizes = [2, 32], strides = [1, 1]} : vector<2x128xf32> to vector<2x32xf32>
    %496 = vector.extract_strided_slice %491 {offsets = [0, 96], sizes = [2, 32], strides = [1, 1]} : vector<2x128xf32> to vector<2x32xf32>
    %497 = arith.mulf %494, %429 : vector<2x32xf32>
    %498 = arith.mulf %493, %495 : vector<2x32xf32>
    %499 = arith.addf %497, %498 : vector<2x32xf32>
    %500 = math.tanh %499 : vector<2x32xf32>
    %501 = arith.mulf %496, %500 : vector<2x32xf32>
    %502 = vector.shape_cast %36 : vector<2x1xi1> to vector<2x1xi1>
    %503 = vector.broadcast %502 : vector<2x1xi1> to vector<2x32xi1>
    %504 = arith.select %503, %501, %426 : vector<2x32xi1>, vector<2x32xf32>
    %505 = vector.shape_cast %36 : vector<2x1xi1> to vector<2x1xi1>
    %506 = vector.broadcast %505 : vector<2x1xi1> to vector<2x32xi1>
    %507 = arith.select %506, %499, %429 : vector<2x32xi1>, vector<2x32xf32>
    %cst_73 = arith.constant 0.000000e+00 : f32
    %508 = vector.shape_cast %36 : vector<2x1xi1> to vector<2x1xi1>
    %509 = vector.broadcast %508 : vector<2x1xi1> to vector<2x32xi1>
    %510 = vector.broadcast %cst_73 : f32 to vector<2x32xf32>
    %511 = arith.select %509, %504, %510 : vector<2x32xi1>, vector<2x32xf32>
    %512 = vector.extract_strided_slice %26 {offsets = [14, 0], sizes = [2, 128], strides = [1, 1]} : vector<16x128xf32> to vector<2x128xf32>
    %cst_74 = arith.constant dense<0.000000e+00> : vector<2x128xf32>
    %513 = tpu.matmul %462, %3, %cst_74 {dimension_numbers = #tpu.dot_dimension_numbers<[1], [0], [0], [1], [0, 0, 1, 1], [], []>} : vector<2x32xf32>, vector<32x128xf32>, vector<2x128xf32> -> vector<2x128xf32>
    %514 = arith.addf %512, %513 : vector<2x128xf32>
    %cst_75 = arith.constant dense<0.000000e+00> : vector<2x128xf32>
    %515 = tpu.matmul %462, %4, %cst_75 {dimension_numbers = #tpu.dot_dimension_numbers<[1], [0], [0], [1], [0, 0, 1, 1], [], []>} : vector<2x32xf32>, vector<32x128xf32>, vector<2x128xf32> -> vector<2x128xf32>
    %cst_76 = arith.constant dense<0.000000e+00> : vector<2x128xf32>
    %516 = tpu.matmul %483, %5, %cst_76 {dimension_numbers = #tpu.dot_dimension_numbers<[1], [0], [0], [1], [0, 0, 1, 1], [], []>} : vector<2x32xf32>, vector<32x128xf32>, vector<2x128xf32> -> vector<2x128xf32>
    %517 = arith.addf %515, %516 : vector<2x128xf32>
    %518 = arith.addf %517, %17 : vector<2x128xf32>
    %cst_77 = arith.constant dense<0.000000e+00> : vector<2x128xf32>
    %519 = tpu.matmul %483, %6, %cst_77 {dimension_numbers = #tpu.dot_dimension_numbers<[1], [0], [0], [1], [0, 0, 1, 1], [], []>} : vector<2x32xf32>, vector<32x128xf32>, vector<2x128xf32> -> vector<2x128xf32>
    %cst_78 = arith.constant dense<0.000000e+00> : vector<2x128xf32>
    %520 = tpu.matmul %504, %7, %cst_78 {dimension_numbers = #tpu.dot_dimension_numbers<[1], [0], [0], [1], [0, 0, 1, 1], [], []>} : vector<2x32xf32>, vector<32x128xf32>, vector<2x128xf32> -> vector<2x128xf32>
    %521 = arith.addf %519, %520 : vector<2x128xf32>
    %522 = arith.addf %521, %20 : vector<2x128xf32>
    %523 = arith.negf %514 : vector<2x128xf32>
    %524 = math.exp %523 : vector<2x128xf32>
    %cst_79 = arith.constant 1.000000e+00 : f32
    %525 = vector.broadcast %cst_79 : f32 to vector<2x128xf32>
    %526 = arith.addf %525, %524 : vector<2x128xf32>
    %527 = arith.divf %525, %526 : vector<2x128xf32>
    %528 = math.tanh %514 : vector<2x128xf32>
    %529 = vector.extract_strided_slice %527 {offsets = [0, 0], sizes = [2, 32], strides = [1, 1]} : vector<2x128xf32> to vector<2x32xf32>
    %530 = vector.extract_strided_slice %527 {offsets = [0, 32], sizes = [2, 32], strides = [1, 1]} : vector<2x128xf32> to vector<2x32xf32>
    %531 = vector.extract_strided_slice %528 {offsets = [0, 64], sizes = [2, 32], strides = [1, 1]} : vector<2x128xf32> to vector<2x32xf32>
    %532 = vector.extract_strided_slice %527 {offsets = [0, 96], sizes = [2, 32], strides = [1, 1]} : vector<2x128xf32> to vector<2x32xf32>
    %533 = arith.mulf %530, %465 : vector<2x32xf32>
    %534 = arith.mulf %529, %531 : vector<2x32xf32>
    %535 = arith.addf %533, %534 : vector<2x32xf32>
    %536 = math.tanh %535 : vector<2x32xf32>
    %537 = arith.mulf %532, %536 : vector<2x32xf32>
    %538 = vector.shape_cast %42 : vector<2x1xi1> to vector<2x1xi1>
    %539 = vector.broadcast %538 : vector<2x1xi1> to vector<2x32xi1>
    %540 = arith.select %539, %537, %462 : vector<2x32xi1>, vector<2x32xf32>
    %541 = arith.negf %518 : vector<2x128xf32>
    %542 = math.exp %541 : vector<2x128xf32>
    %cst_80 = arith.constant 1.000000e+00 : f32
    %543 = vector.broadcast %cst_80 : f32 to vector<2x128xf32>
    %544 = arith.addf %543, %542 : vector<2x128xf32>
    %545 = arith.divf %543, %544 : vector<2x128xf32>
    %546 = math.tanh %518 : vector<2x128xf32>
    %547 = vector.extract_strided_slice %545 {offsets = [0, 0], sizes = [2, 32], strides = [1, 1]} : vector<2x128xf32> to vector<2x32xf32>
    %548 = vector.extract_strided_slice %545 {offsets = [0, 32], sizes = [2, 32], strides = [1, 1]} : vector<2x128xf32> to vector<2x32xf32>
    %549 = vector.extract_strided_slice %546 {offsets = [0, 64], sizes = [2, 32], strides = [1, 1]} : vector<2x128xf32> to vector<2x32xf32>
    %550 = vector.extract_strided_slice %545 {offsets = [0, 96], sizes = [2, 32], strides = [1, 1]} : vector<2x128xf32> to vector<2x32xf32>
    %551 = arith.mulf %548, %486 : vector<2x32xf32>
    %552 = arith.mulf %547, %549 : vector<2x32xf32>
    %553 = arith.addf %551, %552 : vector<2x32xf32>
    %554 = math.tanh %553 : vector<2x32xf32>
    %555 = arith.mulf %550, %554 : vector<2x32xf32>
    %556 = vector.shape_cast %40 : vector<2x1xi1> to vector<2x1xi1>
    %557 = vector.broadcast %556 : vector<2x1xi1> to vector<2x32xi1>
    %558 = arith.select %557, %555, %483 : vector<2x32xi1>, vector<2x32xf32>
    %559 = vector.shape_cast %40 : vector<2x1xi1> to vector<2x1xi1>
    %560 = vector.broadcast %559 : vector<2x1xi1> to vector<2x32xi1>
    %561 = arith.select %560, %553, %486 : vector<2x32xi1>, vector<2x32xf32>
    %562 = arith.negf %522 : vector<2x128xf32>
    %563 = math.exp %562 : vector<2x128xf32>
    %cst_81 = arith.constant 1.000000e+00 : f32
    %564 = vector.broadcast %cst_81 : f32 to vector<2x128xf32>
    %565 = arith.addf %564, %563 : vector<2x128xf32>
    %566 = arith.divf %564, %565 : vector<2x128xf32>
    %567 = math.tanh %522 : vector<2x128xf32>
    %568 = vector.extract_strided_slice %566 {offsets = [0, 0], sizes = [2, 32], strides = [1, 1]} : vector<2x128xf32> to vector<2x32xf32>
    %569 = vector.extract_strided_slice %566 {offsets = [0, 32], sizes = [2, 32], strides = [1, 1]} : vector<2x128xf32> to vector<2x32xf32>
    %570 = vector.extract_strided_slice %567 {offsets = [0, 64], sizes = [2, 32], strides = [1, 1]} : vector<2x128xf32> to vector<2x32xf32>
    %571 = vector.extract_strided_slice %566 {offsets = [0, 96], sizes = [2, 32], strides = [1, 1]} : vector<2x128xf32> to vector<2x32xf32>
    %572 = arith.mulf %569, %507 : vector<2x32xf32>
    %573 = arith.mulf %568, %570 : vector<2x32xf32>
    %574 = arith.addf %572, %573 : vector<2x32xf32>
    %575 = math.tanh %574 : vector<2x32xf32>
    %576 = arith.mulf %571, %575 : vector<2x32xf32>
    %577 = vector.shape_cast %38 : vector<2x1xi1> to vector<2x1xi1>
    %578 = vector.broadcast %577 : vector<2x1xi1> to vector<2x32xi1>
    %579 = arith.select %578, %576, %504 : vector<2x32xi1>, vector<2x32xf32>
    %580 = vector.shape_cast %38 : vector<2x1xi1> to vector<2x1xi1>
    %581 = vector.broadcast %580 : vector<2x1xi1> to vector<2x32xi1>
    %582 = arith.select %581, %574, %507 : vector<2x32xi1>, vector<2x32xf32>
    %cst_82 = arith.constant 0.000000e+00 : f32
    %583 = vector.shape_cast %38 : vector<2x1xi1> to vector<2x1xi1>
    %584 = vector.broadcast %583 : vector<2x1xi1> to vector<2x32xi1>
    %585 = vector.broadcast %cst_82 : f32 to vector<2x32xf32>
    %586 = arith.select %584, %579, %585 : vector<2x32xi1>, vector<2x32xf32>
    %cst_83 = arith.constant dense<0.000000e+00> : vector<2x128xf32>
    %587 = tpu.matmul %540, %4, %cst_83 {dimension_numbers = #tpu.dot_dimension_numbers<[1], [0], [0], [1], [0, 0, 1, 1], [], []>} : vector<2x32xf32>, vector<32x128xf32>, vector<2x128xf32> -> vector<2x128xf32>
    %cst_84 = arith.constant dense<0.000000e+00> : vector<2x128xf32>
    %588 = tpu.matmul %558, %5, %cst_84 {dimension_numbers = #tpu.dot_dimension_numbers<[1], [0], [0], [1], [0, 0, 1, 1], [], []>} : vector<2x32xf32>, vector<32x128xf32>, vector<2x128xf32> -> vector<2x128xf32>
    %589 = arith.addf %587, %588 : vector<2x128xf32>
    %590 = arith.addf %589, %17 : vector<2x128xf32>
    %cst_85 = arith.constant dense<0.000000e+00> : vector<2x128xf32>
    %591 = tpu.matmul %558, %6, %cst_85 {dimension_numbers = #tpu.dot_dimension_numbers<[1], [0], [0], [1], [0, 0, 1, 1], [], []>} : vector<2x32xf32>, vector<32x128xf32>, vector<2x128xf32> -> vector<2x128xf32>
    %cst_86 = arith.constant dense<0.000000e+00> : vector<2x128xf32>
    %592 = tpu.matmul %579, %7, %cst_86 {dimension_numbers = #tpu.dot_dimension_numbers<[1], [0], [0], [1], [0, 0, 1, 1], [], []>} : vector<2x32xf32>, vector<32x128xf32>, vector<2x128xf32> -> vector<2x128xf32>
    %593 = arith.addf %591, %592 : vector<2x128xf32>
    %594 = arith.addf %593, %20 : vector<2x128xf32>
    %595 = arith.negf %590 : vector<2x128xf32>
    %596 = math.exp %595 : vector<2x128xf32>
    %cst_87 = arith.constant 1.000000e+00 : f32
    %597 = vector.broadcast %cst_87 : f32 to vector<2x128xf32>
    %598 = arith.addf %597, %596 : vector<2x128xf32>
    %599 = arith.divf %597, %598 : vector<2x128xf32>
    %600 = math.tanh %590 : vector<2x128xf32>
    %601 = vector.extract_strided_slice %599 {offsets = [0, 0], sizes = [2, 32], strides = [1, 1]} : vector<2x128xf32> to vector<2x32xf32>
    %602 = vector.extract_strided_slice %599 {offsets = [0, 32], sizes = [2, 32], strides = [1, 1]} : vector<2x128xf32> to vector<2x32xf32>
    %603 = vector.extract_strided_slice %600 {offsets = [0, 64], sizes = [2, 32], strides = [1, 1]} : vector<2x128xf32> to vector<2x32xf32>
    %604 = vector.extract_strided_slice %599 {offsets = [0, 96], sizes = [2, 32], strides = [1, 1]} : vector<2x128xf32> to vector<2x32xf32>
    %605 = arith.mulf %602, %561 : vector<2x32xf32>
    %606 = arith.mulf %601, %603 : vector<2x32xf32>
    %607 = arith.addf %605, %606 : vector<2x32xf32>
    %608 = math.tanh %607 : vector<2x32xf32>
    %609 = arith.mulf %604, %608 : vector<2x32xf32>
    %610 = vector.shape_cast %42 : vector<2x1xi1> to vector<2x1xi1>
    %611 = vector.broadcast %610 : vector<2x1xi1> to vector<2x32xi1>
    %612 = arith.select %611, %609, %558 : vector<2x32xi1>, vector<2x32xf32>
    %613 = arith.negf %594 : vector<2x128xf32>
    %614 = math.exp %613 : vector<2x128xf32>
    %cst_88 = arith.constant 1.000000e+00 : f32
    %615 = vector.broadcast %cst_88 : f32 to vector<2x128xf32>
    %616 = arith.addf %615, %614 : vector<2x128xf32>
    %617 = arith.divf %615, %616 : vector<2x128xf32>
    %618 = math.tanh %594 : vector<2x128xf32>
    %619 = vector.extract_strided_slice %617 {offsets = [0, 0], sizes = [2, 32], strides = [1, 1]} : vector<2x128xf32> to vector<2x32xf32>
    %620 = vector.extract_strided_slice %617 {offsets = [0, 32], sizes = [2, 32], strides = [1, 1]} : vector<2x128xf32> to vector<2x32xf32>
    %621 = vector.extract_strided_slice %618 {offsets = [0, 64], sizes = [2, 32], strides = [1, 1]} : vector<2x128xf32> to vector<2x32xf32>
    %622 = vector.extract_strided_slice %617 {offsets = [0, 96], sizes = [2, 32], strides = [1, 1]} : vector<2x128xf32> to vector<2x32xf32>
    %623 = arith.mulf %620, %582 : vector<2x32xf32>
    %624 = arith.mulf %619, %621 : vector<2x32xf32>
    %625 = arith.addf %623, %624 : vector<2x32xf32>
    %626 = math.tanh %625 : vector<2x32xf32>
    %627 = arith.mulf %622, %626 : vector<2x32xf32>
    %628 = vector.shape_cast %40 : vector<2x1xi1> to vector<2x1xi1>
    %629 = vector.broadcast %628 : vector<2x1xi1> to vector<2x32xi1>
    %630 = arith.select %629, %627, %579 : vector<2x32xi1>, vector<2x32xf32>
    %631 = vector.shape_cast %40 : vector<2x1xi1> to vector<2x1xi1>
    %632 = vector.broadcast %631 : vector<2x1xi1> to vector<2x32xi1>
    %633 = arith.select %632, %625, %582 : vector<2x32xi1>, vector<2x32xf32>
    %cst_89 = arith.constant 0.000000e+00 : f32
    %634 = vector.shape_cast %40 : vector<2x1xi1> to vector<2x1xi1>
    %635 = vector.broadcast %634 : vector<2x1xi1> to vector<2x32xi1>
    %636 = vector.broadcast %cst_89 : f32 to vector<2x32xf32>
    %637 = arith.select %635, %630, %636 : vector<2x32xi1>, vector<2x32xf32>
    %cst_90 = arith.constant dense<0.000000e+00> : vector<2x128xf32>
    %638 = tpu.matmul %612, %6, %cst_90 {dimension_numbers = #tpu.dot_dimension_numbers<[1], [0], [0], [1], [0, 0, 1, 1], [], []>} : vector<2x32xf32>, vector<32x128xf32>, vector<2x128xf32> -> vector<2x128xf32>
    %cst_91 = arith.constant dense<0.000000e+00> : vector<2x128xf32>
    %639 = tpu.matmul %630, %7, %cst_91 {dimension_numbers = #tpu.dot_dimension_numbers<[1], [0], [0], [1], [0, 0, 1, 1], [], []>} : vector<2x32xf32>, vector<32x128xf32>, vector<2x128xf32> -> vector<2x128xf32>
    %640 = arith.addf %638, %639 : vector<2x128xf32>
    %641 = arith.addf %640, %20 : vector<2x128xf32>
    %642 = arith.negf %641 : vector<2x128xf32>
    %643 = math.exp %642 : vector<2x128xf32>
    %cst_92 = arith.constant 1.000000e+00 : f32
    %644 = vector.broadcast %cst_92 : f32 to vector<2x128xf32>
    %645 = arith.addf %644, %643 : vector<2x128xf32>
    %646 = arith.divf %644, %645 : vector<2x128xf32>
    %647 = math.tanh %641 : vector<2x128xf32>
    %648 = vector.extract_strided_slice %646 {offsets = [0, 0], sizes = [2, 32], strides = [1, 1]} : vector<2x128xf32> to vector<2x32xf32>
    %649 = vector.extract_strided_slice %646 {offsets = [0, 32], sizes = [2, 32], strides = [1, 1]} : vector<2x128xf32> to vector<2x32xf32>
    %650 = vector.extract_strided_slice %647 {offsets = [0, 64], sizes = [2, 32], strides = [1, 1]} : vector<2x128xf32> to vector<2x32xf32>
    %651 = vector.extract_strided_slice %646 {offsets = [0, 96], sizes = [2, 32], strides = [1, 1]} : vector<2x128xf32> to vector<2x32xf32>
    %652 = arith.mulf %649, %633 : vector<2x32xf32>
    %653 = arith.mulf %648, %650 : vector<2x32xf32>
    %654 = arith.addf %652, %653 : vector<2x32xf32>
    %655 = math.tanh %654 : vector<2x32xf32>
    %656 = arith.mulf %651, %655 : vector<2x32xf32>
    %657 = vector.shape_cast %42 : vector<2x1xi1> to vector<2x1xi1>
    %658 = vector.broadcast %657 : vector<2x1xi1> to vector<2x32xi1>
    %659 = arith.select %658, %656, %630 : vector<2x32xi1>, vector<2x32xf32>
    %cst_93 = arith.constant 0.000000e+00 : f32
    %660 = vector.shape_cast %42 : vector<2x1xi1> to vector<2x1xi1>
    %661 = vector.broadcast %660 : vector<2x1xi1> to vector<2x32xi1>
    %662 = vector.broadcast %cst_93 : f32 to vector<2x32xf32>
    %663 = arith.select %661, %659, %662 : vector<2x32xi1>, vector<2x32xf32>
    %664 = tpu.concatenate %199, %277, %355, %433, %511, %586, %637, %663 in 0 : vector<2x32xf32>, vector<2x32xf32>, vector<2x32xf32>, vector<2x32xf32>, vector<2x32xf32>, vector<2x32xf32>, vector<2x32xf32>, vector<2x32xf32> -> vector<16x32xf32>
    %665 = vector.shape_cast %199 : vector<2x32xf32> to vector<1x2x32xf32>
    %666 = vector.shape_cast %277 : vector<2x32xf32> to vector<1x2x32xf32>
    %667 = vector.shape_cast %355 : vector<2x32xf32> to vector<1x2x32xf32>
    %668 = vector.shape_cast %433 : vector<2x32xf32> to vector<1x2x32xf32>
    %669 = vector.shape_cast %511 : vector<2x32xf32> to vector<1x2x32xf32>
    %670 = vector.shape_cast %586 : vector<2x32xf32> to vector<1x2x32xf32>
    %671 = vector.shape_cast %637 : vector<2x32xf32> to vector<1x2x32xf32>
    %672 = vector.shape_cast %663 : vector<2x32xf32> to vector<1x2x32xf32>
    %673 = tpu.concatenate %665, %666, %667, %668, %669, %670, %671, %672 in 0 : vector<1x2x32xf32>, vector<1x2x32xf32>, vector<1x2x32xf32>, vector<1x2x32xf32>, vector<1x2x32xf32>, vector<1x2x32xf32>, vector<1x2x32xf32>, vector<1x2x32xf32> -> vector<8x2x32xf32>
    %cst_94 = arith.constant dense<0.000000e+00> : vector<16x16xf32>
    %674 = tpu.matmul %664, %9, %cst_94 {dimension_numbers = #tpu.dot_dimension_numbers<[1], [0], [0], [1], [0, 0, 1, 1], [], []>} : vector<16x32xf32>, vector<32x16xf32>, vector<16x16xf32> -> vector<16x16xf32>
    %675 = math.tanh %674 : vector<16x16xf32>
    %cst_95 = arith.constant dense<0.000000e+00> : vector<16x4xf32>
    %676 = tpu.matmul %675, %10, %cst_95 {dimension_numbers = #tpu.dot_dimension_numbers<[1], [0], [0], [1], [0, 0, 1, 1], [], []>} : vector<16x16xf32>, vector<16x4xf32>, vector<16x4xf32> -> vector<16x4xf32>
    %677 = vector.extract_strided_slice %676 {offsets = [0, 0], sizes = [2, 4], strides = [1, 1]} : vector<16x4xf32> to vector<2x4xf32>
    %678 = vector.extract_strided_slice %676 {offsets = [2, 0], sizes = [2, 4], strides = [1, 1]} : vector<16x4xf32> to vector<2x4xf32>
    %679 = vector.extract_strided_slice %676 {offsets = [4, 0], sizes = [2, 4], strides = [1, 1]} : vector<16x4xf32> to vector<2x4xf32>
    %680 = vector.extract_strided_slice %676 {offsets = [6, 0], sizes = [2, 4], strides = [1, 1]} : vector<16x4xf32> to vector<2x4xf32>
    %681 = vector.extract_strided_slice %676 {offsets = [8, 0], sizes = [2, 4], strides = [1, 1]} : vector<16x4xf32> to vector<2x4xf32>
    %682 = vector.extract_strided_slice %676 {offsets = [10, 0], sizes = [2, 4], strides = [1, 1]} : vector<16x4xf32> to vector<2x4xf32>
    %683 = vector.extract_strided_slice %676 {offsets = [12, 0], sizes = [2, 4], strides = [1, 1]} : vector<16x4xf32> to vector<2x4xf32>
    %684 = vector.extract_strided_slice %676 {offsets = [14, 0], sizes = [2, 4], strides = [1, 1]} : vector<16x4xf32> to vector<2x4xf32>
    %685 = vector.shape_cast %677 : vector<2x4xf32> to vector<1x2x4xf32>
    %686 = vector.shape_cast %678 : vector<2x4xf32> to vector<1x2x4xf32>
    %687 = vector.shape_cast %679 : vector<2x4xf32> to vector<1x2x4xf32>
    %688 = vector.shape_cast %680 : vector<2x4xf32> to vector<1x2x4xf32>
    %689 = vector.shape_cast %681 : vector<2x4xf32> to vector<1x2x4xf32>
    %690 = vector.shape_cast %682 : vector<2x4xf32> to vector<1x2x4xf32>
    %691 = vector.shape_cast %683 : vector<2x4xf32> to vector<1x2x4xf32>
    %692 = vector.shape_cast %684 : vector<2x4xf32> to vector<1x2x4xf32>
    %693 = tpu.concatenate %685, %686, %687, %688, %689, %690, %691, %692 in 0 : vector<1x2x4xf32>, vector<1x2x4xf32>, vector<1x2x4xf32>, vector<1x2x4xf32>, vector<1x2x4xf32>, vector<1x2x4xf32>, vector<1x2x4xf32>, vector<1x2x4xf32> -> vector<8x2x4xf32>
    %cst_96 = arith.constant dense<0xFF800000> : vector<2x4xf32>
    %694 = vector.multi_reduction <maximumf>, %693, %cst_96 [0] : vector<8x2x4xf32> to vector<2x4xf32>
    %695 = vector.shape_cast %694 : vector<2x4xf32> to vector<1x2x4xf32>
    %696 = vector.broadcast %695 : vector<1x2x4xf32> to vector<8x2x4xf32>
    %697 = arith.subf %693, %696 : vector<8x2x4xf32>
    %698 = math.exp %697 : vector<8x2x4xf32>
    %cst_97 = arith.constant dense<0.000000e+00> : vector<2x4xf32>
    %699 = vector.multi_reduction <add>, %698, %cst_97 [0] : vector<8x2x4xf32> to vector<2x4xf32>
    %700 = vector.shape_cast %699 : vector<2x4xf32> to vector<1x2x4xf32>
    %701 = tpu.reciprocal %700 {approx = true} : vector<1x2x4xf32> -> vector<1x2x4xf32>
    %702 = vector.broadcast %701 : vector<1x2x4xf32> to vector<8x2x4xf32>
    %703 = arith.mulf %698, %702 : vector<8x2x4xf32>
    %704 = tpu.iota {dimensions = array<i32: 1>} : vector<1x4xi32>
    %cst_98 = arith.constant 0.000000e+00 : f32
    %705 = vector.broadcast %cst_98 : f32 to vector<2x1xf32>
    %706 = vector.extract_strided_slice %703 {offsets = [0, 0, 0], sizes = [8, 2, 1], strides = [1, 1, 1]} : vector<8x2x4xf32> to vector<8x2x1xf32>
    %707 = vector.broadcast %706 : vector<8x2x1xf32> to vector<8x2x32xf32>
    %708 = arith.mulf %707, %673 : vector<8x2x32xf32>
    %cst_99 = arith.constant dense<0.000000e+00> : vector<2x32xf32>
    %709 = vector.multi_reduction <add>, %708, %cst_99 [0] : vector<8x2x32xf32> to vector<2x32xf32>
    %710 = vector.broadcast %706 : vector<8x2x1xf32> to vector<8x2x4xf32>
    %711 = arith.mulf %710, %703 : vector<8x2x4xf32>
    %cst_100 = arith.constant dense<0.000000e+00> : vector<2x4xf32>
    %712 = vector.multi_reduction <add>, %711, %cst_100 [0] : vector<8x2x4xf32> to vector<2x4xf32>
    %c0_i32_101 = arith.constant 0 : i32
    %713 = vector.broadcast %c0_i32_101 : i32 to vector<1x4xi32>
    %714 = arith.cmpi eq, %704, %713 : vector<1x4xi32>
    %715 = arith.extui %714 : vector<1x4xi1> to vector<1x4xi32>
    %716 = arith.sitofp %715 : vector<1x4xi32> to vector<1x4xf32>
    %717 = vector.broadcast %716 : vector<1x4xf32> to vector<2x4xf32>
    %718 = arith.subf %712, %717 : vector<2x4xf32>
    %719 = arith.mulf %718, %718 : vector<2x4xf32>
    %cst_102 = arith.constant dense<0.000000e+00> : vector<2xf32>
    %720 = vector.multi_reduction <add>, %719, %cst_102 [1] : vector<2x4xf32> to vector<2xf32>
    %721 = vector.shape_cast %720 : vector<2xf32> to vector<2x1xf32>
    %722 = arith.addf %705, %721 : vector<2x1xf32>
    %723 = vector.extract_strided_slice %703 {offsets = [0, 0, 1], sizes = [8, 2, 1], strides = [1, 1, 1]} : vector<8x2x4xf32> to vector<8x2x1xf32>
    %724 = vector.broadcast %723 : vector<8x2x1xf32> to vector<8x2x32xf32>
    %725 = arith.mulf %724, %673 : vector<8x2x32xf32>
    %cst_103 = arith.constant dense<0.000000e+00> : vector<2x32xf32>
    %726 = vector.multi_reduction <add>, %725, %cst_103 [0] : vector<8x2x32xf32> to vector<2x32xf32>
    %727 = vector.broadcast %723 : vector<8x2x1xf32> to vector<8x2x4xf32>
    %728 = arith.mulf %727, %703 : vector<8x2x4xf32>
    %cst_104 = arith.constant dense<0.000000e+00> : vector<2x4xf32>
    %729 = vector.multi_reduction <add>, %728, %cst_104 [0] : vector<8x2x4xf32> to vector<2x4xf32>
    %c1_i32_105 = arith.constant 1 : i32
    %730 = vector.broadcast %c1_i32_105 : i32 to vector<1x4xi32>
    %731 = arith.cmpi eq, %704, %730 : vector<1x4xi32>
    %732 = arith.extui %731 : vector<1x4xi1> to vector<1x4xi32>
    %733 = arith.sitofp %732 : vector<1x4xi32> to vector<1x4xf32>
    %734 = vector.broadcast %733 : vector<1x4xf32> to vector<2x4xf32>
    %735 = arith.subf %729, %734 : vector<2x4xf32>
    %736 = arith.mulf %735, %735 : vector<2x4xf32>
    %cst_106 = arith.constant dense<0.000000e+00> : vector<2xf32>
    %737 = vector.multi_reduction <add>, %736, %cst_106 [1] : vector<2x4xf32> to vector<2xf32>
    %738 = vector.shape_cast %737 : vector<2xf32> to vector<2x1xf32>
    %739 = arith.addf %722, %738 : vector<2x1xf32>
    %740 = vector.extract_strided_slice %703 {offsets = [0, 0, 2], sizes = [8, 2, 1], strides = [1, 1, 1]} : vector<8x2x4xf32> to vector<8x2x1xf32>
    %741 = vector.broadcast %740 : vector<8x2x1xf32> to vector<8x2x32xf32>
    %742 = arith.mulf %741, %673 : vector<8x2x32xf32>
    %cst_107 = arith.constant dense<0.000000e+00> : vector<2x32xf32>
    %743 = vector.multi_reduction <add>, %742, %cst_107 [0] : vector<8x2x32xf32> to vector<2x32xf32>
    %744 = vector.broadcast %740 : vector<8x2x1xf32> to vector<8x2x4xf32>
    %745 = arith.mulf %744, %703 : vector<8x2x4xf32>
    %cst_108 = arith.constant dense<0.000000e+00> : vector<2x4xf32>
    %746 = vector.multi_reduction <add>, %745, %cst_108 [0] : vector<8x2x4xf32> to vector<2x4xf32>
    %c2_i32_109 = arith.constant 2 : i32
    %747 = vector.broadcast %c2_i32_109 : i32 to vector<1x4xi32>
    %748 = arith.cmpi eq, %704, %747 : vector<1x4xi32>
    %749 = arith.extui %748 : vector<1x4xi1> to vector<1x4xi32>
    %750 = arith.sitofp %749 : vector<1x4xi32> to vector<1x4xf32>
    %751 = vector.broadcast %750 : vector<1x4xf32> to vector<2x4xf32>
    %752 = arith.subf %746, %751 : vector<2x4xf32>
    %753 = arith.mulf %752, %752 : vector<2x4xf32>
    %cst_110 = arith.constant dense<0.000000e+00> : vector<2xf32>
    %754 = vector.multi_reduction <add>, %753, %cst_110 [1] : vector<2x4xf32> to vector<2xf32>
    %755 = vector.shape_cast %754 : vector<2xf32> to vector<2x1xf32>
    %756 = arith.addf %739, %755 : vector<2x1xf32>
    %757 = vector.extract_strided_slice %703 {offsets = [0, 0, 3], sizes = [8, 2, 1], strides = [1, 1, 1]} : vector<8x2x4xf32> to vector<8x2x1xf32>
    %758 = vector.broadcast %757 : vector<8x2x1xf32> to vector<8x2x32xf32>
    %759 = arith.mulf %758, %673 : vector<8x2x32xf32>
    %cst_111 = arith.constant dense<0.000000e+00> : vector<2x32xf32>
    %760 = vector.multi_reduction <add>, %759, %cst_111 [0] : vector<8x2x32xf32> to vector<2x32xf32>
    %761 = vector.broadcast %757 : vector<8x2x1xf32> to vector<8x2x4xf32>
    %762 = arith.mulf %761, %703 : vector<8x2x4xf32>
    %cst_112 = arith.constant dense<0.000000e+00> : vector<2x4xf32>
    %763 = vector.multi_reduction <add>, %762, %cst_112 [0] : vector<8x2x4xf32> to vector<2x4xf32>
    %c3_i32_113 = arith.constant 3 : i32
    %764 = vector.broadcast %c3_i32_113 : i32 to vector<1x4xi32>
    %765 = arith.cmpi eq, %704, %764 : vector<1x4xi32>
    %766 = arith.extui %765 : vector<1x4xi1> to vector<1x4xi32>
    %767 = arith.sitofp %766 : vector<1x4xi32> to vector<1x4xf32>
    %768 = vector.broadcast %767 : vector<1x4xf32> to vector<2x4xf32>
    %769 = arith.subf %763, %768 : vector<2x4xf32>
    %770 = arith.mulf %769, %769 : vector<2x4xf32>
    %cst_114 = arith.constant dense<0.000000e+00> : vector<2xf32>
    %771 = vector.multi_reduction <add>, %770, %cst_114 [1] : vector<2x4xf32> to vector<2xf32>
    %772 = vector.shape_cast %771 : vector<2xf32> to vector<2x1xf32>
    %773 = arith.addf %756, %772 : vector<2x1xf32>
    %cst_115 = arith.constant 1.000000e-10 : f32
    %774 = vector.broadcast %cst_115 : f32 to vector<2x1xf32>
    %775 = arith.addf %773, %774 : vector<2x1xf32>
    %776 = math.sqrt %775 : vector<2x1xf32>
    %cst_116 = arith.constant dense<0.000000e+00> : vector<1xf32>
    %777 = vector.multi_reduction <add>, %776, %cst_116 [0] : vector<2x1xf32> to vector<1xf32>
    %778 = vector.shape_cast %777 : vector<1xf32> to vector<1x1xf32>
    %cst_117 = arith.constant 5.000000e-01 : f32
    %779 = vector.broadcast %cst_117 : f32 to vector<1x1xf32>
    %780 = arith.mulf %778, %779 : vector<1x1xf32>
    %781 = tpu.concatenate %709, %726, %743, %760 in 1 : vector<2x32xf32>, vector<2x32xf32>, vector<2x32xf32>, vector<2x32xf32> -> vector<2x128xf32>
    %cst_118 = arith.constant dense<0.000000e+00> : vector<2x64xf32>
    %782 = tpu.matmul %781, %11, %cst_118 {dimension_numbers = #tpu.dot_dimension_numbers<[1], [0], [0], [1], [0, 0, 1, 1], [], []>} : vector<2x128xf32>, vector<128x64xf32>, vector<2x64xf32> -> vector<2x64xf32>
    %783 = vector.broadcast %12 : vector<1x64xf32> to vector<2x64xf32>
    %784 = arith.addf %782, %783 : vector<2x64xf32>
    %cst_119 = arith.constant 0.000000e+00 : f32
    %785 = vector.broadcast %cst_119 : f32 to vector<2x64xf32>
    %786 = arith.maximumf %784, %785 : vector<2x64xf32>
    %cst_120 = arith.constant dense<0.000000e+00> : vector<2x4xf32>
    %787 = tpu.matmul %786, %13, %cst_120 {dimension_numbers = #tpu.dot_dimension_numbers<[1], [0], [0], [1], [0, 0, 1, 1], [], []>} : vector<2x64xf32>, vector<64x4xf32>, vector<2x4xf32> -> vector<2x4xf32>
    %788 = vector.broadcast %14 : vector<1x4xf32> to vector<2x4xf32>
    %789 = arith.addf %787, %788 : vector<2x4xf32>
    %c0_121 = arith.constant 0 : index
    %c0_122 = arith.constant 0 : index
    %790 = vector.load %arg2[%c0_121, %c0_122] : memref<2x4xf32, #tpu.memory_space<vmem>>, vector<2x4xf32>
    tpu.vector_store %arg2[%c0_121, %c0_122], %789 {strides = array<i32>} : memref<2x4xf32, #tpu.memory_space<vmem>>, vector<2x4xf32>,
    %c0_123 = arith.constant 0 : index
    %c0_124 = arith.constant 0 : index
    %791 = vector.load %arg3[%c0_123, %c0_124] : memref<1x1xf32, #tpu.memory_space<vmem>>, vector<1x1xf32>
    tpu.vector_store %arg3[%c0_123, %c0_124], %780 {strides = array<i32>} : memref<1x1xf32, #tpu.memory_space<vmem>>, vector<1x1xf32>,
    return
  }
}

</mosaic_0001>

<llo_original>
// kernel: forward.1
$region0: #{forward.1}
  #allocation0 [shape = 'u32[]', space=smem, size = 0x4, offset = 0x4, fixed_abs, tag = 'smem constant byte address 0x4 - core index']
  #allocation1 [shape = 'u32[72,128]{1,0:T(1,128)}', space=vmem, size = 0x9000, scoped, tag = 'internal scratch']
  %s0 = inlined_call_operand.vmem [shape: s32[18,1], index: 0, kind: input, shape index: {}]
  %s1 = inlined_call_operand.hbm [shape: f32[480,128], index: 1, kind: input, shape index: {}]
  %s2 = inlined_call_operand.hbm [shape: f32[2,4], index: 2, kind: output, shape index: {0}]
  %s3 = inlined_call_operand.hbm [shape: f32[1,1], index: 3, kind: output, shape index: {1}]
  %4 = xla_tuple %s2, %s3
  %s5 = sld [smem:[#allocation0]]
  $region30: #{forward.1} parent=0
    _
  %s7 = ssub.s32 1, %s5
  %s8 = scalar_select 0, %s7, %s5
  $region1: #{forward.1} parent=0
    #allocation2 [shape = 'u8[245760]{0}', space=vmem, size = 0x3c000, scoped, tag = 'input window, operand 1, single buffered']
    #allocation3 [shape = 's32[1]{0}', space=sflag, size = 0x4, scoped, tag = 'scoped memory for forward.1']
    #allocation4 [shape = 's32[1]{0}', space=sflag, size = 0x4, scoped, tag = 'scoped memory for forward.1']
    #allocation5 [shape = 'u8[1024]{0}', space=vmem, size = 0x400, scoped, tag = 'output window, operand 0, single buffered']
    #allocation6 [shape = 'u8[512]{0}', space=vmem, size = 0x400, scoped, tag = 'output window, operand 1, single buffered']
    #allocation7 [shape = 's32[1]{0}', space=sflag, size = 0x4, scoped, tag = 'scoped memory for forward.1']
    %9 = vsyncpa [#allocation3], 0
    %10 = vsyncpa [#allocation4], 0
    %11 = vsyncpa [#allocation7], 0
    // Predicated region
    $region2: #{forward.1} parent=1 // pred_check
      _
    $region3: #{forward.1} parent=1 // pred_check_branch
      %13 = sbr.rel (0) target = $region5
    $region4: #{forward.1} parent=1 // pred_region
      _
    $region5: #{forward.1} parent=1 // pred_fallthru
      _
    // Predicated region
    $region6: #{forward.1} parent=1 // pred_check
      _
    $region7: #{forward.1} parent=1 // pred_check_branch
      %15 = sbr.rel (0) target = $region9
    $region8: #{forward.1} parent=1 // pred_region
      %17 = vsyncadd [#allocation3], 0
      %s18 = sshll.u32 %s1, 4
      %s19 = int_to_ptr.hbm [resolvable:$true] %s18
      %s20 = sshll.u32 [#allocation2], 4
      %s21 = int_to_ptr.vmem [resolvable:$true] %s20
      %26 = dma.hbm_to_vmem [thread:$0]  %s19, 7680, %s21, [#allocation3], 128, 128, 8
    $region9: #{forward.1} parent=1 // pred_fallthru
      _
    // Predicated region
    $region10: #{forward.1} parent=1 // pred_check
      _
    $region11: #{forward.1} parent=1 // pred_check_branch
      %28 = sbr.rel (0) target = $region13
    $region12: #{forward.1} parent=1 // pred_region
      %30 = dma.done [#allocation3], 7680
    $region13: #{forward.1} parent=1 // pred_fallthru
      _
    %v31 = vld [vmem:[%s0] sm:$0xff]
    %v32 = vld [vmem:[%s0 + $0x8] sm:$0xff]
    %v33 = vld [vmem:[%s0 + $0x10] sm:$0x3]
    %v34 = vld [vmem:[#allocation2] sm:$0xff]
    %v35 = vld [vmem:[#allocation2 + $0x8] sm:$0xff]
    %v36 = vld [vmem:[#allocation2 + $0x10] sm:$0xff]
    %v37 = vld [vmem:[#allocation2 + $0x18] sm:$0xff]
    %v38 = vld [vmem:[#allocation2 + $0x20] sm:$0xff]
    %v39 = vld [vmem:[#allocation2 + $0x28] sm:$0xff]
    %v40 = vld [vmem:[#allocation2 + $0x30] sm:$0xff]
    %v41 = vld [vmem:[#allocation2 + $0x38] sm:$0xff]
    %v42 = vld [vmem:[#allocation2 + $0x40] sm:$0xff]
    %v43 = vld [vmem:[#allocation2 + $0x48] sm:$0xff]
    %v44 = vld [vmem:[#allocation2 + $0x50] sm:$0xff]
    %v45 = vld [vmem:[#allocation2 + $0x58] sm:$0xff]
    %v46 = vld [vmem:[#allocation2 + $0x60] sm:$0xff]
    %v47 = vld [vmem:[#allocation2 + $0x68] sm:$0xff]
    %v48 = vld [vmem:[#allocation2 + $0x70] sm:$0xff]
    %v49 = vld [vmem:[#allocation2 + $0x78] sm:$0xff]
    %v50 = vld [vmem:[#allocation2 + $0x80] sm:$0xff]
    %v51 = vld [vmem:[#allocation2 + $0x88] sm:$0xff]
    %v52 = vld [vmem:[#allocation2 + $0x90] sm:$0xff]
    %v53 = vld [vmem:[#allocation2 + $0x98] sm:$0xff]
    %v54 = vld [vmem:[#allocation2 + $0xa0] sm:$0xff]
    %v55 = vld [vmem:[#allocation2 + $0xa8] sm:$0xff]
    %v56 = vld [vmem:[#allocation2 + $0xb0] sm:$0xff]
    %v57 = vld [vmem:[#allocation2 + $0xb8] sm:$0xff]
    %v58 = vld [vmem:[#allocation2 + $0xc0] sm:$0xff]
    %v59 = vld [vmem:[#allocation2 + $0xc8] sm:$0xff]
    %v60 = vld [vmem:[#allocation2 + $0xd0] sm:$0xff]
    %v61 = vld [vmem:[#allocation2 + $0xd8] sm:$0x3]
    %v62 = vld [vmem:[#allocation2 + $0xe0] sm:$0xff]
    %v63 = vld [vmem:[#allocation2 + $0xe8] sm:$0xff]
    %v64 = vld [vmem:[#allocation2 + $0xf0] sm:$0xff]
    %v65 = vld [vmem:[#allocation2 + $0xf8] sm:$0xff]
    %v66 = vld [vmem:[#allocation2 + $0x100] sm:$0xff]
    %v67 = vld [vmem:[#allocation2 + $0x108] sm:$0xff]
    %v68 = vld [vmem:[#allocation2 + $0x110] sm:$0xff]
    %v69 = vld [vmem:[#allocation2 + $0x118] sm:$0xff]
    %v70 = vld [vmem:[#allocation2 + $0x120] sm:$0xff]
    %v71 = vld [vmem:[#allocation2 + $0x128] sm:$0xff]
    %v72 = vld [vmem:[#allocation2 + $0x130] sm:$0xff]
    %v73 = vld [vmem:[#allocation2 + $0x138] sm:$0xff]
    %v74 = vld [vmem:[#allocation2 + $0x140] sm:$0xff]
    %v75 = vld [vmem:[#allocation2 + $0x148] sm:$0xff]
    %v76 = vld [vmem:[#allocation2 + $0x150] sm:$0xff]
    %v77 = vld [vmem:[#allocation2 + $0x158] sm:$0xff]
    %v78 = vld [vmem:[#allocation2 + $0x160] sm:$0xff]
    %v79 = vld [vmem:[#allocation2 + $0x168] sm:$0xff]
    %v80 = vld [vmem:[#allocation2 + $0x170] sm:$0xff]
    %v81 = vld [vmem:[#allocation2 + $0x178] sm:$0xff]
    %v82 = vld [vmem:[#allocation2 + $0x180] sm:$0xff]
    %v83 = vld [vmem:[#allocation2 + $0x188] sm:$0xff]
    %v84 = vld [vmem:[#allocation2 + $0x190] sm:$0x1]
    %v85 = vld [vmem:[#allocation2 + $0x198] sm:$0xff]
    %v86 = vld [vmem:[#allocation2 + $0x1a0] sm:$0xff]
    %v87 = vld [vmem:[#allocation2 + $0x1a8] sm:$0xff]
    %v88 = vld [vmem:[#allocation2 + $0x1b0] sm:$0xff]
    %v89 = vld [vmem:[#allocation2 + $0x1b8] sm:$0xff]
    %v90 = vld [vmem:[#allocation2 + $0x1c0] sm:$0xff]
    %v91 = vld [vmem:[#allocation2 + $0x1c8] sm:$0xff]
    %v92 = vld [vmem:[#allocation2 + $0x1d0] sm:$0xff]
    %v93 = vld [vmem:[#allocation2 + $0x1d8] sm:$0x1]
    %v94 = vperm.slane %v61, 0
    %v95 = vperm.slane %v61, 1
    %v96 = vlaneseq
    %v97 = vand.u32 %v96, 127
    %98 = vset.pattern.permute.xlu0 0
    %99 = vperm.xlu0 %98, %v31
    %v100 = vpop.permute.xlu0 %99
    %101 = vset.pattern.permute.xlu0 0
    %102 = vperm.xlu0 %101, %v32
    %v103 = vpop.permute.xlu0 %102
    %vm104 = vcmp.eq.s32.totalorder %v100, %v97
    %vm105 = vcmp.eq.s32.totalorder %v103, %v97
    %v106 = vsel %vm104, 1, 0
    %v107 = vsel %vm105, 1, 0
    %v108 = vcvt.s32.f32 %v106
    %v109 = vcvt.s32.f32 %v107
    %vm110 = vcmask 457728
    %v112 = vsel %vm110, %v108, 0
    %v115 = vsel %vm110, %v109, 0
    %117 = vmatpush.msra.mxu0 0.0
    %118 = vmatpush.msra.mxu0 0.0
    %119 = vmatpush.msra.mxu0 0.0
    %120 = vmatpush.msra.mxu0 0.0
    %121 = vmatpush.msra.mxu0 0.0
    %122 = vmatpush.msra.mxu0 0.0
    %123 = vmatpush.msra.mxu0 0.0
    %124 = vmatpush.msra.mxu0 0.0
    %125 = vmatpush.msra.mxu0 0.0
    %126 = vmatpush.msra.mxu0 %v40
    %127 = vmatpush.msra.mxu0 %v39
    %128 = vmatpush.msra.mxu0 %v38
    %129 = vmatpush.msra.mxu0 %v37
    %130 = vmatpush.msra.mxu0 %v36
    %131 = vmatpush.msra.mxu0 %v35
    %132 = vmatpush.msra.mxu0 %v34
    %133 = vmatmul.f32.gmra.mxu0 %v112
    %v134 = vpop.f32.mrf.mxu0
    %v135 = vadd.f32 0.0, %v134
    %136 = vmatmul.f32.gmra.mxu0 %v115
    %v137 = vpop.f32.mrf.mxu0
    %v138 = vadd.f32 0.0, %v137
    %139 = vdwg.mxu0
    %vm140 = vcmp.gt.s32.totalorder %v33, 0
    %vm141 = vcmp.gt.s32.totalorder %v33, 1
    %vm142 = vcmp.gt.s32.totalorder %v33, 2
    %vm143 = vcmp.gt.s32.totalorder %v33, 3
    %vm144 = vcmp.gt.s32.totalorder %v33, 4
    %vm145 = vcmp.gt.s32.totalorder %v33, 5
    %vm146 = vcmp.gt.s32.totalorder %v33, 6
    %vm147 = vcmp.gt.s32.totalorder %v33, 7
    %vm148 = vcmask 261120
    %v150 = vsel %vm148, 0.0, 0
    %152 = vmatpush.msra.mxu0 0.0
    %153 = vmatpush.msra.mxu0 0.0
    %154 = vmatpush.msra.mxu0 0.0
    %155 = vmatpush.msra.mxu0 0.0
    %156 = vmatpush.msra.mxu0 0.0
    %157 = vmatpush.msra.mxu0 0.0
    %158 = vmatpush.msra.mxu0 0.0
    %159 = vmatpush.msra.mxu0 0.0
    %160 = vmatpush.msra.mxu0 0.0
    %161 = vmatpush.msra.mxu0 0.0
    %162 = vmatpush.msra.mxu0 0.0
    %163 = vmatpush.msra.mxu0 0.0
    %164 = vmatpush.msra.mxu0 %v44
    %165 = vmatpush.msra.mxu0 %v43
    %166 = vmatpush.msra.mxu0 %v42
    %167 = vmatpush.msra.mxu0 %v41
    %168 = vmatmul.f32.gmra.mxu0 %v150
    %v169 = vpop.f32.mrf.mxu0
    %v170 = vadd.f32 0.0, %v169
    %171 = vdwg.mxu0
    %v172 = vadd.f32 %v135, %v170
    %v173 = vxor.u32 %v172, 2147483648
    %v174 = vmul.f32 %v173, 1.442695
    %v175 = vpow.pop %v174
    %v176 = vadd.f32 %v175, 1.0
    %v177 = vrcp.pop %v176
    %v178 = vmul.f32 %v176, %v177
    %v179 = vsub.f32 1.0, %v178
    %v180 = vmul.f32 %v177, %v179
    %v181 = vadd.f32 %v177, %v180
    %vm182 = vweird.f32 %v176
    %vm183 = vweird.f32 %v177
    %vm184 = vmor %vm182, %vm183
    %v185 = vsel %vm184, %v177, %v181
    %v186 = vand.u32 2147483647, %v176
    %vm187 = vcmp.eq.f32.partialorder %v186, 8.507059e+37
    %v188 = vand.u32 %v176, 2147483648
    %v189 = vor.u32 1.1754944e-38, %v188
    %v190 = vsel %vm187, %v189, %v185
    %v191 = vmul.f32 1.0, %v190
    %v192 = vtanh.pop %v172
    %v193 = vmul.f32 %v191, 0.0
    %195 = vrot.lane.b32.xlu0 %v192, 64
    %v196 = vpop.permute.xlu0 %195
    %v198 = vmul.f32 %v191, %v196
    %200 = vrot.lane.b32.xlu0 %v198, 32
    %v201 = vpop.permute.xlu0 %200
    %v203 = vadd.f32 %v193, %v201
    %v204 = vtanh.pop %v203
    %206 = vrot.lane.b32.xlu0 %v204, 64
    %v207 = vpop.permute.xlu0 %206
    %v209 = vmul.f32 %v191, %v207
    %v210 = vsel %vm140, 1, 0
    %211 = vset.pattern.permute.xlu0 0
    %212 = vperm.xlu0 %211, %v210
    %v213 = vpop.permute.xlu0 %212
    %vm214 = vcmp.eq.s32.totalorder %v213, 1
    %v215 = vsel %vm214, %v209, 0.0
    %v216 = vsel %vm214, %v203, 0.0
    %218 = vrot.lane.b32.xlu0 %v215, 32
    %v219 = vpop.permute.xlu0 %218
    %v220 = vsel %vm148, %v219, 0
    %222 = vmatpush.msra.mxu0 0.0
    %223 = vmatpush.msra.mxu0 0.0
    %224 = vmatpush.msra.mxu0 0.0
    %225 = vmatpush.msra.mxu0 0.0
    %226 = vmatpush.msra.mxu0 0.0
    %227 = vmatpush.msra.mxu0 0.0
    %228 = vmatpush.msra.mxu0 0.0
    %229 = vmatpush.msra.mxu0 0.0
    %230 = vmatpush.msra.mxu0 0.0
    %231 = vmatpush.msra.mxu0 0.0
    %232 = vmatpush.msra.mxu0 0.0
    %233 = vmatpush.msra.mxu0 0.0
    %234 = vmatpush.msra.mxu0 %v44
    %235 = vmatpush.msra.mxu0 %v43
    %236 = vmatpush.msra.mxu0 %v42
    %237 = vmatpush.msra.mxu0 %v41
    %238 = vmatmul.f32.gmra.mxu0 %v220
    %v239 = vpop.f32.mrf.mxu0
    %v240 = vadd.f32 0.0, %v239
    %241 = vdwg.mxu0
    %v243 = vrot.slane %v240, 6
    %v245 = vadd.f32 %v135, %v243
    %246 = vmatpush.msra.mxu0 0.0
    %247 = vmatpush.msra.mxu0 0.0
    %248 = vmatpush.msra.mxu0 0.0
    %249 = vmatpush.msra.mxu0 0.0
    %250 = vmatpush.msra.mxu0 0.0
    %251 = vmatpush.msra.mxu0 0.0
    %252 = vmatpush.msra.mxu0 0.0
    %253 = vmatpush.msra.mxu0 0.0
    %254 = vmatpush.msra.mxu0 0.0
    %255 = vmatpush.msra.mxu0 0.0
    %256 = vmatpush.msra.mxu0 0.0
    %257 = vmatpush.msra.mxu0 0.0
    %258 = vmatpush.msra.mxu0 %v52
    %259 = vmatpush.msra.mxu0 %v51
    %260 = vmatpush.msra.mxu0 %v50
    %261 = vmatpush.msra.mxu0 %v49
    %262 = vmatmul.f32.gmra.mxu0 %v150
    %v263 = vpop.f32.mrf.mxu0
    %v264 = vadd.f32 0.0, %v263
    %265 = vdwg.mxu0
    %266 = vmatpush.msra.mxu0 0.0
    %267 = vmatpush.msra.mxu0 0.0
    %268 = vmatpush.msra.mxu0 0.0
    %269 = vmatpush.msra.mxu0 0.0
    %270 = vmatpush.msra.mxu0 0.0
    %271 = vmatpush.msra.mxu0 0.0
    %272 = vmatpush.msra.mxu0 0.0
    %273 = vmatpush.msra.mxu0 0.0
    %274 = vmatpush.msra.mxu0 0.0
    %275 = vmatpush.msra.mxu0 0.0
    %276 = vmatpush.msra.mxu0 0.0
    %277 = vmatpush.msra.mxu0 0.0
    %278 = vmatpush.msra.mxu0 %v48
    %279 = vmatpush.msra.mxu0 %v47
    %280 = vmatpush.msra.mxu0 %v46
    %281 = vmatpush.msra.mxu0 %v45
    %282 = vmatmul.f32.gmra.mxu0 %v220
    %v283 = vpop.f32.mrf.mxu0
    %v284 = vadd.f32 %v264, %v283
    %285 = vdwg.mxu0
    %v286 = vadd.f32 %v284, %v94
    %v287 = vxor.u32 %v245, 2147483648
    %v288 = vmul.f32 %v287, 1.442695
    %v289 = vpow.pop %v288
    %v290 = vadd.f32 %v289, 1.0
    %v291 = vrcp.pop %v290
    %v292 = vmul.f32 %v290, %v291
    %v293 = vsub.f32 1.0, %v292
    %v294 = vmul.f32 %v291, %v293
    %v295 = vadd.f32 %v291, %v294
    %vm296 = vweird.f32 %v290
    %vm297 = vweird.f32 %v291
    %vm298 = vmor %vm296, %vm297
    %v299 = vsel %vm298, %v291, %v295
    %v300 = vand.u32 2147483647, %v290
    %vm301 = vcmp.eq.f32.partialorder %v300, 8.507059e+37
    %v302 = vand.u32 %v290, 2147483648
    %v303 = vor.u32 1.1754944e-38, %v302
    %v304 = vsel %vm301, %v303, %v299
    %v305 = vmul.f32 1.0, %v304
    %v306 = vtanh.pop %v245
    %v308 = vrot.slane %v216, 6
    %v310 = vmul.f32 %v305, %v308
    %312 = vrot.lane.b32.xlu0 %v306, 64
    %v313 = vpop.permute.xlu0 %312
    %v315 = vmul.f32 %v305, %v313
    %317 = vrot.lane.b32.xlu0 %v315, 32
    %v318 = vpop.permute.xlu0 %317
    %v320 = vadd.f32 %v310, %v318
    %v321 = vtanh.pop %v320
    %323 = vrot.lane.b32.xlu0 %v321, 64
    %v324 = vpop.permute.xlu0 %323
    %v326 = vmul.f32 %v305, %v324
    %v327 = vsel %vm141, 1, 0
    %328 = vset.pattern.permute.xlu0 0
    %329 = vperm.xlu0 %328, %v327
    %v330 = vpop.permute.xlu0 %329
    %vm331 = vcmp.eq.s32.totalorder %v330, 1
    %v333 = vrot.slane %v326, 2
    %334 = vrot.lane.b32.xlu0 %v333, 32
    %v335 = vpop.permute.xlu0 %334
    %v338 = vsel %vm331, %v335, %v219
    %v340 = vrot.slane %v320, 2
    %341 = vrot.lane.b32.xlu0 %v340, 96
    %v342 = vpop.permute.xlu0 %341
    %344 = vrot.lane.b32.xlu0 %v216, 96
    %v345 = vpop.permute.xlu0 %344
    %v347 = vsel %vm331, %v342, %v345
    %v348 = vxor.u32 %v286, 2147483648
    %v349 = vmul.f32 %v348, 1.442695
    %v350 = vpow.pop %v349
    %v351 = vadd.f32 %v350, 1.0
    %v352 = vrcp.pop %v351
    %v353 = vmul.f32 %v351, %v352
    %v354 = vsub.f32 1.0, %v353
    %v355 = vmul.f32 %v352, %v354
    %v356 = vadd.f32 %v352, %v355
    %vm357 = vweird.f32 %v351
    %vm358 = vweird.f32 %v352
    %vm359 = vmor %vm357, %vm358
    %v360 = vsel %vm359, %v352, %v356
    %v361 = vand.u32 2147483647, %v351
    %vm362 = vcmp.eq.f32.partialorder %v361, 8.507059e+37
    %v363 = vand.u32 %v351, 2147483648
    %v364 = vor.u32 1.1754944e-38, %v363
    %v365 = vsel %vm362, %v364, %v360
    %v366 = vmul.f32 1.0, %v365
    %v367 = vtanh.pop %v286
    %v368 = vmul.f32 %v366, 0.0
    %370 = vrot.lane.b32.xlu0 %v367, 64
    %v371 = vpop.permute.xlu0 %370
    %v373 = vmul.f32 %v366, %v371
    %375 = vrot.lane.b32.xlu0 %v373, 32
    %v376 = vpop.permute.xlu0 %375
    %v378 = vadd.f32 %v368, %v376
    %v379 = vtanh.pop %v378
    %381 = vrot.lane.b32.xlu0 %v379, 64
    %v382 = vpop.permute.xlu0 %381
    %v384 = vmul.f32 %v366, %v382
    %v385 = vsel %vm214, %v384, 0.0
    %v386 = vsel %vm214, %v378, 0.0
    %v388 = vsel %vm148, %v338, 0
    %390 = vmatpush.msra.mxu0 0.0
    %391 = vmatpush.msra.mxu0 0.0
    %392 = vmatpush.msra.mxu0 0.0
    %393 = vmatpush.msra.mxu0 0.0
    %394 = vmatpush.msra.mxu0 0.0
    %395 = vmatpush.msra.mxu0 0.0
    %396 = vmatpush.msra.mxu0 0.0
    %397 = vmatpush.msra.mxu0 0.0
    %398 = vmatpush.msra.mxu0 0.0
    %399 = vmatpush.msra.mxu0 0.0
    %400 = vmatpush.msra.mxu0 0.0
    %401 = vmatpush.msra.mxu0 0.0
    %402 = vmatpush.msra.mxu0 %v44
    %403 = vmatpush.msra.mxu0 %v43
    %404 = vmatpush.msra.mxu0 %v42
    %405 = vmatpush.msra.mxu0 %v41
    %406 = vmatmul.f32.gmra.mxu0 %v388
    %v407 = vpop.f32.mrf.mxu0
    %v408 = vadd.f32 0.0, %v407
    %409 = vdwg.mxu0
    %v411 = vrot.slane %v408, 4
    %v413 = vadd.f32 %v135, %v411
    %415 = vrot.lane.b32.xlu0 %v385, 32
    %v416 = vpop.permute.xlu0 %415
    %v417 = vsel %vm148, %v416, 0
    %419 = vmatpush.msra.mxu0 0.0
    %420 = vmatpush.msra.mxu0 0.0
    %421 = vmatpush.msra.mxu0 0.0
    %422 = vmatpush.msra.mxu0 0.0
    %423 = vmatpush.msra.mxu0 0.0
    %424 = vmatpush.msra.mxu0 0.0
    %425 = vmatpush.msra.mxu0 0.0
    %426 = vmatpush.msra.mxu0 0.0
    %427 = vmatpush.msra.mxu0 0.0
    %428 = vmatpush.msra.mxu0 0.0
    %429 = vmatpush.msra.mxu0 0.0
    %430 = vmatpush.msra.mxu0 0.0
    %431 = vmatpush.msra.mxu0 %v52
    %432 = vmatpush.msra.mxu0 %v51
    %433 = vmatpush.msra.mxu0 %v50
    %434 = vmatpush.msra.mxu0 %v49
    %435 = vmatmul.f32.gmra.mxu0 %v417
    %v436 = vpop.f32.mrf.mxu0
    %v437 = vadd.f32 0.0, %v436
    %438 = vdwg.mxu0
    %439 = vmatpush.msra.mxu0 0.0
    %440 = vmatpush.msra.mxu0 0.0
    %441 = vmatpush.msra.mxu0 0.0
    %442 = vmatpush.msra.mxu0 0.0
    %443 = vmatpush.msra.mxu0 0.0
    %444 = vmatpush.msra.mxu0 0.0
    %445 = vmatpush.msra.mxu0 0.0
    %446 = vmatpush.msra.mxu0 0.0
    %447 = vmatpush.msra.mxu0 0.0
    %448 = vmatpush.msra.mxu0 0.0
    %449 = vmatpush.msra.mxu0 0.0
    %450 = vmatpush.msra.mxu0 0.0
    %451 = vmatpush.msra.mxu0 %v48
    %452 = vmatpush.msra.mxu0 %v47
    %453 = vmatpush.msra.mxu0 %v46
    %454 = vmatpush.msra.mxu0 %v45
    %455 = vmatmul.f32.gmra.mxu0 %v388
    %v456 = vpop.f32.mrf.mxu0
    %v457 = vadd.f32 %v437, %v456
    %458 = vdwg.mxu0
    %v459 = vadd.f32 %v457, %v94
    %460 = vmatpush.msra.mxu0 0.0
    %461 = vmatpush.msra.mxu0 0.0
    %462 = vmatpush.msra.mxu0 0.0
    %463 = vmatpush.msra.mxu0 0.0
    %464 = vmatpush.msra.mxu0 0.0
    %465 = vmatpush.msra.mxu0 0.0
    %466 = vmatpush.msra.mxu0 0.0
    %467 = vmatpush.msra.mxu0 0.0
    %468 = vmatpush.msra.mxu0 0.0
    %469 = vmatpush.msra.mxu0 0.0
    %470 = vmatpush.msra.mxu0 0.0
    %471 = vmatpush.msra.mxu0 0.0
    %472 = vmatpush.msra.mxu0 %v60
    %473 = vmatpush.msra.mxu0 %v59
    %474 = vmatpush.msra.mxu0 %v58
    %475 = vmatpush.msra.mxu0 %v57
    %476 = vmatmul.f32.gmra.mxu0 %v150
    %v477 = vpop.f32.mrf.mxu0
    %v478 = vadd.f32 0.0, %v477
    %479 = vdwg.mxu0
    %480 = vmatpush.msra.mxu0 0.0
    %481 = vmatpush.msra.mxu0 0.0
    %482 = vmatpush.msra.mxu0 0.0
    %483 = vmatpush.msra.mxu0 0.0
    %484 = vmatpush.msra.mxu0 0.0
    %485 = vmatpush.msra.mxu0 0.0
    %486 = vmatpush.msra.mxu0 0.0
    %487 = vmatpush.msra.mxu0 0.0
    %488 = vmatpush.msra.mxu0 0.0
    %489 = vmatpush.msra.mxu0 0.0
    %490 = vmatpush.msra.mxu0 0.0
    %491 = vmatpush.msra.mxu0 0.0
    %492 = vmatpush.msra.mxu0 %v56
    %493 = vmatpush.msra.mxu0 %v55
    %494 = vmatpush.msra.mxu0 %v54
    %495 = vmatpush.msra.mxu0 %v53
    %496 = vmatmul.f32.gmra.mxu0 %v417
    %v497 = vpop.f32.mrf.mxu0
    %v498 = vadd.f32 %v478, %v497
    %499 = vdwg.mxu0
    %v500 = vadd.f32 %v498, %v95
    %v501 = vxor.u32 %v413, 2147483648
    %v502 = vmul.f32 %v501, 1.442695
    %v503 = vpow.pop %v502
    %v504 = vadd.f32 %v503, 1.0
    %v505 = vrcp.pop %v504
    %v506 = vmul.f32 %v504, %v505
    %v507 = vsub.f32 1.0, %v506
    %v508 = vmul.f32 %v505, %v507
    %v509 = vadd.f32 %v505, %v508
    %vm510 = vweird.f32 %v504
    %vm511 = vweird.f32 %v505
    %vm512 = vmor %vm510, %vm511
    %v513 = vsel %vm512, %v505, %v509
    %v514 = vand.u32 2147483647, %v504
    %vm515 = vcmp.eq.f32.partialorder %v514, 8.507059e+37
    %v516 = vand.u32 %v504, 2147483648
    %v517 = vor.u32 1.1754944e-38, %v516
    %v518 = vsel %vm515, %v517, %v513
    %v519 = vmul.f32 1.0, %v518
    %v520 = vtanh.pop %v413
    %v522 = vrot.slane %v347, 4
    %523 = vrot.lane.b32.xlu0 %v522, 32
    %v524 = vpop.permute.xlu0 %523
    %v526 = vmul.f32 %v519, %v524
    %528 = vrot.lane.b32.xlu0 %v520, 64
    %v529 = vpop.permute.xlu0 %528
    %v531 = vmul.f32 %v519, %v529
    %533 = vrot.lane.b32.xlu0 %v531, 32
    %v534 = vpop.permute.xlu0 %533
    %v536 = vadd.f32 %v526, %v534
    %v537 = vtanh.pop %v536
    %539 = vrot.lane.b32.xlu0 %v537, 64
    %v540 = vpop.permute.xlu0 %539
    %v542 = vmul.f32 %v519, %v540
    %v543 = vsel %vm142, 1, 0
    %544 = vset.pattern.permute.xlu0 0
    %545 = vperm.xlu0 %544, %v543
    %v546 = vpop.permute.xlu0 %545
    %vm547 = vcmp.eq.s32.totalorder %v546, 1
    %v549 = vrot.slane %v542, 4
    %550 = vrot.lane.b32.xlu0 %v549, 32
    %v551 = vpop.permute.xlu0 %550
    %v553 = vsel %vm547, %v551, %v338
    %v555 = vrot.slane %v536, 4
    %556 = vrot.lane.b32.xlu0 %v555, 96
    %v557 = vpop.permute.xlu0 %556
    %v559 = vsel %vm547, %v557, %v347
    %v560 = vxor.u32 %v459, 2147483648
    %v561 = vmul.f32 %v560, 1.442695
    %v562 = vpow.pop %v561
    %v563 = vadd.f32 %v562, 1.0
    %v564 = vrcp.pop %v563
    %v565 = vmul.f32 %v563, %v564
    %v566 = vsub.f32 1.0, %v565
    %v567 = vmul.f32 %v564, %v566
    %v568 = vadd.f32 %v564, %v567
    %vm569 = vweird.f32 %v563
    %vm570 = vweird.f32 %v564
    %vm571 = vmor %vm569, %vm570
    %v572 = vsel %vm571, %v564, %v568
    %v573 = vand.u32 2147483647, %v563
    %vm574 = vcmp.eq.f32.partialorder %v573, 8.507059e+37
    %v575 = vand.u32 %v563, 2147483648
    %v576 = vor.u32 1.1754944e-38, %v575
    %v577 = vsel %vm574, %v576, %v572
    %v578 = vmul.f32 1.0, %v577
    %v579 = vtanh.pop %v459
    %v580 = vmul.f32 %v578, %v386
    %582 = vrot.lane.b32.xlu0 %v579, 64
    %v583 = vpop.permute.xlu0 %582
    %v585 = vmul.f32 %v578, %v583
    %587 = vrot.lane.b32.xlu0 %v585, 32
    %v588 = vpop.permute.xlu0 %587
    %v590 = vadd.f32 %v580, %v588
    %v591 = vtanh.pop %v590
    %593 = vrot.lane.b32.xlu0 %v591, 64
    %v594 = vpop.permute.xlu0 %593
    %v596 = vmul.f32 %v578, %v594
    %v597 = vsel %vm331, %v596, %v385
    %v598 = vsel %vm331, %v590, %v386
    %v599 = vxor.u32 %v500, 2147483648
    %v600 = vmul.f32 %v599, 1.442695
    %v601 = vpow.pop %v600
    %v602 = vadd.f32 %v601, 1.0
    %v603 = vrcp.pop %v602
    %v604 = vmul.f32 %v602, %v603
    %v605 = vsub.f32 1.0, %v604
    %v606 = vmul.f32 %v603, %v605
    %v607 = vadd.f32 %v603, %v606
    %vm608 = vweird.f32 %v602
    %vm609 = vweird.f32 %v603
    %vm610 = vmor %vm608, %vm609
    %v611 = vsel %vm610, %v603, %v607
    %v612 = vand.u32 2147483647, %v602
    %vm613 = vcmp.eq.f32.partialorder %v612, 8.507059e+37
    %v614 = vand.u32 %v602, 2147483648
    %v615 = vor.u32 1.1754944e-38, %v614
    %v616 = vsel %vm613, %v615, %v611
    %v617 = vmul.f32 1.0, %v616
    %v618 = vtanh.pop %v500
    %v619 = vmul.f32 %v617, 0.0
    %621 = vrot.lane.b32.xlu0 %v618, 64
    %v622 = vpop.permute.xlu0 %621
    %v624 = vmul.f32 %v617, %v622
    %626 = vrot.lane.b32.xlu0 %v624, 32
    %v627 = vpop.permute.xlu0 %626
    %v629 = vadd.f32 %v619, %v627
    %v630 = vtanh.pop %v629
    %632 = vrot.lane.b32.xlu0 %v630, 64
    %v633 = vpop.permute.xlu0 %632
    %v635 = vmul.f32 %v617, %v633
    %v636 = vsel %vm214, %v635, 0.0
    %v637 = vsel %vm214, %v629, 0.0
    %v639 = vsel %vm148, %v553, 0
    %641 = vmatpush.msra.mxu0 0.0
    %642 = vmatpush.msra.mxu0 0.0
    %643 = vmatpush.msra.mxu0 0.0
    %644 = vmatpush.msra.mxu0 0.0
    %645 = vmatpush.msra.mxu0 0.0
    %646 = vmatpush.msra.mxu0 0.0
    %647 = vmatpush.msra.mxu0 0.0
    %648 = vmatpush.msra.mxu0 0.0
    %649 = vmatpush.msra.mxu0 0.0
    %650 = vmatpush.msra.mxu0 0.0
    %651 = vmatpush.msra.mxu0 0.0
    %652 = vmatpush.msra.mxu0 0.0
    %653 = vmatpush.msra.mxu0 %v44
    %654 = vmatpush.msra.mxu0 %v43
    %655 = vmatpush.msra.mxu0 %v42
    %656 = vmatpush.msra.mxu0 %v41
    %657 = vmatmul.f32.gmra.mxu0 %v639
    %v658 = vpop.f32.mrf.mxu0
    %v659 = vadd.f32 0.0, %v658
    %660 = vdwg.mxu0
    %v662 = vrot.slane %v659, 2
    %v664 = vadd.f32 %v135, %v662
    %666 = vrot.lane.b32.xlu0 %v597, 32
    %v667 = vpop.permute.xlu0 %666
    %v668 = vsel %vm148, %v667, 0
    %670 = vmatpush.msra.mxu0 0.0
    %671 = vmatpush.msra.mxu0 0.0
    %672 = vmatpush.msra.mxu0 0.0
    %673 = vmatpush.msra.mxu0 0.0
    %674 = vmatpush.msra.mxu0 0.0
    %675 = vmatpush.msra.mxu0 0.0
    %676 = vmatpush.msra.mxu0 0.0
    %677 = vmatpush.msra.mxu0 0.0
    %678 = vmatpush.msra.mxu0 0.0
    %679 = vmatpush.msra.mxu0 0.0
    %680 = vmatpush.msra.mxu0 0.0
    %681 = vmatpush.msra.mxu0 0.0
    %682 = vmatpush.msra.mxu0 %v52
    %683 = vmatpush.msra.mxu0 %v51
    %684 = vmatpush.msra.mxu0 %v50
    %685 = vmatpush.msra.mxu0 %v49
    %686 = vmatmul.f32.gmra.mxu0 %v668
    %v687 = vpop.f32.mrf.mxu0
    %v688 = vadd.f32 0.0, %v687
    %689 = vdwg.mxu0
    %690 = vmatpush.msra.mxu0 0.0
    %691 = vmatpush.msra.mxu0 0.0
    %692 = vmatpush.msra.mxu0 0.0
    %693 = vmatpush.msra.mxu0 0.0
    %694 = vmatpush.msra.mxu0 0.0
    %695 = vmatpush.msra.mxu0 0.0
    %696 = vmatpush.msra.mxu0 0.0
    %697 = vmatpush.msra.mxu0 0.0
    %698 = vmatpush.msra.mxu0 0.0
    %699 = vmatpush.msra.mxu0 0.0
    %700 = vmatpush.msra.mxu0 0.0
    %701 = vmatpush.msra.mxu0 0.0
    %702 = vmatpush.msra.mxu0 %v48
    %703 = vmatpush.msra.mxu0 %v47
    %704 = vmatpush.msra.mxu0 %v46
    %705 = vmatpush.msra.mxu0 %v45
    %706 = vmatmul.f32.gmra.mxu0 %v639
    %v707 = vpop.f32.mrf.mxu0
    %v708 = vadd.f32 %v688, %v707
    %709 = vdwg.mxu0
    %v710 = vadd.f32 %v708, %v94
    %712 = vrot.lane.b32.xlu0 %v636, 32
    %v713 = vpop.permute.xlu0 %712
    %v714 = vsel %vm148, %v713, 0
    %716 = vmatpush.msra.mxu0 0.0
    %717 = vmatpush.msra.mxu0 0.0
    %718 = vmatpush.msra.mxu0 0.0
    %719 = vmatpush.msra.mxu0 0.0
    %720 = vmatpush.msra.mxu0 0.0
    %721 = vmatpush.msra.mxu0 0.0
    %722 = vmatpush.msra.mxu0 0.0
    %723 = vmatpush.msra.mxu0 0.0
    %724 = vmatpush.msra.mxu0 0.0
    %725 = vmatpush.msra.mxu0 0.0
    %726 = vmatpush.msra.mxu0 0.0
    %727 = vmatpush.msra.mxu0 0.0
    %728 = vmatpush.msra.mxu0 %v60
    %729 = vmatpush.msra.mxu0 %v59
    %730 = vmatpush.msra.mxu0 %v58
    %731 = vmatpush.msra.mxu0 %v57
    %732 = vmatmul.f32.gmra.mxu0 %v714
    %v733 = vpop.f32.mrf.mxu0
    %v734 = vadd.f32 0.0, %v733
    %735 = vdwg.mxu0
    %736 = vmatpush.msra.mxu0 0.0
    %737 = vmatpush.msra.mxu0 0.0
    %738 = vmatpush.msra.mxu0 0.0
    %739 = vmatpush.msra.mxu0 0.0
    %740 = vmatpush.msra.mxu0 0.0
    %741 = vmatpush.msra.mxu0 0.0
    %742 = vmatpush.msra.mxu0 0.0
    %743 = vmatpush.msra.mxu0 0.0
    %744 = vmatpush.msra.mxu0 0.0
    %745 = vmatpush.msra.mxu0 0.0
    %746 = vmatpush.msra.mxu0 0.0
    %747 = vmatpush.msra.mxu0 0.0
    %748 = vmatpush.msra.mxu0 %v56
    %749 = vmatpush.msra.mxu0 %v55
    %750 = vmatpush.msra.mxu0 %v54
    %751 = vmatpush.msra.mxu0 %v53
    %752 = vmatmul.f32.gmra.mxu0 %v668
    %v753 = vpop.f32.mrf.mxu0
    %v754 = vadd.f32 %v734, %v753
    %755 = vdwg.mxu0
    %v756 = vadd.f32 %v754, %v95
    %v757 = vxor.u32 %v664, 2147483648
    %v758 = vmul.f32 %v757, 1.442695
    %v759 = vpow.pop %v758
    %v760 = vadd.f32 %v759, 1.0
    %v761 = vrcp.pop %v760
    %v762 = vmul.f32 %v760, %v761
    %v763 = vsub.f32 1.0, %v762
    %v764 = vmul.f32 %v761, %v763
    %v765 = vadd.f32 %v761, %v764
    %vm766 = vweird.f32 %v760
    %vm767 = vweird.f32 %v761
    %vm768 = vmor %vm766, %vm767
    %v769 = vsel %vm768, %v761, %v765
    %v770 = vand.u32 2147483647, %v760
    %vm771 = vcmp.eq.f32.partialorder %v770, 8.507059e+37
    %v772 = vand.u32 %v760, 2147483648
    %v773 = vor.u32 1.1754944e-38, %v772
    %v774 = vsel %vm771, %v773, %v769
    %v775 = vmul.f32 1.0, %v774
    %v776 = vtanh.pop %v664
    %v778 = vrot.slane %v559, 2
    %779 = vrot.lane.b32.xlu0 %v778, 32
    %v780 = vpop.permute.xlu0 %779
    %v782 = vmul.f32 %v775, %v780
    %784 = vrot.lane.b32.xlu0 %v776, 64
    %v785 = vpop.permute.xlu0 %784
    %v787 = vmul.f32 %v775, %v785
    %789 = vrot.lane.b32.xlu0 %v787, 32
    %v790 = vpop.permute.xlu0 %789
    %v792 = vadd.f32 %v782, %v790
    %v793 = vtanh.pop %v792
    %795 = vrot.lane.b32.xlu0 %v793, 64
    %v796 = vpop.permute.xlu0 %795
    %v798 = vmul.f32 %v775, %v796
    %v799 = vsel %vm143, 1, 0
    %800 = vset.pattern.permute.xlu0 0
    %801 = vperm.xlu0 %800, %v799
    %v802 = vpop.permute.xlu0 %801
    %vm803 = vcmp.eq.s32.totalorder %v802, 1
    %v805 = vrot.slane %v798, 6
    %806 = vrot.lane.b32.xlu0 %v805, 32
    %v807 = vpop.permute.xlu0 %806
    %v809 = vsel %vm803, %v807, %v553
    %v811 = vrot.slane %v792, 6
    %812 = vrot.lane.b32.xlu0 %v811, 96
    %v813 = vpop.permute.xlu0 %812
    %v815 = vsel %vm803, %v813, %v559
    %v816 = vxor.u32 %v710, 2147483648
    %v817 = vmul.f32 %v816, 1.442695
    %v818 = vpow.pop %v817
    %v819 = vadd.f32 %v818, 1.0
    %v820 = vrcp.pop %v819
    %v821 = vmul.f32 %v819, %v820
    %v822 = vsub.f32 1.0, %v821
    %v823 = vmul.f32 %v820, %v822
    %v824 = vadd.f32 %v820, %v823
    %vm825 = vweird.f32 %v819
    %vm826 = vweird.f32 %v820
    %vm827 = vmor %vm825, %vm826
    %v828 = vsel %vm827, %v820, %v824
    %v829 = vand.u32 2147483647, %v819
    %vm830 = vcmp.eq.f32.partialorder %v829, 8.507059e+37
    %v831 = vand.u32 %v819, 2147483648
    %v832 = vor.u32 1.1754944e-38, %v831
    %v833 = vsel %vm830, %v832, %v828
    %v834 = vmul.f32 1.0, %v833
    %v835 = vtanh.pop %v710
    %v836 = vmul.f32 %v834, %v598
    %838 = vrot.lane.b32.xlu0 %v835, 64
    %v839 = vpop.permute.xlu0 %838
    %v841 = vmul.f32 %v834, %v839
    %843 = vrot.lane.b32.xlu0 %v841, 32
    %v844 = vpop.permute.xlu0 %843
    %v846 = vadd.f32 %v836, %v844
    %v847 = vtanh.pop %v846
    %849 = vrot.lane.b32.xlu0 %v847, 64
    %v850 = vpop.permute.xlu0 %849
    %v852 = vmul.f32 %v834, %v850
    %v853 = vsel %vm547, %v852, %v597
    %v854 = vsel %vm547, %v846, %v598
    %v855 = vxor.u32 %v756, 2147483648
    %v856 = vmul.f32 %v855, 1.442695
    %v857 = vpow.pop %v856
    %v858 = vadd.f32 %v857, 1.0
    %v859 = vrcp.pop %v858
    %v860 = vmul.f32 %v858, %v859
    %v861 = vsub.f32 1.0, %v860
    %v862 = vmul.f32 %v859, %v861
    %v863 = vadd.f32 %v859, %v862
    %vm864 = vweird.f32 %v858
    %vm865 = vweird.f32 %v859
    %vm866 = vmor %vm864, %vm865
    %v867 = vsel %vm866, %v859, %v863
    %v868 = vand.u32 2147483647, %v858
    %vm869 = vcmp.eq.f32.partialorder %v868, 8.507059e+37
    %v870 = vand.u32 %v858, 2147483648
    %v871 = vor.u32 1.1754944e-38, %v870
    %v872 = vsel %vm869, %v871, %v867
    %v873 = vmul.f32 1.0, %v872
    %v874 = vtanh.pop %v756
    %v875 = vmul.f32 %v873, %v637
    %877 = vrot.lane.b32.xlu0 %v874, 64
    %v878 = vpop.permute.xlu0 %877
    %v880 = vmul.f32 %v873, %v878
    %882 = vrot.lane.b32.xlu0 %v880, 32
    %v883 = vpop.permute.xlu0 %882
    %v885 = vadd.f32 %v875, %v883
    %v886 = vtanh.pop %v885
    %888 = vrot.lane.b32.xlu0 %v886, 64
    %v889 = vpop.permute.xlu0 %888
    %v891 = vmul.f32 %v873, %v889
    %v892 = vsel %vm331, %v891, %v636
    %v893 = vsel %vm331, %v885, %v637
    %v894 = vsel %vm331, %v891, 0.0
    %v896 = vsel %vm148, %v809, 0
    %898 = vmatpush.msra.mxu0 0.0
    %899 = vmatpush.msra.mxu0 0.0
    %900 = vmatpush.msra.mxu0 0.0
    %901 = vmatpush.msra.mxu0 0.0
    %902 = vmatpush.msra.mxu0 0.0
    %903 = vmatpush.msra.mxu0 0.0
    %904 = vmatpush.msra.mxu0 0.0
    %905 = vmatpush.msra.mxu0 0.0
    %906 = vmatpush.msra.mxu0 0.0
    %907 = vmatpush.msra.mxu0 0.0
    %908 = vmatpush.msra.mxu0 0.0
    %909 = vmatpush.msra.mxu0 0.0
    %910 = vmatpush.msra.mxu0 %v44
    %911 = vmatpush.msra.mxu0 %v43
    %912 = vmatpush.msra.mxu0 %v42
    %913 = vmatpush.msra.mxu0 %v41
    %914 = vmatmul.f32.gmra.mxu0 %v896
    %v915 = vpop.f32.mrf.mxu0
    %v916 = vadd.f32 0.0, %v915
    %917 = vdwg.mxu0
    %v918 = vadd.f32 %v138, %v916
    %920 = vrot.lane.b32.xlu0 %v853, 32
    %v921 = vpop.permute.xlu0 %920
    %v922 = vsel %vm148, %v921, 0
    %924 = vmatpush.msra.mxu0 0.0
    %925 = vmatpush.msra.mxu0 0.0
    %926 = vmatpush.msra.mxu0 0.0
    %927 = vmatpush.msra.mxu0 0.0
    %928 = vmatpush.msra.mxu0 0.0
    %929 = vmatpush.msra.mxu0 0.0
    %930 = vmatpush.msra.mxu0 0.0
    %931 = vmatpush.msra.mxu0 0.0
    %932 = vmatpush.msra.mxu0 0.0
    %933 = vmatpush.msra.mxu0 0.0
    %934 = vmatpush.msra.mxu0 0.0
    %935 = vmatpush.msra.mxu0 0.0
    %936 = vmatpush.msra.mxu0 %v52
    %937 = vmatpush.msra.mxu0 %v51
    %938 = vmatpush.msra.mxu0 %v50
    %939 = vmatpush.msra.mxu0 %v49
    %940 = vmatmul.f32.gmra.mxu0 %v922
    %v941 = vpop.f32.mrf.mxu0
    %v942 = vadd.f32 0.0, %v941
    %943 = vdwg.mxu0
    %944 = vmatpush.msra.mxu0 0.0
    %945 = vmatpush.msra.mxu0 0.0
    %946 = vmatpush.msra.mxu0 0.0
    %947 = vmatpush.msra.mxu0 0.0
    %948 = vmatpush.msra.mxu0 0.0
    %949 = vmatpush.msra.mxu0 0.0
    %950 = vmatpush.msra.mxu0 0.0
    %951 = vmatpush.msra.mxu0 0.0
    %952 = vmatpush.msra.mxu0 0.0
    %953 = vmatpush.msra.mxu0 0.0
    %954 = vmatpush.msra.mxu0 0.0
    %955 = vmatpush.msra.mxu0 0.0
    %956 = vmatpush.msra.mxu0 %v48
    %957 = vmatpush.msra.mxu0 %v47
    %958 = vmatpush.msra.mxu0 %v46
    %959 = vmatpush.msra.mxu0 %v45
    %960 = vmatmul.f32.gmra.mxu0 %v896
    %v961 = vpop.f32.mrf.mxu0
    %v962 = vadd.f32 %v942, %v961
    %963 = vdwg.mxu0
    %v964 = vadd.f32 %v962, %v94
    %966 = vrot.lane.b32.xlu0 %v892, 32
    %v967 = vpop.permute.xlu0 %966
    %v968 = vsel %vm148, %v967, 0
    %970 = vmatpush.msra.mxu0 0.0
    %971 = vmatpush.msra.mxu0 0.0
    %972 = vmatpush.msra.mxu0 0.0
    %973 = vmatpush.msra.mxu0 0.0
    %974 = vmatpush.msra.mxu0 0.0
    %975 = vmatpush.msra.mxu0 0.0
    %976 = vmatpush.msra.mxu0 0.0
    %977 = vmatpush.msra.mxu0 0.0
    %978 = vmatpush.msra.mxu0 0.0
    %979 = vmatpush.msra.mxu0 0.0
    %980 = vmatpush.msra.mxu0 0.0
    %981 = vmatpush.msra.mxu0 0.0
    %982 = vmatpush.msra.mxu0 %v60
    %983 = vmatpush.msra.mxu0 %v59
    %984 = vmatpush.msra.mxu0 %v58
    %985 = vmatpush.msra.mxu0 %v57
    %986 = vmatmul.f32.gmra.mxu0 %v968
    %v987 = vpop.f32.mrf.mxu0
    %v988 = vadd.f32 0.0, %v987
    %989 = vdwg.mxu0
    %990 = vmatpush.msra.mxu0 0.0
    %991 = vmatpush.msra.mxu0 0.0
    %992 = vmatpush.msra.mxu0 0.0
    %993 = vmatpush.msra.mxu0 0.0
    %994 = vmatpush.msra.mxu0 0.0
    %995 = vmatpush.msra.mxu0 0.0
    %996 = vmatpush.msra.mxu0 0.0
    %997 = vmatpush.msra.mxu0 0.0
    %998 = vmatpush.msra.mxu0 0.0
    %999 = vmatpush.msra.mxu0 0.0
    %1000 = vmatpush.msra.mxu0 0.0
    %1001 = vmatpush.msra.mxu0 0.0
    %1002 = vmatpush.msra.mxu0 %v56
    %1003 = vmatpush.msra.mxu0 %v55
    %1004 = vmatpush.msra.mxu0 %v54
    %1005 = vmatpush.msra.mxu0 %v53
    %1006 = vmatmul.f32.gmra.mxu0 %v922
    %v1007 = vpop.f32.mrf.mxu0
    %v1008 = vadd.f32 %v988, %v1007
    %1009 = vdwg.mxu0
    %v1010 = vadd.f32 %v1008, %v95
    %v1011 = vxor.u32 %v918, 2147483648
    %v1012 = vmul.f32 %v1011, 1.442695
    %v1013 = vpow.pop %v1012
    %v1014 = vadd.f32 %v1013, 1.0
    %v1015 = vrcp.pop %v1014
    %v1016 = vmul.f32 %v1014, %v1015
    %v1017 = vsub.f32 1.0, %v1016
    %v1018 = vmul.f32 %v1015, %v1017
    %v1019 = vadd.f32 %v1015, %v1018
    %vm1020 = vweird.f32 %v1014
    %vm1021 = vweird.f32 %v1015
    %vm1022 = vmor %vm1020, %vm1021
    %v1023 = vsel %vm1022, %v1015, %v1019
    %v1024 = vand.u32 2147483647, %v1014
    %vm1025 = vcmp.eq.f32.partialorder %v1024, 8.507059e+37
    %v1026 = vand.u32 %v1014, 2147483648
    %v1027 = vor.u32 1.1754944e-38, %v1026
    %v1028 = vsel %vm1025, %v1027, %v1023
    %v1029 = vmul.f32 1.0, %v1028
    %v1030 = vtanh.pop %v918
    %1032 = vrot.lane.b32.xlu0 %v815, 32
    %v1033 = vpop.permute.xlu0 %1032
    %v1035 = vmul.f32 %v1029, %v1033
    %1037 = vrot.lane.b32.xlu0 %v1030, 64
    %v1038 = vpop.permute.xlu0 %1037
    %v1040 = vmul.f32 %v1029, %v1038
    %1042 = vrot.lane.b32.xlu0 %v1040, 32
    %v1043 = vpop.permute.xlu0 %1042
    %v1045 = vadd.f32 %v1035, %v1043
    %v1046 = vtanh.pop %v1045
    %1048 = vrot.lane.b32.xlu0 %v1046, 64
    %v1049 = vpop.permute.xlu0 %1048
    %v1051 = vmul.f32 %v1029, %v1049
    %v1052 = vsel %vm144, 1, 0
    %1053 = vset.pattern.permute.xlu0 0
    %1054 = vperm.xlu0 %1053, %v1052
    %v1055 = vpop.permute.xlu0 %1054
    %vm1056 = vcmp.eq.s32.totalorder %v1055, 1
    %1057 = vrot.lane.b32.xlu0 %v809, 96
    %v1058 = vpop.permute.xlu0 %1057
    %v1060 = vsel %vm1056, %v1051, %v1058
    %v1061 = vsel %vm1056, %v1045, %v1033
    %v1062 = vxor.u32 %v964, 2147483648
    %v1063 = vmul.f32 %v1062, 1.442695
    %v1064 = vpow.pop %v1063
    %v1065 = vadd.f32 %v1064, 1.0
    %v1066 = vrcp.pop %v1065
    %v1067 = vmul.f32 %v1065, %v1066
    %v1068 = vsub.f32 1.0, %v1067
    %v1069 = vmul.f32 %v1066, %v1068
    %v1070 = vadd.f32 %v1066, %v1069
    %vm1071 = vweird.f32 %v1065
    %vm1072 = vweird.f32 %v1066
    %vm1073 = vmor %vm1071, %vm1072
    %v1074 = vsel %vm1073, %v1066, %v1070
    %v1075 = vand.u32 2147483647, %v1065
    %vm1076 = vcmp.eq.f32.partialorder %v1075, 8.507059e+37
    %v1077 = vand.u32 %v1065, 2147483648
    %v1078 = vor.u32 1.1754944e-38, %v1077
    %v1079 = vsel %vm1076, %v1078, %v1074
    %v1080 = vmul.f32 1.0, %v1079
    %v1081 = vtanh.pop %v964
    %v1082 = vmul.f32 %v1080, %v854
    %1084 = vrot.lane.b32.xlu0 %v1081, 64
    %v1085 = vpop.permute.xlu0 %1084
    %v1087 = vmul.f32 %v1080, %v1085
    %1089 = vrot.lane.b32.xlu0 %v1087, 32
    %v1090 = vpop.permute.xlu0 %1089
    %v1092 = vadd.f32 %v1082, %v1090
    %v1093 = vtanh.pop %v1092
    %1095 = vrot.lane.b32.xlu0 %v1093, 64
    %v1096 = vpop.permute.xlu0 %1095
    %v1098 = vmul.f32 %v1080, %v1096
    %v1099 = vsel %vm803, %v1098, %v853
    %v1100 = vsel %vm803, %v1092, %v854
    %v1101 = vxor.u32 %v1010, 2147483648
    %v1102 = vmul.f32 %v1101, 1.442695
    %v1103 = vpow.pop %v1102
    %v1104 = vadd.f32 %v1103, 1.0
    %v1105 = vrcp.pop %v1104
    %v1106 = vmul.f32 %v1104, %v1105
    %v1107 = vsub.f32 1.0, %v1106
    %v1108 = vmul.f32 %v1105, %v1107
    %v1109 = vadd.f32 %v1105, %v1108
    %vm1110 = vweird.f32 %v1104
    %vm1111 = vweird.f32 %v1105
    %vm1112 = vmor %vm1110, %vm1111
    %v1113 = vsel %vm1112, %v1105, %v1109
    %v1114 = vand.u32 2147483647, %v1104
    %vm1115 = vcmp.eq.f32.partialorder %v1114, 8.507059e+37
    %v1116 = vand.u32 %v1104, 2147483648
    %v1117 = vor.u32 1.1754944e-38, %v1116
    %v1118 = vsel %vm1115, %v1117, %v1113
    %v1119 = vmul.f32 1.0, %v1118
    %v1120 = vtanh.pop %v1010
    %v1121 = vmul.f32 %v1119, %v893
    %1123 = vrot.lane.b32.xlu0 %v1120, 64
    %v1124 = vpop.permute.xlu0 %1123
    %v1126 = vmul.f32 %v1119, %v1124
    %1128 = vrot.lane.b32.xlu0 %v1126, 32
    %v1129 = vpop.permute.xlu0 %1128
    %v1131 = vadd.f32 %v1121, %v1129
    %v1132 = vtanh.pop %v1131
    %1134 = vrot.lane.b32.xlu0 %v1132, 64
    %v1135 = vpop.permute.xlu0 %1134
    %v1137 = vmul.f32 %v1119, %v1135
    %v1138 = vsel %vm547, %v1137, %v892
    %v1139 = vsel %vm547, %v1131, %v893
    %v1140 = vsel %vm547, %v1137, 0.0
    %1142 = vrot.lane.b32.xlu0 %v1060, 32
    %v1143 = vpop.permute.xlu0 %1142
    %v1144 = vsel %vm148, %v1143, 0
    %1146 = vmatpush.msra.mxu0 0.0
    %1147 = vmatpush.msra.mxu0 0.0
    %1148 = vmatpush.msra.mxu0 0.0
    %1149 = vmatpush.msra.mxu0 0.0
    %1150 = vmatpush.msra.mxu0 0.0
    %1151 = vmatpush.msra.mxu0 0.0
    %1152 = vmatpush.msra.mxu0 0.0
    %1153 = vmatpush.msra.mxu0 0.0
    %1154 = vmatpush.msra.mxu0 0.0
    %1155 = vmatpush.msra.mxu0 0.0
    %1156 = vmatpush.msra.mxu0 0.0
    %1157 = vmatpush.msra.mxu0 0.0
    %1158 = vmatpush.msra.mxu0 %v44
    %1159 = vmatpush.msra.mxu0 %v43
    %1160 = vmatpush.msra.mxu0 %v42
    %1161 = vmatpush.msra.mxu0 %v41
    %1162 = vmatmul.f32.gmra.mxu0 %v1144
    %v1163 = vpop.f32.mrf.mxu0
    %v1164 = vadd.f32 0.0, %v1163
    %1165 = vdwg.mxu0
    %v1167 = vrot.slane %v1164, 6
    %v1169 = vadd.f32 %v138, %v1167
    %1171 = vrot.lane.b32.xlu0 %v1099, 32
    %v1172 = vpop.permute.xlu0 %1171
    %v1173 = vsel %vm148, %v1172, 0
    %1175 = vmatpush.msra.mxu0 0.0
    %1176 = vmatpush.msra.mxu0 0.0
    %1177 = vmatpush.msra.mxu0 0.0
    %1178 = vmatpush.msra.mxu0 0.0
    %1179 = vmatpush.msra.mxu0 0.0
    %1180 = vmatpush.msra.mxu0 0.0
    %1181 = vmatpush.msra.mxu0 0.0
    %1182 = vmatpush.msra.mxu0 0.0
    %1183 = vmatpush.msra.mxu0 0.0
    %1184 = vmatpush.msra.mxu0 0.0
    %1185 = vmatpush.msra.mxu0 0.0
    %1186 = vmatpush.msra.mxu0 0.0
    %1187 = vmatpush.msra.mxu0 %v52
    %1188 = vmatpush.msra.mxu0 %v51
    %1189 = vmatpush.msra.mxu0 %v50
    %1190 = vmatpush.msra.mxu0 %v49
    %1191 = vmatmul.f32.gmra.mxu0 %v1173
    %v1192 = vpop.f32.mrf.mxu0
    %v1193 = vadd.f32 0.0, %v1192
    %1194 = vdwg.mxu0
    %1195 = vmatpush.msra.mxu0 0.0
    %1196 = vmatpush.msra.mxu0 0.0
    %1197 = vmatpush.msra.mxu0 0.0
    %1198 = vmatpush.msra.mxu0 0.0
    %1199 = vmatpush.msra.mxu0 0.0
    %1200 = vmatpush.msra.mxu0 0.0
    %1201 = vmatpush.msra.mxu0 0.0
    %1202 = vmatpush.msra.mxu0 0.0
    %1203 = vmatpush.msra.mxu0 0.0
    %1204 = vmatpush.msra.mxu0 0.0
    %1205 = vmatpush.msra.mxu0 0.0
    %1206 = vmatpush.msra.mxu0 0.0
    %1207 = vmatpush.msra.mxu0 %v48
    %1208 = vmatpush.msra.mxu0 %v47
    %1209 = vmatpush.msra.mxu0 %v46
    %1210 = vmatpush.msra.mxu0 %v45
    %1211 = vmatmul.f32.gmra.mxu0 %v1144
    %v1212 = vpop.f32.mrf.mxu0
    %v1213 = vadd.f32 %v1193, %v1212
    %1214 = vdwg.mxu0
    %v1215 = vadd.f32 %v1213, %v94
    %1217 = vrot.lane.b32.xlu0 %v1138, 32
    %v1218 = vpop.permute.xlu0 %1217
    %v1219 = vsel %vm148, %v1218, 0
    %1221 = vmatpush.msra.mxu0 0.0
    %1222 = vmatpush.msra.mxu0 0.0
    %1223 = vmatpush.msra.mxu0 0.0
    %1224 = vmatpush.msra.mxu0 0.0
    %1225 = vmatpush.msra.mxu0 0.0
    %1226 = vmatpush.msra.mxu0 0.0
    %1227 = vmatpush.msra.mxu0 0.0
    %1228 = vmatpush.msra.mxu0 0.0
    %1229 = vmatpush.msra.mxu0 0.0
    %1230 = vmatpush.msra.mxu0 0.0
    %1231 = vmatpush.msra.mxu0 0.0
    %1232 = vmatpush.msra.mxu0 0.0
    %1233 = vmatpush.msra.mxu0 %v60
    %1234 = vmatpush.msra.mxu0 %v59
    %1235 = vmatpush.msra.mxu0 %v58
    %1236 = vmatpush.msra.mxu0 %v57
    %1237 = vmatmul.f32.gmra.mxu0 %v1219
    %v1238 = vpop.f32.mrf.mxu0
    %v1239 = vadd.f32 0.0, %v1238
    %1240 = vdwg.mxu0
    %1241 = vmatpush.msra.mxu0 0.0
    %1242 = vmatpush.msra.mxu0 0.0
    %1243 = vmatpush.msra.mxu0 0.0
    %1244 = vmatpush.msra.mxu0 0.0
    %1245 = vmatpush.msra.mxu0 0.0
    %1246 = vmatpush.msra.mxu0 0.0
    %1247 = vmatpush.msra.mxu0 0.0
    %1248 = vmatpush.msra.mxu0 0.0
    %1249 = vmatpush.msra.mxu0 0.0
    %1250 = vmatpush.msra.mxu0 0.0
    %1251 = vmatpush.msra.mxu0 0.0
    %1252 = vmatpush.msra.mxu0 0.0
    %1253 = vmatpush.msra.mxu0 %v56
    %1254 = vmatpush.msra.mxu0 %v55
    %1255 = vmatpush.msra.mxu0 %v54
    %1256 = vmatpush.msra.mxu0 %v53
    %1257 = vmatmul.f32.gmra.mxu0 %v1173
    %v1258 = vpop.f32.mrf.mxu0
    %v1259 = vadd.f32 %v1239, %v1258
    %1260 = vdwg.mxu0
    %v1261 = vadd.f32 %v1259, %v95
    %v1262 = vxor.u32 %v1169, 2147483648
    %v1263 = vmul.f32 %v1262, 1.442695
    %v1264 = vpow.pop %v1263
    %v1265 = vadd.f32 %v1264, 1.0
    %v1266 = vrcp.pop %v1265
    %v1267 = vmul.f32 %v1265, %v1266
    %v1268 = vsub.f32 1.0, %v1267
    %v1269 = vmul.f32 %v1266, %v1268
    %v1270 = vadd.f32 %v1266, %v1269
    %vm1271 = vweird.f32 %v1265
    %vm1272 = vweird.f32 %v1266
    %vm1273 = vmor %vm1271, %vm1272
    %v1274 = vsel %vm1273, %v1266, %v1270
    %v1275 = vand.u32 2147483647, %v1265
    %vm1276 = vcmp.eq.f32.partialorder %v1275, 8.507059e+37
    %v1277 = vand.u32 %v1265, 2147483648
    %v1278 = vor.u32 1.1754944e-38, %v1277
    %v1279 = vsel %vm1276, %v1278, %v1274
    %v1280 = vmul.f32 1.0, %v1279
    %v1281 = vtanh.pop %v1169
    %v1283 = vrot.slane %v1061, 6
    %v1285 = vmul.f32 %v1280, %v1283
    %1287 = vrot.lane.b32.xlu0 %v1281, 64
    %v1288 = vpop.permute.xlu0 %1287
    %v1290 = vmul.f32 %v1280, %v1288
    %1292 = vrot.lane.b32.xlu0 %v1290, 32
    %v1293 = vpop.permute.xlu0 %1292
    %v1295 = vadd.f32 %v1285, %v1293
    %v1296 = vtanh.pop %v1295
    %1298 = vrot.lane.b32.xlu0 %v1296, 64
    %v1299 = vpop.permute.xlu0 %1298
    %v1301 = vmul.f32 %v1280, %v1299
    %v1302 = vsel %vm145, 1, 0
    %1303 = vset.pattern.permute.xlu0 0
    %1304 = vperm.xlu0 %1303, %v1302
    %v1305 = vpop.permute.xlu0 %1304
    %vm1306 = vcmp.eq.s32.totalorder %v1305, 1
    %v1308 = vrot.slane %v1301, 2
    %1309 = vrot.lane.b32.xlu0 %v1308, 32
    %v1310 = vpop.permute.xlu0 %1309
    %v1313 = vsel %vm1306, %v1310, %v1143
    %v1315 = vrot.slane %v1295, 2
    %1316 = vrot.lane.b32.xlu0 %v1315, 96
    %v1317 = vpop.permute.xlu0 %1316
    %1319 = vrot.lane.b32.xlu0 %v1061, 96
    %v1320 = vpop.permute.xlu0 %1319
    %v1322 = vsel %vm1306, %v1317, %v1320
    %v1323 = vxor.u32 %v1215, 2147483648
    %v1324 = vmul.f32 %v1323, 1.442695
    %v1325 = vpow.pop %v1324
    %v1326 = vadd.f32 %v1325, 1.0
    %v1327 = vrcp.pop %v1326
    %v1328 = vmul.f32 %v1326, %v1327
    %v1329 = vsub.f32 1.0, %v1328
    %v1330 = vmul.f32 %v1327, %v1329
    %v1331 = vadd.f32 %v1327, %v1330
    %vm1332 = vweird.f32 %v1326
    %vm1333 = vweird.f32 %v1327
    %vm1334 = vmor %vm1332, %vm1333
    %v1335 = vsel %vm1334, %v1327, %v1331
    %v1336 = vand.u32 2147483647, %v1326
    %vm1337 = vcmp.eq.f32.partialorder %v1336, 8.507059e+37
    %v1338 = vand.u32 %v1326, 2147483648
    %v1339 = vor.u32 1.1754944e-38, %v1338
    %v1340 = vsel %vm1337, %v1339, %v1335
    %v1341 = vmul.f32 1.0, %v1340
    %v1342 = vtanh.pop %v1215
    %v1343 = vmul.f32 %v1341, %v1100
    %1345 = vrot.lane.b32.xlu0 %v1342, 64
    %v1346 = vpop.permute.xlu0 %1345
    %v1348 = vmul.f32 %v1341, %v1346
    %1350 = vrot.lane.b32.xlu0 %v1348, 32
    %v1351 = vpop.permute.xlu0 %1350
    %v1353 = vadd.f32 %v1343, %v1351
    %v1354 = vtanh.pop %v1353
    %1356 = vrot.lane.b32.xlu0 %v1354, 64
    %v1357 = vpop.permute.xlu0 %1356
    %v1359 = vmul.f32 %v1341, %v1357
    %v1360 = vsel %vm1056, %v1359, %v1099
    %v1361 = vsel %vm1056, %v1353, %v1100
    %v1362 = vxor.u32 %v1261, 2147483648
    %v1363 = vmul.f32 %v1362, 1.442695
    %v1364 = vpow.pop %v1363
    %v1365 = vadd.f32 %v1364, 1.0
    %v1366 = vrcp.pop %v1365
    %v1367 = vmul.f32 %v1365, %v1366
    %v1368 = vsub.f32 1.0, %v1367
    %v1369 = vmul.f32 %v1366, %v1368
    %v1370 = vadd.f32 %v1366, %v1369
    %vm1371 = vweird.f32 %v1365
    %vm1372 = vweird.f32 %v1366
    %vm1373 = vmor %vm1371, %vm1372
    %v1374 = vsel %vm1373, %v1366, %v1370
    %v1375 = vand.u32 2147483647, %v1365
    %vm1376 = vcmp.eq.f32.partialorder %v1375, 8.507059e+37
    %v1377 = vand.u32 %v1365, 2147483648
    %v1378 = vor.u32 1.1754944e-38, %v1377
    %v1379 = vsel %vm1376, %v1378, %v1374
    %v1380 = vmul.f32 1.0, %v1379
    %v1381 = vtanh.pop %v1261
    %v1382 = vmul.f32 %v1380, %v1139
    %1384 = vrot.lane.b32.xlu0 %v1381, 64
    %v1385 = vpop.permute.xlu0 %1384
    %v1387 = vmul.f32 %v1380, %v1385
    %1389 = vrot.lane.b32.xlu0 %v1387, 32
    %v1390 = vpop.permute.xlu0 %1389
    %v1392 = vadd.f32 %v1382, %v1390
    %v1393 = vtanh.pop %v1392
    %1395 = vrot.lane.b32.xlu0 %v1393, 64
    %v1396 = vpop.permute.xlu0 %1395
    %v1398 = vmul.f32 %v1380, %v1396
    %v1399 = vsel %vm803, %v1398, %v1138
    %v1400 = vsel %vm803, %v1392, %v1139
    %v1401 = vsel %vm803, %v1398, 0.0
    %v1403 = vsel %vm148, %v1313, 0
    %1405 = vmatpush.msra.mxu0 0.0
    %1406 = vmatpush.msra.mxu0 0.0
    %1407 = vmatpush.msra.mxu0 0.0
    %1408 = vmatpush.msra.mxu0 0.0
    %1409 = vmatpush.msra.mxu0 0.0
    %1410 = vmatpush.msra.mxu0 0.0
    %1411 = vmatpush.msra.mxu0 0.0
    %1412 = vmatpush.msra.mxu0 0.0
    %1413 = vmatpush.msra.mxu0 0.0
    %1414 = vmatpush.msra.mxu0 0.0
    %1415 = vmatpush.msra.mxu0 0.0
    %1416 = vmatpush.msra.mxu0 0.0
    %1417 = vmatpush.msra.mxu0 %v44
    %1418 = vmatpush.msra.mxu0 %v43
    %1419 = vmatpush.msra.mxu0 %v42
    %1420 = vmatpush.msra.mxu0 %v41
    %1421 = vmatmul.f32.gmra.mxu0 %v1403
    %v1422 = vpop.f32.mrf.mxu0
    %v1423 = vadd.f32 0.0, %v1422
    %1424 = vdwg.mxu0
    %v1426 = vrot.slane %v1423, 4
    %v1428 = vadd.f32 %v138, %v1426
    %1430 = vrot.lane.b32.xlu0 %v1360, 32
    %v1431 = vpop.permute.xlu0 %1430
    %v1432 = vsel %vm148, %v1431, 0
    %1434 = vmatpush.msra.mxu0 0.0
    %1435 = vmatpush.msra.mxu0 0.0
    %1436 = vmatpush.msra.mxu0 0.0
    %1437 = vmatpush.msra.mxu0 0.0
    %1438 = vmatpush.msra.mxu0 0.0
    %1439 = vmatpush.msra.mxu0 0.0
    %1440 = vmatpush.msra.mxu0 0.0
    %1441 = vmatpush.msra.mxu0 0.0
    %1442 = vmatpush.msra.mxu0 0.0
    %1443 = vmatpush.msra.mxu0 0.0
    %1444 = vmatpush.msra.mxu0 0.0
    %1445 = vmatpush.msra.mxu0 0.0
    %1446 = vmatpush.msra.mxu0 %v52
    %1447 = vmatpush.msra.mxu0 %v51
    %1448 = vmatpush.msra.mxu0 %v50
    %1449 = vmatpush.msra.mxu0 %v49
    %1450 = vmatmul.f32.gmra.mxu0 %v1432
    %v1451 = vpop.f32.mrf.mxu0
    %v1452 = vadd.f32 0.0, %v1451
    %1453 = vdwg.mxu0
    %1454 = vmatpush.msra.mxu0 0.0
    %1455 = vmatpush.msra.mxu0 0.0
    %1456 = vmatpush.msra.mxu0 0.0
    %1457 = vmatpush.msra.mxu0 0.0
    %1458 = vmatpush.msra.mxu0 0.0
    %1459 = vmatpush.msra.mxu0 0.0
    %1460 = vmatpush.msra.mxu0 0.0
    %1461 = vmatpush.msra.mxu0 0.0
    %1462 = vmatpush.msra.mxu0 0.0
    %1463 = vmatpush.msra.mxu0 0.0
    %1464 = vmatpush.msra.mxu0 0.0
    %1465 = vmatpush.msra.mxu0 0.0
    %1466 = vmatpush.msra.mxu0 %v48
    %1467 = vmatpush.msra.mxu0 %v47
    %1468 = vmatpush.msra.mxu0 %v46
    %1469 = vmatpush.msra.mxu0 %v45
    %1470 = vmatmul.f32.gmra.mxu0 %v1403
    %v1471 = vpop.f32.mrf.mxu0
    %v1472 = vadd.f32 %v1452, %v1471
    %1473 = vdwg.mxu0
    %v1474 = vadd.f32 %v1472, %v94
    %1476 = vrot.lane.b32.xlu0 %v1399, 32
    %v1477 = vpop.permute.xlu0 %1476
    %v1478 = vsel %vm148, %v1477, 0
    %1480 = vmatpush.msra.mxu0 0.0
    %1481 = vmatpush.msra.mxu0 0.0
    %1482 = vmatpush.msra.mxu0 0.0
    %1483 = vmatpush.msra.mxu0 0.0
    %1484 = vmatpush.msra.mxu0 0.0
    %1485 = vmatpush.msra.mxu0 0.0
    %1486 = vmatpush.msra.mxu0 0.0
    %1487 = vmatpush.msra.mxu0 0.0
    %1488 = vmatpush.msra.mxu0 0.0
    %1489 = vmatpush.msra.mxu0 0.0
    %1490 = vmatpush.msra.mxu0 0.0
    %1491 = vmatpush.msra.mxu0 0.0
    %1492 = vmatpush.msra.mxu0 %v60
    %1493 = vmatpush.msra.mxu0 %v59
    %1494 = vmatpush.msra.mxu0 %v58
    %1495 = vmatpush.msra.mxu0 %v57
    %1496 = vmatmul.f32.gmra.mxu0 %v1478
    %v1497 = vpop.f32.mrf.mxu0
    %v1498 = vadd.f32 0.0, %v1497
    %1499 = vdwg.mxu0
    %1500 = vmatpush.msra.mxu0 0.0
    %1501 = vmatpush.msra.mxu0 0.0
    %1502 = vmatpush.msra.mxu0 0.0
    %1503 = vmatpush.msra.mxu0 0.0
    %1504 = vmatpush.msra.mxu0 0.0
    %1505 = vmatpush.msra.mxu0 0.0
    %1506 = vmatpush.msra.mxu0 0.0
    %1507 = vmatpush.msra.mxu0 0.0
    %1508 = vmatpush.msra.mxu0 0.0
    %1509 = vmatpush.msra.mxu0 0.0
    %1510 = vmatpush.msra.mxu0 0.0
    %1511 = vmatpush.msra.mxu0 0.0
    %1512 = vmatpush.msra.mxu0 %v56
    %1513 = vmatpush.msra.mxu0 %v55
    %1514 = vmatpush.msra.mxu0 %v54
    %1515 = vmatpush.msra.mxu0 %v53
    %1516 = vmatmul.f32.gmra.mxu0 %v1432
    %v1517 = vpop.f32.mrf.mxu0
    %v1518 = vadd.f32 %v1498, %v1517
    %1519 = vdwg.mxu0
    %v1520 = vadd.f32 %v1518, %v95
    %v1521 = vxor.u32 %v1428, 2147483648
    %v1522 = vmul.f32 %v1521, 1.442695
    %v1523 = vpow.pop %v1522
    %v1524 = vadd.f32 %v1523, 1.0
    %v1525 = vrcp.pop %v1524
    %v1526 = vmul.f32 %v1524, %v1525
    %v1527 = vsub.f32 1.0, %v1526
    %v1528 = vmul.f32 %v1525, %v1527
    %v1529 = vadd.f32 %v1525, %v1528
    %vm1530 = vweird.f32 %v1524
    %vm1531 = vweird.f32 %v1525
    %vm1532 = vmor %vm1530, %vm1531
    %v1533 = vsel %vm1532, %v1525, %v1529
    %v1534 = vand.u32 2147483647, %v1524
    %vm1535 = vcmp.eq.f32.partialorder %v1534, 8.507059e+37
    %v1536 = vand.u32 %v1524, 2147483648
    %v1537 = vor.u32 1.1754944e-38, %v1536
    %v1538 = vsel %vm1535, %v1537, %v1533
    %v1539 = vmul.f32 1.0, %v1538
    %v1540 = vtanh.pop %v1428
    %v1542 = vrot.slane %v1322, 4
    %1543 = vrot.lane.b32.xlu0 %v1542, 32
    %v1544 = vpop.permute.xlu0 %1543
    %v1546 = vmul.f32 %v1539, %v1544
    %1548 = vrot.lane.b32.xlu0 %v1540, 64
    %v1549 = vpop.permute.xlu0 %1548
    %v1551 = vmul.f32 %v1539, %v1549
    %1553 = vrot.lane.b32.xlu0 %v1551, 32
    %v1554 = vpop.permute.xlu0 %1553
    %v1556 = vadd.f32 %v1546, %v1554
    %v1557 = vtanh.pop %v1556
    %1559 = vrot.lane.b32.xlu0 %v1557, 64
    %v1560 = vpop.permute.xlu0 %1559
    %v1562 = vmul.f32 %v1539, %v1560
    %v1563 = vsel %vm146, 1, 0
    %1564 = vset.pattern.permute.xlu0 0
    %1565 = vperm.xlu0 %1564, %v1563
    %v1566 = vpop.permute.xlu0 %1565
    %vm1567 = vcmp.eq.s32.totalorder %v1566, 1
    %v1569 = vrot.slane %v1562, 4
    %1570 = vrot.lane.b32.xlu0 %v1569, 32
    %v1571 = vpop.permute.xlu0 %1570
    %v1573 = vsel %vm1567, %v1571, %v1313
    %v1575 = vrot.slane %v1556, 4
    %1576 = vrot.lane.b32.xlu0 %v1575, 96
    %v1577 = vpop.permute.xlu0 %1576
    %v1579 = vsel %vm1567, %v1577, %v1322
    %v1580 = vxor.u32 %v1474, 2147483648
    %v1581 = vmul.f32 %v1580, 1.442695
    %v1582 = vpow.pop %v1581
    %v1583 = vadd.f32 %v1582, 1.0
    %v1584 = vrcp.pop %v1583
    %v1585 = vmul.f32 %v1583, %v1584
    %v1586 = vsub.f32 1.0, %v1585
    %v1587 = vmul.f32 %v1584, %v1586
    %v1588 = vadd.f32 %v1584, %v1587
    %vm1589 = vweird.f32 %v1583
    %vm1590 = vweird.f32 %v1584
    %vm1591 = vmor %vm1589, %vm1590
    %v1592 = vsel %vm1591, %v1584, %v1588
    %v1593 = vand.u32 2147483647, %v1583
    %vm1594 = vcmp.eq.f32.partialorder %v1593, 8.507059e+37
    %v1595 = vand.u32 %v1583, 2147483648
    %v1596 = vor.u32 1.1754944e-38, %v1595
    %v1597 = vsel %vm1594, %v1596, %v1592
    %v1598 = vmul.f32 1.0, %v1597
    %v1599 = vtanh.pop %v1474
    %v1600 = vmul.f32 %v1598, %v1361
    %1602 = vrot.lane.b32.xlu0 %v1599, 64
    %v1603 = vpop.permute.xlu0 %1602
    %v1605 = vmul.f32 %v1598, %v1603
    %1607 = vrot.lane.b32.xlu0 %v1605, 32
    %v1608 = vpop.permute.xlu0 %1607
    %v1610 = vadd.f32 %v1600, %v1608
    %v1611 = vtanh.pop %v1610
    %1613 = vrot.lane.b32.xlu0 %v1611, 64
    %v1614 = vpop.permute.xlu0 %1613
    %v1616 = vmul.f32 %v1598, %v1614
    %v1617 = vsel %vm1306, %v1616, %v1360
    %v1618 = vsel %vm1306, %v1610, %v1361
    %v1619 = vxor.u32 %v1520, 2147483648
    %v1620 = vmul.f32 %v1619, 1.442695
    %v1621 = vpow.pop %v1620
    %v1622 = vadd.f32 %v1621, 1.0
    %v1623 = vrcp.pop %v1622
    %v1624 = vmul.f32 %v1622, %v1623
    %v1625 = vsub.f32 1.0, %v1624
    %v1626 = vmul.f32 %v1623, %v1625
    %v1627 = vadd.f32 %v1623, %v1626
    %vm1628 = vweird.f32 %v1622
    %vm1629 = vweird.f32 %v1623
    %vm1630 = vmor %vm1628, %vm1629
    %v1631 = vsel %vm1630, %v1623, %v1627
    %v1632 = vand.u32 2147483647, %v1622
    %vm1633 = vcmp.eq.f32.partialorder %v1632, 8.507059e+37
    %v1634 = vand.u32 %v1622, 2147483648
    %v1635 = vor.u32 1.1754944e-38, %v1634
    %v1636 = vsel %vm1633, %v1635, %v1631
    %v1637 = vmul.f32 1.0, %v1636
    %v1638 = vtanh.pop %v1520
    %v1639 = vmul.f32 %v1637, %v1400
    %1641 = vrot.lane.b32.xlu0 %v1638, 64
    %v1642 = vpop.permute.xlu0 %1641
    %v1644 = vmul.f32 %v1637, %v1642
    %1646 = vrot.lane.b32.xlu0 %v1644, 32
    %v1647 = vpop.permute.xlu0 %1646
    %v1649 = vadd.f32 %v1639, %v1647
    %v1650 = vtanh.pop %v1649
    %1652 = vrot.lane.b32.xlu0 %v1650, 64
    %v1653 = vpop.permute.xlu0 %1652
    %v1655 = vmul.f32 %v1637, %v1653
    %v1656 = vsel %vm1056, %v1655, %v1399
    %v1657 = vsel %vm1056, %v1649, %v1400
    %v1658 = vsel %vm1056, %v1655, 0.0
    %v1660 = vsel %vm148, %v1573, 0
    %1662 = vmatpush.msra.mxu0 0.0
    %1663 = vmatpush.msra.mxu0 0.0
    %1664 = vmatpush.msra.mxu0 0.0
    %1665 = vmatpush.msra.mxu0 0.0
    %1666 = vmatpush.msra.mxu0 0.0
    %1667 = vmatpush.msra.mxu0 0.0
    %1668 = vmatpush.msra.mxu0 0.0
    %1669 = vmatpush.msra.mxu0 0.0
    %1670 = vmatpush.msra.mxu0 0.0
    %1671 = vmatpush.msra.mxu0 0.0
    %1672 = vmatpush.msra.mxu0 0.0
    %1673 = vmatpush.msra.mxu0 0.0
    %1674 = vmatpush.msra.mxu0 %v44
    %1675 = vmatpush.msra.mxu0 %v43
    %1676 = vmatpush.msra.mxu0 %v42
    %1677 = vmatpush.msra.mxu0 %v41
    %1678 = vmatmul.f32.gmra.mxu0 %v1660
    %v1679 = vpop.f32.mrf.mxu0
    %v1680 = vadd.f32 0.0, %v1679
    %1681 = vdwg.mxu0
    %v1683 = vrot.slane %v1680, 2
    %v1685 = vadd.f32 %v138, %v1683
    %1687 = vrot.lane.b32.xlu0 %v1617, 32
    %v1688 = vpop.permute.xlu0 %1687
    %v1689 = vsel %vm148, %v1688, 0
    %1691 = vmatpush.msra.mxu0 0.0
    %1692 = vmatpush.msra.mxu0 0.0
    %1693 = vmatpush.msra.mxu0 0.0
    %1694 = vmatpush.msra.mxu0 0.0
    %1695 = vmatpush.msra.mxu0 0.0
    %1696 = vmatpush.msra.mxu0 0.0
    %1697 = vmatpush.msra.mxu0 0.0
    %1698 = vmatpush.msra.mxu0 0.0
    %1699 = vmatpush.msra.mxu0 0.0
    %1700 = vmatpush.msra.mxu0 0.0
    %1701 = vmatpush.msra.mxu0 0.0
    %1702 = vmatpush.msra.mxu0 0.0
    %1703 = vmatpush.msra.mxu0 %v52
    %1704 = vmatpush.msra.mxu0 %v51
    %1705 = vmatpush.msra.mxu0 %v50
    %1706 = vmatpush.msra.mxu0 %v49
    %1707 = vmatmul.f32.gmra.mxu0 %v1689
    %v1708 = vpop.f32.mrf.mxu0
    %v1709 = vadd.f32 0.0, %v1708
    %1710 = vdwg.mxu0
    %1711 = vmatpush.msra.mxu0 0.0
    %1712 = vmatpush.msra.mxu0 0.0
    %1713 = vmatpush.msra.mxu0 0.0
    %1714 = vmatpush.msra.mxu0 0.0
    %1715 = vmatpush.msra.mxu0 0.0
    %1716 = vmatpush.msra.mxu0 0.0
    %1717 = vmatpush.msra.mxu0 0.0
    %1718 = vmatpush.msra.mxu0 0.0
    %1719 = vmatpush.msra.mxu0 0.0
    %1720 = vmatpush.msra.mxu0 0.0
    %1721 = vmatpush.msra.mxu0 0.0
    %1722 = vmatpush.msra.mxu0 0.0
    %1723 = vmatpush.msra.mxu0 %v48
    %1724 = vmatpush.msra.mxu0 %v47
    %1725 = vmatpush.msra.mxu0 %v46
    %1726 = vmatpush.msra.mxu0 %v45
    %1727 = vmatmul.f32.gmra.mxu0 %v1660
    %v1728 = vpop.f32.mrf.mxu0
    %v1729 = vadd.f32 %v1709, %v1728
    %1730 = vdwg.mxu0
    %v1731 = vadd.f32 %v1729, %v94
    %1733 = vrot.lane.b32.xlu0 %v1656, 32
    %v1734 = vpop.permute.xlu0 %1733
    %v1735 = vsel %vm148, %v1734, 0
    %1737 = vmatpush.msra.mxu0 0.0
    %1738 = vmatpush.msra.mxu0 0.0
    %1739 = vmatpush.msra.mxu0 0.0
    %1740 = vmatpush.msra.mxu0 0.0
    %1741 = vmatpush.msra.mxu0 0.0
    %1742 = vmatpush.msra.mxu0 0.0
    %1743 = vmatpush.msra.mxu0 0.0
    %1744 = vmatpush.msra.mxu0 0.0
    %1745 = vmatpush.msra.mxu0 0.0
    %1746 = vmatpush.msra.mxu0 0.0
    %1747 = vmatpush.msra.mxu0 0.0
    %1748 = vmatpush.msra.mxu0 0.0
    %1749 = vmatpush.msra.mxu0 %v60
    %1750 = vmatpush.msra.mxu0 %v59
    %1751 = vmatpush.msra.mxu0 %v58
    %1752 = vmatpush.msra.mxu0 %v57
    %1753 = vmatmul.f32.gmra.mxu0 %v1735
    %v1754 = vpop.f32.mrf.mxu0
    %v1755 = vadd.f32 0.0, %v1754
    %1756 = vdwg.mxu0
    %1757 = vmatpush.msra.mxu0 0.0
    %1758 = vmatpush.msra.mxu0 0.0
    %1759 = vmatpush.msra.mxu0 0.0
    %1760 = vmatpush.msra.mxu0 0.0
    %1761 = vmatpush.msra.mxu0 0.0
    %1762 = vmatpush.msra.mxu0 0.0
    %1763 = vmatpush.msra.mxu0 0.0
    %1764 = vmatpush.msra.mxu0 0.0
    %1765 = vmatpush.msra.mxu0 0.0
    %1766 = vmatpush.msra.mxu0 0.0
    %1767 = vmatpush.msra.mxu0 0.0
    %1768 = vmatpush.msra.mxu0 0.0
    %1769 = vmatpush.msra.mxu0 %v56
    %1770 = vmatpush.msra.mxu0 %v55
    %1771 = vmatpush.msra.mxu0 %v54
    %1772 = vmatpush.msra.mxu0 %v53
    %1773 = vmatmul.f32.gmra.mxu0 %v1689
    %v1774 = vpop.f32.mrf.mxu0
    %v1775 = vadd.f32 %v1755, %v1774
    %1776 = vdwg.mxu0
    %v1777 = vadd.f32 %v1775, %v95
    %v1778 = vxor.u32 %v1685, 2147483648
    %v1779 = vmul.f32 %v1778, 1.442695
    %v1780 = vpow.pop %v1779
    %v1781 = vadd.f32 %v1780, 1.0
    %v1782 = vrcp.pop %v1781
    %v1783 = vmul.f32 %v1781, %v1782
    %v1784 = vsub.f32 1.0, %v1783
    %v1785 = vmul.f32 %v1782, %v1784
    %v1786 = vadd.f32 %v1782, %v1785
    %vm1787 = vweird.f32 %v1781
    %vm1788 = vweird.f32 %v1782
    %vm1789 = vmor %vm1787, %vm1788
    %v1790 = vsel %vm1789, %v1782, %v1786
    %v1791 = vand.u32 2147483647, %v1781
    %vm1792 = vcmp.eq.f32.partialorder %v1791, 8.507059e+37
    %v1793 = vand.u32 %v1781, 2147483648
    %v1794 = vor.u32 1.1754944e-38, %v1793
    %v1795 = vsel %vm1792, %v1794, %v1790
    %v1796 = vmul.f32 1.0, %v1795
    %v1797 = vtanh.pop %v1685
    %v1799 = vrot.slane %v1579, 2
    %1800 = vrot.lane.b32.xlu0 %v1799, 32
    %v1801 = vpop.permute.xlu0 %1800
    %v1803 = vmul.f32 %v1796, %v1801
    %1805 = vrot.lane.b32.xlu0 %v1797, 64
    %v1806 = vpop.permute.xlu0 %1805
    %v1808 = vmul.f32 %v1796, %v1806
    %1810 = vrot.lane.b32.xlu0 %v1808, 32
    %v1811 = vpop.permute.xlu0 %1810
    %v1813 = vadd.f32 %v1803, %v1811
    %v1814 = vtanh.pop %v1813
    %1816 = vrot.lane.b32.xlu0 %v1814, 64
    %v1817 = vpop.permute.xlu0 %1816
    %v1819 = vmul.f32 %v1796, %v1817
    %v1820 = vsel %vm147, 1, 0
    %1821 = vset.pattern.permute.xlu0 0
    %1822 = vperm.xlu0 %1821, %v1820
    %v1823 = vpop.permute.xlu0 %1822
    %vm1824 = vcmp.eq.s32.totalorder %v1823, 1
    %v1826 = vrot.slane %v1819, 6
    %1827 = vrot.lane.b32.xlu0 %v1826, 32
    %v1828 = vpop.permute.xlu0 %1827
    %v1830 = vsel %vm1824, %v1828, %v1573
    %v1831 = vxor.u32 %v1731, 2147483648
    %v1832 = vmul.f32 %v1831, 1.442695
    %v1833 = vpow.pop %v1832
    %v1834 = vadd.f32 %v1833, 1.0
    %v1835 = vrcp.pop %v1834
    %v1836 = vmul.f32 %v1834, %v1835
    %v1837 = vsub.f32 1.0, %v1836
    %v1838 = vmul.f32 %v1835, %v1837
    %v1839 = vadd.f32 %v1835, %v1838
    %vm1840 = vweird.f32 %v1834
    %vm1841 = vweird.f32 %v1835
    %vm1842 = vmor %vm1840, %vm1841
    %v1843 = vsel %vm1842, %v1835, %v1839
    %v1844 = vand.u32 2147483647, %v1834
    %vm1845 = vcmp.eq.f32.partialorder %v1844, 8.507059e+37
    %v1846 = vand.u32 %v1834, 2147483648
    %v1847 = vor.u32 1.1754944e-38, %v1846
    %v1848 = vsel %vm1845, %v1847, %v1843
    %v1849 = vmul.f32 1.0, %v1848
    %v1850 = vtanh.pop %v1731
    %v1851 = vmul.f32 %v1849, %v1618
    %1853 = vrot.lane.b32.xlu0 %v1850, 64
    %v1854 = vpop.permute.xlu0 %1853
    %v1856 = vmul.f32 %v1849, %v1854
    %1858 = vrot.lane.b32.xlu0 %v1856, 32
    %v1859 = vpop.permute.xlu0 %1858
    %v1861 = vadd.f32 %v1851, %v1859
    %v1862 = vtanh.pop %v1861
    %1864 = vrot.lane.b32.xlu0 %v1862, 64
    %v1865 = vpop.permute.xlu0 %1864
    %v1867 = vmul.f32 %v1849, %v1865
    %v1868 = vsel %vm1567, %v1867, %v1617
    %v1869 = vsel %vm1567, %v1861, %v1618
    %v1870 = vxor.u32 %v1777, 2147483648
    %v1871 = vmul.f32 %v1870, 1.442695
    %v1872 = vpow.pop %v1871
    %v1873 = vadd.f32 %v1872, 1.0
    %v1874 = vrcp.pop %v1873
    %v1875 = vmul.f32 %v1873, %v1874
    %v1876 = vsub.f32 1.0, %v1875
    %v1877 = vmul.f32 %v1874, %v1876
    %v1878 = vadd.f32 %v1874, %v1877
    %vm1879 = vweird.f32 %v1873
    %vm1880 = vweird.f32 %v1874
    %vm1881 = vmor %vm1879, %vm1880
    %v1882 = vsel %vm1881, %v1874, %v1878
    %v1883 = vand.u32 2147483647, %v1873
    %vm1884 = vcmp.eq.f32.partialorder %v1883, 8.507059e+37
    %v1885 = vand.u32 %v1873, 2147483648
    %v1886 = vor.u32 1.1754944e-38, %v1885
    %v1887 = vsel %vm1884, %v1886, %v1882
    %v1888 = vmul.f32 1.0, %v1887
    %v1889 = vtanh.pop %v1777
    %v1890 = vmul.f32 %v1888, %v1657
    %1892 = vrot.lane.b32.xlu0 %v1889, 64
    %v1893 = vpop.permute.xlu0 %1892
    %v1895 = vmul.f32 %v1888, %v1893
    %1897 = vrot.lane.b32.xlu0 %v1895, 32
    %v1898 = vpop.permute.xlu0 %1897
    %v1900 = vadd.f32 %v1890, %v1898
    %v1901 = vtanh.pop %v1900
    %1903 = vrot.lane.b32.xlu0 %v1901, 64
    %v1904 = vpop.permute.xlu0 %1903
    %v1906 = vmul.f32 %v1888, %v1904
    %v1907 = vsel %vm1306, %v1906, %v1656
    %v1908 = vsel %vm1306, %v1900, %v1657
    %v1909 = vsel %vm1306, %v1906, 0.0
    %1911 = vrot.lane.b32.xlu0 %v1868, 32
    %v1912 = vpop.permute.xlu0 %1911
    %v1913 = vsel %vm148, %v1912, 0
    %1915 = vmatpush.msra.mxu0 0.0
    %1916 = vmatpush.msra.mxu0 0.0
    %1917 = vmatpush.msra.mxu0 0.0
    %1918 = vmatpush.msra.mxu0 0.0
    %1919 = vmatpush.msra.mxu0 0.0
    %1920 = vmatpush.msra.mxu0 0.0
    %1921 = vmatpush.msra.mxu0 0.0
    %1922 = vmatpush.msra.mxu0 0.0
    %1923 = vmatpush.msra.mxu0 0.0
    %1924 = vmatpush.msra.mxu0 0.0
    %1925 = vmatpush.msra.mxu0 0.0
    %1926 = vmatpush.msra.mxu0 0.0
    %1927 = vmatpush.msra.mxu0 %v52
    %1928 = vmatpush.msra.mxu0 %v51
    %1929 = vmatpush.msra.mxu0 %v50
    %1930 = vmatpush.msra.mxu0 %v49
    %1931 = vmatmul.f32.gmra.mxu0 %v1913
    %v1932 = vpop.f32.mrf.mxu0
    %v1933 = vadd.f32 0.0, %v1932
    %1934 = vdwg.mxu0
    %v1936 = vsel %vm148, %v1830, 0
    %1938 = vmatpush.msra.mxu0 0.0
    %1939 = vmatpush.msra.mxu0 0.0
    %1940 = vmatpush.msra.mxu0 0.0
    %1941 = vmatpush.msra.mxu0 0.0
    %1942 = vmatpush.msra.mxu0 0.0
    %1943 = vmatpush.msra.mxu0 0.0
    %1944 = vmatpush.msra.mxu0 0.0
    %1945 = vmatpush.msra.mxu0 0.0
    %1946 = vmatpush.msra.mxu0 0.0
    %1947 = vmatpush.msra.mxu0 0.0
    %1948 = vmatpush.msra.mxu0 0.0
    %1949 = vmatpush.msra.mxu0 0.0
    %1950 = vmatpush.msra.mxu0 %v48
    %1951 = vmatpush.msra.mxu0 %v47
    %1952 = vmatpush.msra.mxu0 %v46
    %1953 = vmatpush.msra.mxu0 %v45
    %1954 = vmatmul.f32.gmra.mxu0 %v1936
    %v1955 = vpop.f32.mrf.mxu0
    %v1956 = vadd.f32 %v1933, %v1955
    %1957 = vdwg.mxu0
    %v1958 = vadd.f32 %v1956, %v94
    %1960 = vrot.lane.b32.xlu0 %v1907, 32
    %v1961 = vpop.permute.xlu0 %1960
    %v1962 = vsel %vm148, %v1961, 0
    %1964 = vmatpush.msra.mxu0 0.0
    %1965 = vmatpush.msra.mxu0 0.0
    %1966 = vmatpush.msra.mxu0 0.0
    %1967 = vmatpush.msra.mxu0 0.0
    %1968 = vmatpush.msra.mxu0 0.0
    %1969 = vmatpush.msra.mxu0 0.0
    %1970 = vmatpush.msra.mxu0 0.0
    %1971 = vmatpush.msra.mxu0 0.0
    %1972 = vmatpush.msra.mxu0 0.0
    %1973 = vmatpush.msra.mxu0 0.0
    %1974 = vmatpush.msra.mxu0 0.0
    %1975 = vmatpush.msra.mxu0 0.0
    %1976 = vmatpush.msra.mxu0 %v60
    %1977 = vmatpush.msra.mxu0 %v59
    %1978 = vmatpush.msra.mxu0 %v58
    %1979 = vmatpush.msra.mxu0 %v57
    %1980 = vmatmul.f32.gmra.mxu0 %v1962
    %v1981 = vpop.f32.mrf.mxu0
    %v1982 = vadd.f32 0.0, %v1981
    %1983 = vdwg.mxu0
    %1984 = vmatpush.msra.mxu0 0.0
    %1985 = vmatpush.msra.mxu0 0.0
    %1986 = vmatpush.msra.mxu0 0.0
    %1987 = vmatpush.msra.mxu0 0.0
    %1988 = vmatpush.msra.mxu0 0.0
    %1989 = vmatpush.msra.mxu0 0.0
    %1990 = vmatpush.msra.mxu0 0.0
    %1991 = vmatpush.msra.mxu0 0.0
    %1992 = vmatpush.msra.mxu0 0.0
    %1993 = vmatpush.msra.mxu0 0.0
    %1994 = vmatpush.msra.mxu0 0.0
    %1995 = vmatpush.msra.mxu0 0.0
    %1996 = vmatpush.msra.mxu0 %v56
    %1997 = vmatpush.msra.mxu0 %v55
    %1998 = vmatpush.msra.mxu0 %v54
    %1999 = vmatpush.msra.mxu0 %v53
    %2000 = vmatmul.f32.gmra.mxu0 %v1913
    %v2001 = vpop.f32.mrf.mxu0
    %v2002 = vadd.f32 %v1982, %v2001
    %2003 = vdwg.mxu0
    %v2004 = vadd.f32 %v2002, %v95
    %v2005 = vxor.u32 %v1958, 2147483648
    %v2006 = vmul.f32 %v2005, 1.442695
    %v2007 = vpow.pop %v2006
    %v2008 = vadd.f32 %v2007, 1.0
    %v2009 = vrcp.pop %v2008
    %v2010 = vmul.f32 %v2008, %v2009
    %v2011 = vsub.f32 1.0, %v2010
    %v2012 = vmul.f32 %v2009, %v2011
    %v2013 = vadd.f32 %v2009, %v2012
    %vm2014 = vweird.f32 %v2008
    %vm2015 = vweird.f32 %v2009
    %vm2016 = vmor %vm2014, %vm2015
    %v2017 = vsel %vm2016, %v2009, %v2013
    %v2018 = vand.u32 2147483647, %v2008
    %vm2019 = vcmp.eq.f32.partialorder %v2018, 8.507059e+37
    %v2020 = vand.u32 %v2008, 2147483648
    %v2021 = vor.u32 1.1754944e-38, %v2020
    %v2022 = vsel %vm2019, %v2021, %v2017
    %v2023 = vmul.f32 1.0, %v2022
    %v2024 = vtanh.pop %v1958
    %v2025 = vmul.f32 %v2023, %v1869
    %2027 = vrot.lane.b32.xlu0 %v2024, 64
    %v2028 = vpop.permute.xlu0 %2027
    %v2030 = vmul.f32 %v2023, %v2028
    %2032 = vrot.lane.b32.xlu0 %v2030, 32
    %v2033 = vpop.permute.xlu0 %2032
    %v2035 = vadd.f32 %v2025, %v2033
    %v2036 = vtanh.pop %v2035
    %2038 = vrot.lane.b32.xlu0 %v2036, 64
    %v2039 = vpop.permute.xlu0 %2038
    %v2041 = vmul.f32 %v2023, %v2039
    %v2042 = vsel %vm1824, %v2041, %v1868
    %v2043 = vxor.u32 %v2004, 2147483648
    %v2044 = vmul.f32 %v2043, 1.442695
    %v2045 = vpow.pop %v2044
    %v2046 = vadd.f32 %v2045, 1.0
    %v2047 = vrcp.pop %v2046
    %v2048 = vmul.f32 %v2046, %v2047
    %v2049 = vsub.f32 1.0, %v2048
    %v2050 = vmul.f32 %v2047, %v2049
    %v2051 = vadd.f32 %v2047, %v2050
    %vm2052 = vweird.f32 %v2046
    %vm2053 = vweird.f32 %v2047
    %vm2054 = vmor %vm2052, %vm2053
    %v2055 = vsel %vm2054, %v2047, %v2051
    %v2056 = vand.u32 2147483647, %v2046
    %vm2057 = vcmp.eq.f32.partialorder %v2056, 8.507059e+37
    %v2058 = vand.u32 %v2046, 2147483648
    %v2059 = vor.u32 1.1754944e-38, %v2058
    %v2060 = vsel %vm2057, %v2059, %v2055
    %v2061 = vmul.f32 1.0, %v2060
    %v2062 = vtanh.pop %v2004
    %v2063 = vmul.f32 %v2061, %v1908
    %2065 = vrot.lane.b32.xlu0 %v2062, 64
    %v2066 = vpop.permute.xlu0 %2065
    %v2068 = vmul.f32 %v2061, %v2066
    %2070 = vrot.lane.b32.xlu0 %v2068, 32
    %v2071 = vpop.permute.xlu0 %2070
    %v2073 = vadd.f32 %v2063, %v2071
    %v2074 = vtanh.pop %v2073
    %2076 = vrot.lane.b32.xlu0 %v2074, 64
    %v2077 = vpop.permute.xlu0 %2076
    %v2079 = vmul.f32 %v2061, %v2077
    %v2080 = vsel %vm1567, %v2079, %v1907
    %v2081 = vsel %vm1567, %v2073, %v1908
    %v2082 = vsel %vm1567, %v2079, 0.0
    %2084 = vrot.lane.b32.xlu0 %v2080, 32
    %v2085 = vpop.permute.xlu0 %2084
    %v2086 = vsel %vm148, %v2085, 0
    %2088 = vmatpush.msra.mxu0 0.0
    %2089 = vmatpush.msra.mxu0 0.0
    %2090 = vmatpush.msra.mxu0 0.0
    %2091 = vmatpush.msra.mxu0 0.0
    %2092 = vmatpush.msra.mxu0 0.0
    %2093 = vmatpush.msra.mxu0 0.0
    %2094 = vmatpush.msra.mxu0 0.0
    %2095 = vmatpush.msra.mxu0 0.0
    %2096 = vmatpush.msra.mxu0 0.0
    %2097 = vmatpush.msra.mxu0 0.0
    %2098 = vmatpush.msra.mxu0 0.0
    %2099 = vmatpush.msra.mxu0 0.0
    %2100 = vmatpush.msra.mxu0 %v60
    %2101 = vmatpush.msra.mxu0 %v59
    %2102 = vmatpush.msra.mxu0 %v58
    %2103 = vmatpush.msra.mxu0 %v57
    %2104 = vmatmul.f32.gmra.mxu0 %v2086
    %v2105 = vpop.f32.mrf.mxu0
    %v2106 = vadd.f32 0.0, %v2105
    %2107 = vdwg.mxu0
    %2109 = vrot.lane.b32.xlu0 %v2042, 32
    %v2110 = vpop.permute.xlu0 %2109
    %v2111 = vsel %vm148, %v2110, 0
    %2113 = vmatpush.msra.mxu0 0.0
    %2114 = vmatpush.msra.mxu0 0.0
    %2115 = vmatpush.msra.mxu0 0.0
    %2116 = vmatpush.msra.mxu0 0.0
    %2117 = vmatpush.msra.mxu0 0.0
    %2118 = vmatpush.msra.mxu0 0.0
    %2119 = vmatpush.msra.mxu0 0.0
    %2120 = vmatpush.msra.mxu0 0.0
    %2121 = vmatpush.msra.mxu0 0.0
    %2122 = vmatpush.msra.mxu0 0.0
    %2123 = vmatpush.msra.mxu0 0.0
    %2124 = vmatpush.msra.mxu0 0.0
    %2125 = vmatpush.msra.mxu0 %v56
    %2126 = vmatpush.msra.mxu0 %v55
    %2127 = vmatpush.msra.mxu0 %v54
    %2128 = vmatpush.msra.mxu0 %v53
    %2129 = vmatmul.f32.gmra.mxu0 %v2111
    %v2130 = vpop.f32.mrf.mxu0
    %v2131 = vadd.f32 %v2106, %v2130
    %2132 = vdwg.mxu0
    %v2133 = vadd.f32 %v2131, %v95
    %v2134 = vxor.u32 %v2133, 2147483648
    %v2135 = vmul.f32 %v2134, 1.442695
    %v2136 = vpow.pop %v2135
    %v2137 = vadd.f32 %v2136, 1.0
    %v2138 = vrcp.pop %v2137
    %v2139 = vmul.f32 %v2137, %v2138
    %v2140 = vsub.f32 1.0, %v2139
    %v2141 = vmul.f32 %v2138, %v2140
    %v2142 = vadd.f32 %v2138, %v2141
    %vm2143 = vweird.f32 %v2137
    %vm2144 = vweird.f32 %v2138
    %vm2145 = vmor %vm2143, %vm2144
    %v2146 = vsel %vm2145, %v2138, %v2142
    %v2147 = vand.u32 2147483647, %v2137
    %vm2148 = vcmp.eq.f32.partialorder %v2147, 8.507059e+37
    %v2149 = vand.u32 %v2137, 2147483648
    %v2150 = vor.u32 1.1754944e-38, %v2149
    %v2151 = vsel %vm2148, %v2150, %v2146
    %v2152 = vmul.f32 1.0, %v2151
    %v2153 = vtanh.pop %v2133
    %v2154 = vmul.f32 %v2152, %v2081
    %2156 = vrot.lane.b32.xlu0 %v2153, 64
    %v2157 = vpop.permute.xlu0 %2156
    %v2159 = vmul.f32 %v2152, %v2157
    %2161 = vrot.lane.b32.xlu0 %v2159, 32
    %v2162 = vpop.permute.xlu0 %2161
    %v2164 = vadd.f32 %v2154, %v2162
    %v2165 = vtanh.pop %v2164
    %2167 = vrot.lane.b32.xlu0 %v2165, 64
    %v2168 = vpop.permute.xlu0 %2167
    %v2170 = vmul.f32 %v2152, %v2168
    %v2171 = vsel %vm1824, %v2170, 0.0
    %v2173 = vrot.slane %v894, 6
    %v2176 = vrot.slane %v1140, 4
    %v2179 = vrot.slane %v1401, 2
    %v2182 = vrot.slane %v1909, 6
    %v2185 = vrot.slane %v2082, 4
    %v2188 = vrot.slane %v2171, 2
    %vm2190 = vcmask 1041408
    %v2191 = vsel %vm2190, %v636, %v2173
    %vm2192 = vcmask 1043456
    %v2193 = vsel %vm2192, %v2191, %v2176
    %vm2194 = vcmask 1045504
    %v2195 = vsel %vm2194, %v2193, %v2179
    %v2196 = vsel %vm2190, %v1658, %v2182
    %v2197 = vsel %vm2192, %v2196, %v2185
    %v2198 = vsel %vm2194, %v2197, %v2188
    %2201 = vrot.lane.b32.xlu0 %v2195, 32
    %v2202 = vpop.permute.xlu0 %2201
    %2203 = vrot.lane.b32.xlu0 %v2198, 32
    %v2204 = vpop.permute.xlu0 %2203
    %v2205 = vsel %vm148, %v2202, 0
    %v2207 = vsel %vm148, %v2204, 0
    %2209 = vmatpush.msra.mxu0 0.0
    %2210 = vmatpush.msra.mxu0 0.0
    %2211 = vmatpush.msra.mxu0 0.0
    %2212 = vmatpush.msra.mxu0 0.0
    %2213 = vmatpush.msra.mxu0 0.0
    %2214 = vmatpush.msra.mxu0 0.0
    %2215 = vmatpush.msra.mxu0 0.0
    %2216 = vmatpush.msra.mxu0 0.0
    %2217 = vmatpush.msra.mxu0 0.0
    %2218 = vmatpush.msra.mxu0 0.0
    %2219 = vmatpush.msra.mxu0 0.0
    %2220 = vmatpush.msra.mxu0 0.0
    %2221 = vmatpush.msra.mxu0 %v65
    %2222 = vmatpush.msra.mxu0 %v64
    %2223 = vmatpush.msra.mxu0 %v63
    %2224 = vmatpush.msra.mxu0 %v62
    %2225 = vmatmul.f32.gmra.mxu0 %v2205
    %v2226 = vpop.f32.mrf.mxu0
    %v2227 = vadd.f32 0.0, %v2226
    %2228 = vmatmul.f32.gmra.mxu0 %v2207
    %v2229 = vpop.f32.mrf.mxu0
    %v2230 = vadd.f32 0.0, %v2229
    %2231 = vdwg.mxu0
    %v2232 = vtanh.pop %v2227
    %v2233 = vtanh.pop %v2230
    %vm2234 = vcmask 130048
    %v2236 = vsel %vm2234, %v2232, 0
    %v2239 = vsel %vm2234, %v2233, 0
    %2241 = vmatpush.msra.mxu0 0.0
    %2242 = vmatpush.msra.mxu0 0.0
    %2243 = vmatpush.msra.mxu0 0.0
    %2244 = vmatpush.msra.mxu0 0.0
    %2245 = vmatpush.msra.mxu0 0.0
    %2246 = vmatpush.msra.mxu0 0.0
    %2247 = vmatpush.msra.mxu0 0.0
    %2248 = vmatpush.msra.mxu0 0.0
    %2249 = vmatpush.msra.mxu0 0.0
    %2250 = vmatpush.msra.mxu0 0.0
    %2251 = vmatpush.msra.mxu0 0.0
    %2252 = vmatpush.msra.mxu0 0.0
    %2253 = vmatpush.msra.mxu0 0.0
    %2254 = vmatpush.msra.mxu0 0.0
    %2255 = vmatpush.msra.mxu0 %v67
    %2256 = vmatpush.msra.mxu0 %v66
    %2257 = vmatmul.f32.gmra.mxu0 %v2236
    %v2258 = vpop.f32.mrf.mxu0
    %v2259 = vadd.f32 0.0, %v2258
    %2260 = vmatmul.f32.gmra.mxu0 %v2239
    %v2261 = vpop.f32.mrf.mxu0
    %v2262 = vadd.f32 0.0, %v2261
    %2263 = vdwg.mxu0
    %v2265 = vrot.slane %v2259, 2
    %v2267 = vrot.slane %v2259, 4
    %v2269 = vrot.slane %v2259, 6
    %v2272 = vrot.slane %v2262, 2
    %v2274 = vrot.slane %v2262, 4
    %v2276 = vrot.slane %v2262, 6
    %vm2278 = vcmask 25600
    %v2279 = vsel %vm2278, %v2259, -inf
    %v2280 = vsel %vm2278, %v2265, -inf
    %v2281 = vsel %vm2278, %v2267, -inf
    %v2282 = vsel %vm2278, %v2269, -inf
    %v2283 = vsel %vm2278, %v2262, -inf
    %v2284 = vmax.f32 %v2279, %v2283
    %v2285 = vsel %vm2278, %v2272, -inf
    %v2286 = vmax.f32 %v2280, %v2285
    %v2287 = vsel %vm2278, %v2274, -inf
    %v2288 = vmax.f32 %v2281, %v2287
    %v2289 = vsel %vm2278, %v2276, -inf
    %v2290 = vmax.f32 %v2282, %v2289
    %v2291 = vmax.f32 %v2284, %v2286
    %v2292 = vmax.f32 %v2288, %v2290
    %v2293 = vmax.f32 %v2291, %v2292
    %v2294 = vsub.f32 %v2259, %v2293
    %v2295 = vsub.f32 %v2265, %v2293
    %v2296 = vsub.f32 %v2267, %v2293
    %v2297 = vsub.f32 %v2269, %v2293
    %v2298 = vsub.f32 %v2262, %v2293
    %v2299 = vsub.f32 %v2272, %v2293
    %v2300 = vsub.f32 %v2274, %v2293
    %v2301 = vsub.f32 %v2276, %v2293
    %v2302 = vmul.f32 %v2294, 1.442695
    %v2303 = vpow.pop %v2302
    %v2304 = vmul.f32 %v2295, 1.442695
    %v2305 = vpow.pop %v2304
    %v2306 = vmul.f32 %v2296, 1.442695
    %v2307 = vpow.pop %v2306
    %v2308 = vmul.f32 %v2297, 1.442695
    %v2309 = vpow.pop %v2308
    %v2310 = vmul.f32 %v2298, 1.442695
    %v2311 = vpow.pop %v2310
    %v2312 = vmul.f32 %v2299, 1.442695
    %v2313 = vpow.pop %v2312
    %v2314 = vmul.f32 %v2300, 1.442695
    %v2315 = vpow.pop %v2314
    %v2316 = vmul.f32 %v2301, 1.442695
    %v2317 = vpow.pop %v2316
    %v2318 = vsel %vm2278, %v2303, 0.0
    %v2319 = vsel %vm2278, %v2305, 0.0
    %v2320 = vadd.f32 %v2318, %v2319
    %v2321 = vsel %vm2278, %v2307, 0.0
    %v2322 = vadd.f32 %v2320, %v2321
    %v2323 = vsel %vm2278, %v2309, 0.0
    %v2324 = vadd.f32 %v2322, %v2323
    %v2325 = vsel %vm2278, %v2311, 0.0
    %v2326 = vadd.f32 %v2324, %v2325
    %v2327 = vsel %vm2278, %v2313, 0.0
    %v2328 = vadd.f32 %v2326, %v2327
    %v2329 = vsel %vm2278, %v2315, 0.0
    %v2330 = vadd.f32 %v2328, %v2329
    %v2331 = vsel %vm2278, %v2317, 0.0
    %v2332 = vadd.f32 %v2330, %v2331
    %v2333 = vrcp.pop %v2332
    %v2334 = vmul.f32 %v2303, %v2333
    %v2335 = vmul.f32 %v2305, %v2333
    %v2336 = vmul.f32 %v2307, %v2333
    %v2337 = vmul.f32 %v2309, %v2333
    %v2338 = vmul.f32 %v2311, %v2333
    %v2339 = vmul.f32 %v2313, %v2333
    %v2340 = vmul.f32 %v2315, %v2333
    %v2341 = vmul.f32 %v2317, %v2333
    %2343 = vset.pattern.permute.xlu0 0
    %2344 = vperm.xlu0 %2343, %v2334
    %v2345 = vpop.permute.xlu0 %2344
    %2348 = vset.pattern.permute.xlu0 0
    %2349 = vperm.xlu0 %2348, %v2335
    %v2350 = vpop.permute.xlu0 %2349
    %2353 = vset.pattern.permute.xlu0 0
    %2354 = vperm.xlu0 %2353, %v2336
    %v2355 = vpop.permute.xlu0 %2354
    %2358 = vset.pattern.permute.xlu0 0
    %2359 = vperm.xlu0 %2358, %v2337
    %v2360 = vpop.permute.xlu0 %2359
    %2363 = vset.pattern.permute.xlu0 0
    %2364 = vperm.xlu0 %2363, %v2338
    %v2365 = vpop.permute.xlu0 %2364
    %2368 = vset.pattern.permute.xlu0 0
    %2369 = vperm.xlu0 %2368, %v2339
    %v2370 = vpop.permute.xlu0 %2369
    %2373 = vset.pattern.permute.xlu0 0
    %2374 = vperm.xlu0 %2373, %v2340
    %v2375 = vpop.permute.xlu0 %2374
    %2378 = vset.pattern.permute.xlu0 0
    %2379 = vperm.xlu0 %2378, %v2341
    %v2380 = vpop.permute.xlu0 %2379
    %v2382 = vmul.f32 %v2345, %v636
    %v2383 = vmul.f32 %v2350, %v894
    %v2384 = vmul.f32 %v2355, %v1140
    %v2385 = vmul.f32 %v2360, %v1401
    %v2386 = vmul.f32 %v2365, %v1658
    %v2387 = vmul.f32 %v2370, %v1909
    %v2388 = vmul.f32 %v2375, %v2082
    %v2389 = vmul.f32 %v2380, %v2171
    %vm2390 = vcmask 1042176
    %v2391 = vsel %vm2390, %v2382, 0.0
    %v2392 = vsel %vm2390, %v2383, 0.0
    %v2393 = vadd.f32 %v2391, %v2392
    %v2394 = vsel %vm2390, %v2384, 0.0
    %v2395 = vadd.f32 %v2393, %v2394
    %v2396 = vsel %vm2390, %v2385, 0.0
    %v2397 = vadd.f32 %v2395, %v2396
    %v2398 = vsel %vm2390, %v2386, 0.0
    %v2399 = vadd.f32 %v2397, %v2398
    %v2400 = vsel %vm2390, %v2387, 0.0
    %v2401 = vadd.f32 %v2399, %v2400
    %v2402 = vsel %vm2390, %v2388, 0.0
    %v2403 = vadd.f32 %v2401, %v2402
    %v2404 = vsel %vm2390, %v2389, 0.0
    %v2405 = vadd.f32 %v2403, %v2404
    %v2406 = vmul.f32 %v2345, %v2334
    %v2407 = vmul.f32 %v2350, %v2335
    %v2408 = vmul.f32 %v2355, %v2336
    %v2409 = vmul.f32 %v2360, %v2337
    %v2410 = vmul.f32 %v2365, %v2338
    %v2411 = vmul.f32 %v2370, %v2339
    %v2412 = vmul.f32 %v2375, %v2340
    %v2413 = vmul.f32 %v2380, %v2341
    %v2414 = vsel %vm2278, %v2406, 0.0
    %v2415 = vsel %vm2278, %v2407, 0.0
    %v2416 = vadd.f32 %v2414, %v2415
    %v2417 = vsel %vm2278, %v2408, 0.0
    %v2418 = vadd.f32 %v2416, %v2417
    %v2419 = vsel %vm2278, %v2409, 0.0
    %v2420 = vadd.f32 %v2418, %v2419
    %v2421 = vsel %vm2278, %v2410, 0.0
    %v2422 = vadd.f32 %v2420, %v2421
    %v2423 = vsel %vm2278, %v2411, 0.0
    %v2424 = vadd.f32 %v2422, %v2423
    %v2425 = vsel %vm2278, %v2412, 0.0
    %v2426 = vadd.f32 %v2424, %v2425
    %v2427 = vsel %vm2278, %v2413, 0.0
    %v2428 = vadd.f32 %v2426, %v2427
    %vm2429 = vcmp.eq.s32.totalorder %v97, 0
    %v2430 = vsel %vm2429, 1, 0
    %v2431 = vcvt.s32.f32 %v2430
    %v2432 = vsub.f32 %v2428, %v2431
    %v2433 = vmul.f32 %v2432, %v2432
    %v2434 = vsel %vm2278, %v2433, 0.0
    %2435 = vadd.xlane.f32.xlu0 %v2434
    %v2436 = vpop.xlane.xlu0 %2435
    %v2437 = vadd.f32 %v2436, 0.0
    %2438 = vset.pattern.permute.xlu0 1
    %2439 = vperm.xlu0 %2438, %v2334
    %v2440 = vpop.permute.xlu0 %2439
    %2442 = vset.pattern.permute.xlu0 1
    %2443 = vperm.xlu0 %2442, %v2335
    %v2444 = vpop.permute.xlu0 %2443
    %2446 = vset.pattern.permute.xlu0 1
    %2447 = vperm.xlu0 %2446, %v2336
    %v2448 = vpop.permute.xlu0 %2447
    %2450 = vset.pattern.permute.xlu0 1
    %2451 = vperm.xlu0 %2450, %v2337
    %v2452 = vpop.permute.xlu0 %2451
    %2454 = vset.pattern.permute.xlu0 1
    %2455 = vperm.xlu0 %2454, %v2338
    %v2456 = vpop.permute.xlu0 %2455
    %2458 = vset.pattern.permute.xlu0 1
    %2459 = vperm.xlu0 %2458, %v2339
    %v2460 = vpop.permute.xlu0 %2459
    %2462 = vset.pattern.permute.xlu0 1
    %2463 = vperm.xlu0 %2462, %v2340
    %v2464 = vpop.permute.xlu0 %2463
    %2466 = vset.pattern.permute.xlu0 1
    %2467 = vperm.xlu0 %2466, %v2341
    %v2468 = vpop.permute.xlu0 %2467
    %v2470 = vmul.f32 %v2440, %v636
    %v2471 = vmul.f32 %v2444, %v894
    %v2472 = vmul.f32 %v2448, %v1140
    %v2473 = vmul.f32 %v2452, %v1401
    %v2474 = vmul.f32 %v2456, %v1658
    %v2475 = vmul.f32 %v2460, %v1909
    %v2476 = vmul.f32 %v2464, %v2082
    %v2477 = vmul.f32 %v2468, %v2171
    %v2478 = vsel %vm2390, %v2470, 0.0
    %v2479 = vsel %vm2390, %v2471, 0.0
    %v2480 = vadd.f32 %v2478, %v2479
    %v2481 = vsel %vm2390, %v2472, 0.0
    %v2482 = vadd.f32 %v2480, %v2481
    %v2483 = vsel %vm2390, %v2473, 0.0
    %v2484 = vadd.f32 %v2482, %v2483
    %v2485 = vsel %vm2390, %v2474, 0.0
    %v2486 = vadd.f32 %v2484, %v2485
    %v2487 = vsel %vm2390, %v2475, 0.0
    %v2488 = vadd.f32 %v2486, %v2487
    %v2489 = vsel %vm2390, %v2476, 0.0
    %v2490 = vadd.f32 %v2488, %v2489
    %v2491 = vsel %vm2390, %v2477, 0.0
    %v2492 = vadd.f32 %v2490, %v2491
    %v2493 = vmul.f32 %v2440, %v2334
    %v2494 = vmul.f32 %v2444, %v2335
    %v2495 = vmul.f32 %v2448, %v2336
    %v2496 = vmul.f32 %v2452, %v2337
    %v2497 = vmul.f32 %v2456, %v2338
    %v2498 = vmul.f32 %v2460, %v2339
    %v2499 = vmul.f32 %v2464, %v2340
    %v2500 = vmul.f32 %v2468, %v2341
    %v2501 = vsel %vm2278, %v2493, 0.0
    %v2502 = vsel %vm2278, %v2494, 0.0
    %v2503 = vadd.f32 %v2501, %v2502
    %v2504 = vsel %vm2278, %v2495, 0.0
    %v2505 = vadd.f32 %v2503, %v2504
    %v2506 = vsel %vm2278, %v2496, 0.0
    %v2507 = vadd.f32 %v2505, %v2506
    %v2508 = vsel %vm2278, %v2497, 0.0
    %v2509 = vadd.f32 %v2507, %v2508
    %v2510 = vsel %vm2278, %v2498, 0.0
    %v2511 = vadd.f32 %v2509, %v2510
    %v2512 = vsel %vm2278, %v2499, 0.0
    %v2513 = vadd.f32 %v2511, %v2512
    %v2514 = vsel %vm2278, %v2500, 0.0
    %v2515 = vadd.f32 %v2513, %v2514
    %vm2516 = vcmp.eq.s32.totalorder %v97, 1
    %v2517 = vsel %vm2516, 1, 0
    %v2518 = vcvt.s32.f32 %v2517
    %v2519 = vsub.f32 %v2515, %v2518
    %v2520 = vmul.f32 %v2519, %v2519
    %v2521 = vsel %vm2278, %v2520, 0.0
    %2522 = vadd.xlane.f32.xlu0 %v2521
    %v2523 = vpop.xlane.xlu0 %2522
    %v2524 = vadd.f32 %v2437, %v2523
    %2525 = vset.pattern.permute.xlu0 2
    %2526 = vperm.xlu0 %2525, %v2334
    %v2527 = vpop.permute.xlu0 %2526
    %2529 = vset.pattern.permute.xlu0 2
    %2530 = vperm.xlu0 %2529, %v2335
    %v2531 = vpop.permute.xlu0 %2530
    %2533 = vset.pattern.permute.xlu0 2
    %2534 = vperm.xlu0 %2533, %v2336
    %v2535 = vpop.permute.xlu0 %2534
    %2537 = vset.pattern.permute.xlu0 2
    %2538 = vperm.xlu0 %2537, %v2337
    %v2539 = vpop.permute.xlu0 %2538
    %2541 = vset.pattern.permute.xlu0 2
    %2542 = vperm.xlu0 %2541, %v2338
    %v2543 = vpop.permute.xlu0 %2542
    %2545 = vset.pattern.permute.xlu0 2
    %2546 = vperm.xlu0 %2545, %v2339
    %v2547 = vpop.permute.xlu0 %2546
    %2549 = vset.pattern.permute.xlu0 2
    %2550 = vperm.xlu0 %2549, %v2340
    %v2551 = vpop.permute.xlu0 %2550
    %2553 = vset.pattern.permute.xlu0 2
    %2554 = vperm.xlu0 %2553, %v2341
    %v2555 = vpop.permute.xlu0 %2554
    %v2557 = vmul.f32 %v2527, %v636
    %v2558 = vmul.f32 %v2531, %v894
    %v2559 = vmul.f32 %v2535, %v1140
    %v2560 = vmul.f32 %v2539, %v1401
    %v2561 = vmul.f32 %v2543, %v1658
    %v2562 = vmul.f32 %v2547, %v1909
    %v2563 = vmul.f32 %v2551, %v2082
    %v2564 = vmul.f32 %v2555, %v2171
    %v2565 = vsel %vm2390, %v2557, 0.0
    %v2566 = vsel %vm2390, %v2558, 0.0
    %v2567 = vadd.f32 %v2565, %v2566
    %v2568 = vsel %vm2390, %v2559, 0.0
    %v2569 = vadd.f32 %v2567, %v2568
    %v2570 = vsel %vm2390, %v2560, 0.0
    %v2571 = vadd.f32 %v2569, %v2570
    %v2572 = vsel %vm2390, %v2561, 0.0
    %v2573 = vadd.f32 %v2571, %v2572
    %v2574 = vsel %vm2390, %v2562, 0.0
    %v2575 = vadd.f32 %v2573, %v2574
    %v2576 = vsel %vm2390, %v2563, 0.0
    %v2577 = vadd.f32 %v2575, %v2576
    %v2578 = vsel %vm2390, %v2564, 0.0
    %v2579 = vadd.f32 %v2577, %v2578
    %v2580 = vmul.f32 %v2527, %v2334
    %v2581 = vmul.f32 %v2531, %v2335
    %v2582 = vmul.f32 %v2535, %v2336
    %v2583 = vmul.f32 %v2539, %v2337
    %v2584 = vmul.f32 %v2543, %v2338
    %v2585 = vmul.f32 %v2547, %v2339
    %v2586 = vmul.f32 %v2551, %v2340
    %v2587 = vmul.f32 %v2555, %v2341
    %v2588 = vsel %vm2278, %v2580, 0.0
    %v2589 = vsel %vm2278, %v2581, 0.0
    %v2590 = vadd.f32 %v2588, %v2589
    %v2591 = vsel %vm2278, %v2582, 0.0
    %v2592 = vadd.f32 %v2590, %v2591
    %v2593 = vsel %vm2278, %v2583, 0.0
    %v2594 = vadd.f32 %v2592, %v2593
    %v2595 = vsel %vm2278, %v2584, 0.0
    %v2596 = vadd.f32 %v2594, %v2595
    %v2597 = vsel %vm2278, %v2585, 0.0
    %v2598 = vadd.f32 %v2596, %v2597
    %v2599 = vsel %vm2278, %v2586, 0.0
    %v2600 = vadd.f32 %v2598, %v2599
    %v2601 = vsel %vm2278, %v2587, 0.0
    %v2602 = vadd.f32 %v2600, %v2601
    %vm2603 = vcmp.eq.s32.totalorder %v97, 2
    %v2604 = vsel %vm2603, 1, 0
    %v2605 = vcvt.s32.f32 %v2604
    %v2606 = vsub.f32 %v2602, %v2605
    %v2607 = vmul.f32 %v2606, %v2606
    %v2608 = vsel %vm2278, %v2607, 0.0
    %2609 = vadd.xlane.f32.xlu0 %v2608
    %v2610 = vpop.xlane.xlu0 %2609
    %v2611 = vadd.f32 %v2524, %v2610
    %2612 = vset.pattern.permute.xlu0 3
    %2613 = vperm.xlu0 %2612, %v2334
    %v2614 = vpop.permute.xlu0 %2613
    %2616 = vset.pattern.permute.xlu0 3
    %2617 = vperm.xlu0 %2616, %v2335
    %v2618 = vpop.permute.xlu0 %2617
    %2620 = vset.pattern.permute.xlu0 3
    %2621 = vperm.xlu0 %2620, %v2336
    %v2622 = vpop.permute.xlu0 %2621
    %2624 = vset.pattern.permute.xlu0 3
    %2625 = vperm.xlu0 %2624, %v2337
    %v2626 = vpop.permute.xlu0 %2625
    %2628 = vset.pattern.permute.xlu0 3
    %2629 = vperm.xlu0 %2628, %v2338
    %v2630 = vpop.permute.xlu0 %2629
    %2632 = vset.pattern.permute.xlu0 3
    %2633 = vperm.xlu0 %2632, %v2339
    %v2634 = vpop.permute.xlu0 %2633
    %2636 = vset.pattern.permute.xlu0 3
    %2637 = vperm.xlu0 %2636, %v2340
    %v2638 = vpop.permute.xlu0 %2637
    %2640 = vset.pattern.permute.xlu0 3
    %2641 = vperm.xlu0 %2640, %v2341
    %v2642 = vpop.permute.xlu0 %2641
    %v2644 = vmul.f32 %v2614, %v636
    %v2645 = vmul.f32 %v2618, %v894
    %v2646 = vmul.f32 %v2622, %v1140
    %v2647 = vmul.f32 %v2626, %v1401
    %v2648 = vmul.f32 %v2630, %v1658
    %v2649 = vmul.f32 %v2634, %v1909
    %v2650 = vmul.f32 %v2638, %v2082
    %v2651 = vmul.f32 %v2642, %v2171
    %v2652 = vsel %vm2390, %v2644, 0.0
    %v2653 = vsel %vm2390, %v2645, 0.0
    %v2654 = vadd.f32 %v2652, %v2653
    %v2655 = vsel %vm2390, %v2646, 0.0
    %v2656 = vadd.f32 %v2654, %v2655
    %v2657 = vsel %vm2390, %v2647, 0.0
    %v2658 = vadd.f32 %v2656, %v2657
    %v2659 = vsel %vm2390, %v2648, 0.0
    %v2660 = vadd.f32 %v2658, %v2659
    %v2661 = vsel %vm2390, %v2649, 0.0
    %v2662 = vadd.f32 %v2660, %v2661
    %v2663 = vsel %vm2390, %v2650, 0.0
    %v2664 = vadd.f32 %v2662, %v2663
    %v2665 = vsel %vm2390, %v2651, 0.0
    %v2666 = vadd.f32 %v2664, %v2665
    %v2667 = vmul.f32 %v2614, %v2334
    %v2668 = vmul.f32 %v2618, %v2335
    %v2669 = vmul.f32 %v2622, %v2336
    %v2670 = vmul.f32 %v2626, %v2337
    %v2671 = vmul.f32 %v2630, %v2338
    %v2672 = vmul.f32 %v2634, %v2339
    %v2673 = vmul.f32 %v2638, %v2340
    %v2674 = vmul.f32 %v2642, %v2341
    %v2675 = vsel %vm2278, %v2667, 0.0
    %v2676 = vsel %vm2278, %v2668, 0.0
    %v2677 = vadd.f32 %v2675, %v2676
    %v2678 = vsel %vm2278, %v2669, 0.0
    %v2679 = vadd.f32 %v2677, %v2678
    %v2680 = vsel %vm2278, %v2670, 0.0
    %v2681 = vadd.f32 %v2679, %v2680
    %v2682 = vsel %vm2278, %v2671, 0.0
    %v2683 = vadd.f32 %v2681, %v2682
    %v2684 = vsel %vm2278, %v2672, 0.0
    %v2685 = vadd.f32 %v2683, %v2684
    %v2686 = vsel %vm2278, %v2673, 0.0
    %v2687 = vadd.f32 %v2685, %v2686
    %v2688 = vsel %vm2278, %v2674, 0.0
    %v2689 = vadd.f32 %v2687, %v2688
    %vm2690 = vcmp.eq.s32.totalorder %v97, 3
    %v2691 = vsel %vm2690, 1, 0
    %v2692 = vcvt.s32.f32 %v2691
    %v2693 = vsub.f32 %v2689, %v2692
    %v2694 = vmul.f32 %v2693, %v2693
    %v2695 = vsel %vm2278, %v2694, 0.0
    %2696 = vadd.xlane.f32.xlu0 %v2695
    %v2697 = vpop.xlane.xlu0 %2696
    %v2698 = vadd.f32 %v2611, %v2697
    %v2699 = vadd.f32 %v2698, 1e-10
    %v2700 = vrsqrt.pop %v2699
    %v2701 = vmul.f32 %v2700, %v2699
    %v2702 = vmul.f32 %v2701, %v2700
    %v2703 = vmul.f32 0.5, %v2702
    %v2704 = vsub.f32 1.5, %v2703
    %v2705 = vmul.f32 %v2700, %v2704
    %v2706 = vmul.f32 %v2699, %v2705
    %vm2707 = vcmp.eq.f32.partialorder %v2699, inf
    %v2708 = vsel %vm2707, %v2699, %v2706
    %vm2709 = vcmp.eq.f32.partialorder %v2699, 0.0
    %v2710 = vand.u32 %v2699, 2147483648
    %v2711 = vsel %vm2709, %v2710, %v2708
    %v2712 = vsel %vm2190, %v2711, 0.0
    %v2713 = vrot.slane %v2712, 4
    %v2714 = vadd.f32 %v2712, %v2713
    %v2715 = vrot.slane %v2714, 2
    %v2716 = vadd.f32 %v2714, %v2715
    %v2717 = vrot.slane %v2716, 1
    %v2718 = vadd.f32 %v2716, %v2717
    %v2719 = vmul.f32 %v2718, 0.5
    %2721 = vrot.lane.b32.xlu0 %v2405, 32
    %v2722 = vpop.permute.xlu0 %2721
    %2725 = vrot.lane.b32.xlu0 %v2492, 64
    %v2726 = vpop.permute.xlu0 %2725
    %2729 = vrot.lane.b32.xlu0 %v2579, 96
    %v2730 = vpop.permute.xlu0 %2729
    %v2732 = vsel %vm148, %v2722, %v2726
    %vm2733 = vcmask 523264
    %v2734 = vsel %vm2733, %v2732, %v2730
    %vm2735 = vcmask 785408
    %v2736 = vsel %vm2735, %v2734, %v2666
    %v2737 = vperm.slane %v84, 0
    %2738 = vmatpush.msra.mxu0 %v83
    %2739 = vmatpush.msra.mxu0 %v82
    %2740 = vmatpush.msra.mxu0 %v81
    %2741 = vmatpush.msra.mxu0 %v80
    %2742 = vmatpush.msra.mxu0 %v79
    %2743 = vmatpush.msra.mxu0 %v78
    %2744 = vmatpush.msra.mxu0 %v77
    %2745 = vmatpush.msra.mxu0 %v76
    %2746 = vmatpush.msra.mxu0 %v75
    %2747 = vmatpush.msra.mxu0 %v74
    %2748 = vmatpush.msra.mxu0 %v73
    %2749 = vmatpush.msra.mxu0 %v72
    %2750 = vmatpush.msra.mxu0 %v71
    %2751 = vmatpush.msra.mxu0 %v70
    %2752 = vmatpush.msra.mxu0 %v69
    %2753 = vmatpush.msra.mxu0 %v68
    %2754 = vmatmul.f32.gmra.mxu0 %v2736
    %v2755 = vpop.f32.mrf.mxu0
    %v2756 = vadd.f32 %v2737, %v2755
    %2757 = vdwg.mxu0
    %v2758 = vmax.f32 %v2756, 0.0
    %v2759 = vperm.slane %v93, 0
    %v2761 = vsel %vm2733, %v2758, 0
    %2763 = vmatpush.msra.mxu0 0.0
    %2764 = vmatpush.msra.mxu0 0.0
    %2765 = vmatpush.msra.mxu0 0.0
    %2766 = vmatpush.msra.mxu0 0.0
    %2767 = vmatpush.msra.mxu0 0.0
    %2768 = vmatpush.msra.mxu0 0.0
    %2769 = vmatpush.msra.mxu0 0.0
    %2770 = vmatpush.msra.mxu0 0.0
    %2771 = vmatpush.msra.mxu0 %v92
    %2772 = vmatpush.msra.mxu0 %v91
    %2773 = vmatpush.msra.mxu0 %v90
    %2774 = vmatpush.msra.mxu0 %v89
    %2775 = vmatpush.msra.mxu0 %v88
    %2776 = vmatpush.msra.mxu0 %v87
    %2777 = vmatpush.msra.mxu0 %v86
    %2778 = vmatpush.msra.mxu0 %v85
    %2779 = vmatmul.f32.gmra.mxu0 %v2761
    %v2780 = vpop.f32.mrf.mxu0
    %v2781 = vadd.f32 %v2759, %v2780
    %2782 = vdwg.mxu0
    %2783 = vst.msk [vmem:[#allocation5] sm:$0x3] %vm2278, %v2781
    %vm2784 = vcmask 0
    %2785 = vst.msk [vmem:[#allocation6] sm:$0x1] %vm2784, %v2719
    // Predicated region
    $region14: #{forward.1} parent=1 // pred_check
      _
    $region15: #{forward.1} parent=1 // pred_check_branch
      %2787 = sbr.rel (0) target = $region17
    $region16: #{forward.1} parent=1 // pred_region
      %2789 = vsyncadd [#allocation4], 0
      %s2791 = sshll.u32 [#allocation5], 4
      %s2792 = int_to_ptr.vmem [resolvable:$true] %s2791
      %s2793 = sshll.u32 %s2, 4
      %s2794 = int_to_ptr.hbm [resolvable:$true] %s2793
      %2796 = dma.vmem_to_hbm [thread:$0]  %s2792, 32, %s2794, [#allocation4]
    $region17: #{forward.1} parent=1 // pred_fallthru
      _
    // Predicated region
    $region18: #{forward.1} parent=1 // pred_check
      _
    $region19: #{forward.1} parent=1 // pred_check_branch
      %2798 = sbr.rel (0) target = $region21
    $region20: #{forward.1} parent=1 // pred_region
      %2800 = vsyncadd [#allocation7], 0
      %s2802 = sshll.u32 [#allocation6], 4
      %s2803 = int_to_ptr.vmem [resolvable:$true] %s2802
      %s2804 = sshll.u32 %s3, 4
      %s2805 = int_to_ptr.hbm [resolvable:$true] %s2804
      %2807 = dma.vmem_to_hbm [thread:$0]  %s2803, 16, %s2805, [#allocation7]
    $region21: #{forward.1} parent=1 // pred_fallthru
      _
    // Predicated region
    $region22: #{forward.1} parent=1 // pred_check
      _
    $region23: #{forward.1} parent=1 // pred_check_branch
      %2809 = sbr.rel (0) target = $region25
    $region24: #{forward.1} parent=1 // pred_region
      %2811 = dma.done [#allocation4], 32
    $region25: #{forward.1} parent=1 // pred_fallthru
      _
    // Predicated region
    $region26: #{forward.1} parent=1 // pred_check
      _
    $region27: #{forward.1} parent=1 // pred_check_branch
      %2813 = sbr.rel (0) target = $region29
    $region28: #{forward.1} parent=1 // pred_region
      %2815 = dma.done [#allocation7], 16
    $region29: #{forward.1} parent=1 // pred_fallthru
      _
    %2816 = vsyncpa [#allocation3], 1
    %2817 = vsyncpa [#allocation4], 1
    %2818 = vsyncpa [#allocation7], 1

</llo_original>
